<compile_context>
chip_gen: v6e
topology: v6e:2x2x1
jax: 0.10.0
libtpu: 0.0.40
codegen_flags: <defaults>
</compile_context>

<pallas_src>
import functools

import jax
import jax.numpy as jnp
from jax.experimental import pallas as pl
from jax.experimental.pallas import tpu as pltpu


def _group_mean_matrix(C, gs):
    """(C, C) matrix A with A[c, c'] = 1/gs iff c and c' share a GN group.

    x @ A yields the per-channel *group mean* directly in (B, C) lane layout,
    so no second "broadcast" matmul (and no cross-lane relayout) is needed.
    Entries are 0 or 1/gs (gs a power of two) -> exact in bf16.
    """
    c = jnp.arange(C)
    same = (c[:, None] // gs) == (c[None, :] // gs)
    return jnp.where(same, 1.0 / gs, 0.0).astype(jnp.bfloat16)


def _rec_fuse_kernel(H, lane_stack,
                     feas_ref, wh_ref, hgp_ref,
                     mgg_ref, mgb_ref,
                     w03_ref, w1_ref, w2_ref, bls_ref,
                     bgg_ref, bgb_ref,
                     we_ref, be_ref,
                     a1_ref, a2_ref,
                     out_ref):
    f32 = jnp.float32
    bf16 = jnp.bfloat16
    relu = lambda v: jnp.maximum(v, 0.0)

    def dot_bf16(x, w):
        # MXU in bf16 with f32 accumulation; elementwise math stays f32.
        return jnp.dot(x.astype(bf16), w, preferred_element_type=f32)

    def gn(x, gamma, beta, wide=False):
        """GroupNorm + folded affine on (n, C) activations.

        Stats come from per-channel group-mean matmuls (x @ A, x^2 @ A); the
        result is already broadcast to channels, so no broadcast matmul.
        gamma/beta are folded into the elementwise epilogue (VPU), rsqrt is
        EUP work.  Variance is clamped >= 0 (E[x^2]-E[x]^2 cancellation).
        """
        if wide:                      # fused head GN: C = 2H, 2G groups
            mean_c = dot_bf16(x, a2_ref[...])
            ex2_c = dot_bf16(x * x, a2_ref[...])
        elif lane_stack:              # v6e/v7x: one 256-wide MXU pass
            s = dot_bf16(jnp.concatenate([x, x * x], axis=1), a2_ref[...])
            mean_c, ex2_c = s[:, :H], s[:, H:]
        else:                         # v5e and older: two 128-wide passes
            mean_c = dot_bf16(x, a1_ref[...])
            ex2_c = dot_bf16(x * x, a1_ref[...])
        var_c = jnp.maximum(ex2_c - mean_c * mean_c, 0.0)
        scale = jax.lax.rsqrt(var_c + 1e-5) * gamma
        return x * scale + (beta - mean_c * scale)

    # Fused heads: one block-diagonal (TM, D) @ (D, 2H) matmul -> [local|global]
    # and one 2G-group GN over the fused 2H channels (groups never cross heads).
    head = relu(gn(jnp.dot(feas_ref[...], wh_ref[...], preferred_element_type=f32),
                   hgp_ref[0:1, :], hgp_ref[1:2, :], wide=True))
    local_fea = head[:, :H]

    def merge(v, i):
        return relu(gn(v, mgg_ref[i:i + 1, :], mgb_ref[i:i + 1, :]))

    def res_block(v, i):
        # W0 and W3 share the same LHS -> one (H, 2H) matmul; the slice at the
        # 128-lane boundary is free.  Line/shortcut biases were pre-summed.
        hs = dot_bf16(v, w03_ref[i])                     # [line1 | shortcut]
        h = relu(gn(hs[:, :H], bgg_ref[i, 0:1, :], bgb_ref[i, 0:1, :]))
        h = relu(gn(dot_bf16(h, w1_ref[i]), bgg_ref[i, 1:2, :], bgb_ref[i, 1:2, :]))
        ls = dot_bf16(h, w2_ref[i]) + hs[:, H:] + bls_ref[i:i + 1, :]
        return relu(gn(ls, bgg_ref[i, 2:3, :], bgb_ref[i, 2:3, :]))

    x = res_block(merge(local_fea + head[:, H:], 0), 0)   # block1(head_merge(.))
    x = res_block(merge(local_fea + x, 1), 1)             # block2(block1_merge(.))
    x = res_block(merge(local_fea + x, 2), 2)             # block3(block2_merge(.))

    emb = dot_bf16(x, we_ref[...]) + be_ref[...]
    # F.normalize(dim=1), eps=1e-12 — rsqrt (EUP), all f32.  Padded output
    # lanes are exactly zero (zero-padded w_end/b_end) so they do not disturb
    # the norm; padded batch rows never mix with valid rows (all ops are
    # row-independent) and are masked on the store.
    inv = jax.lax.rsqrt(jnp.maximum(jnp.sum(emb * emb, axis=1, keepdims=True), 1e-24))
    out_ref[...] = (emb * inv).astype(out_ref.dtype)


def init_params(key, input_dim, output_dim, channel_base=32, group_base=4):
    H = channel_base * group_base
    d_knn, d_des = input_dim
    keys = jax.random.split(key, 16)

    def xavier(k, fan_in, fan_out):
        a = jnp.sqrt(6.0 / (fan_in + fan_out))
        return jax.random.uniform(k, (fan_in, fan_out), jnp.float32, -a, a)

    params = {
        "w_knn": xavier(keys[0], d_knn, H),
        "w_des": xavier(keys[1], d_des, H),
        "head_gn_gamma": jnp.ones((2, H), jnp.float32),
        "head_gn_beta": jnp.zeros((2, H), jnp.float32),
        "merge_gn_gamma": jnp.ones((3, H), jnp.float32),
        "merge_gn_beta": jnp.zeros((3, H), jnp.float32),
        "blocks_b": jnp.zeros((3, 2, H), jnp.float32),        # Linear biases init to 0
        "blocks_gn_gamma": jnp.ones((3, 3, H), jnp.float32),
        "blocks_gn_beta": jnp.zeros((3, 3, H), jnp.float32),
        "w_end": xavier(keys[14], H, output_dim),
        "b_end": jnp.zeros((1, output_dim), jnp.float32),
    }
    blk_W = []
    for b in range(3):
        ws = [xavier(keys[2 + 4 * b + j], H, H) for j in range(4)]
        blk_W.append(jnp.stack(ws))
    params["blocks_W"] = jnp.stack(blk_W)                     # (3, 4, H, H)
    return params


def _device_traits():
    """(wide_mxu, two_tensorcores) derived from the attached TPU generation."""
    kind = ""
    try:
        kind = jax.devices()[0].device_kind.lower()
    except Exception:
        pass
    old_mxu = any(t in kind for t in ("v2", "v3", "v4", "v5"))  # 128x128 MXU
    two_tc = ("v7" in kind) or ("7x" in kind)                   # 2 TCs / chip
    return (not old_mxu), two_tc


def _choose_batch_tile(B, batch_tile, want_two_tiles):
    if B < 8:
        return B                                   # single block == full batch
    tm = max(8, min(batch_tile, (B // 8) * 8))     # multiple of 8
    if want_two_tiles and B >= 16 and pl.cdiv(B, tm) < 2:
        # v7x: need >= 2 grid steps so both TensorCores get work.
        tm = max(8, min(tm, (((B + 1) // 2) + 7) // 8 * 8))
    return tm


def rec_fuse_forward(feas, params, input_dim, group_base=4, batch_tile=None,
                     out_dtype=jnp.float32):
    """mode=0 forward pass.

    batch_tile: rows per grid step.  Defaults to 128 on v5* (single vst slot,
    128x128 MXU) and 256 on v6e/v7x; 512 is worth trying on v6e for very large
    B.  On v7x the tile is shrunk (when possible) so the grid has >= 2 steps.
    Padded rows of a final partial tile flow through GN/rsqrt on padding but
    stay finite (eps clamps) and are masked on the output store.
    """
    d_knn, d_des = input_dim
    D = d_knn + d_des
    B = feas.shape[0]
    H = params["w_knn"].shape[1]
    G = group_base
    gs = H // G
    out_dim = params["w_end"].shape[1]
    out_pad = ((out_dim + 127) // 128) * 128       # lane-dense output stores

    wide_mxu, two_tc = _device_traits()
    lane_stack = wide_mxu                          # 256-wide MXU: stack [x | x^2]
    if batch_tile is None:
        batch_tile = 256 if wide_mxu else 128
    TM = _choose_batch_tile(B, batch_tile, two_tc)
    grid = (pl.cdiv(B, TM),)

    # --- trace-time weight packing (plain XLA, outside the kernel) ---
    # block-diagonal head weight: both heads in one MXU matmul
    w_head = jnp.zeros((D, 2 * H), jnp.float32)
    w_head = w_head.at[:d_knn, :H].set(params["w_knn"])
    w_head = w_head.at[d_knn:, H:].set(params["w_des"])
    head_gnp = jnp.concatenate(
        [params["head_gn_gamma"].reshape(1, 2 * H),
         params["head_gn_beta"].reshape(1, 2 * H)], axis=0)            # (2, 2H)
    w03 = jnp.concatenate([params["blocks_W"][:, 0], params["blocks_W"][:, 3]],
                          axis=-1)                                     # (3, H, 2H)
    w1 = params["blocks_W"][:, 1]                                      # (3, H, H)
    w2 = params["blocks_W"][:, 2]                                      # (3, H, H)
    bls = params["blocks_b"][:, 0] + params["blocks_b"][:, 1]          # (3, H)
    w_end = jnp.zeros((H, out_pad), jnp.float32).at[:, :out_dim].set(params["w_end"])
    b_end = jnp.zeros((1, out_pad), jnp.float32).at[:, :out_dim].set(params["b_end"])
    # GroupNorm group-mean matrices, hoisted out of the kernel (bf16-exact).
    a1 = _group_mean_matrix(H, gs)
    a2 = _group_mean_matrix(2 * H, gs)

    # bf16 MXU operands (f32 accumulate in-kernel); GN/affine params stay f32.
    feas_bf = feas.astype(jnp.bfloat16)
    w_head = w_head.astype(jnp.bfloat16)
    w03 = w03.astype(jnp.bfloat16)
    w1 = w1.astype(jnp.bfloat16)
    w2 = w2.astype(jnp.bfloat16)
    w_end = w_end.astype(jnp.bfloat16)

    weight_args = (w_head, head_gnp,
                   params["merge_gn_gamma"], params["merge_gn_beta"],
                   w03, w1, w2, bls,
                   params["blocks_gn_gamma"], params["blocks_gn_beta"],
                   w_end, b_end, a1, a2)

    in_specs = [pl.BlockSpec((TM, D), lambda i: (i, 0))]
    in_specs += [pl.BlockSpec(a.shape, lambda i, _n=a.ndim: (0,) * _n)
                 for a in weight_args]
    out_spec = pl.BlockSpec((TM, out_pad), lambda i: (i, 0))

    # Advisory cost estimate so XLA can overlap the weight packing above.
    gn_flops = 2 * B * (2 * (2 * H) * (2 * H) + 12 * 2 * H * H)
    lin_flops = 2 * B * (D * 2 * H + 3 * (H * 2 * H + 2 * H * H) + H * out_pad)
    w_bytes = sum(int(a.size) * a.dtype.itemsize for a in weight_args)
    cost = pl.CostEstimate(
        flops=int(gn_flops + lin_flops),
        transcendentals=int(B * (14 * H + 1)),
        bytes_accessed=int(B * D * 2 + B * out_pad * jnp.dtype(out_dtype).itemsize
                           + w_bytes),
    )

    out = pl.pallas_call(
        functools.partial(_rec_fuse_kernel, H, lane_stack),
        grid=grid,
        in_specs=in_specs,
        out_specs=out_spec,
        out_shape=jax.ShapeDtypeStruct((B, out_pad), out_dtype),
        compiler_params=pltpu.CompilerParams(dimension_semantics=("parallel",)),
        cost_estimate=cost,
    )(feas_bf, *weight_args)
    return out[:, :out_dim]


def rec_fuse_reference(feas, params, input_dim, group_base=4):
    """Pure-JAX f32 reference of the PyTorch mode=0 forward (for validation)."""
    d_knn, _ = input_dim
    G = group_base
    hp = jax.lax.Precision.HIGHEST
    relu = lambda v: jnp.maximum(v, 0.0)

    def gn(x, gamma, beta):
        n, C = x.shape
        xg = x.reshape(n, G, C // G)
        mean = xg.mean(axis=2, keepdims=True)
        var = ((xg - mean) ** 2).mean(axis=2, keepdims=True)
        xn = ((xg - mean) / jnp.sqrt(var + 1e-5)).reshape(n, C)
        return xn * gamma + beta

    lf = relu(gn(jnp.dot(feas[:, :d_knn], params["w_knn"], precision=hp),
                 params["head_gn_gamma"][0], params["head_gn_beta"][0]))
    gf = relu(gn(jnp.dot(feas[:, d_knn:], params["w_des"], precision=hp),
                 params["head_gn_gamma"][1], params["head_gn_beta"][1]))

    def merge(v, i):
        return relu(gn(v, params["merge_gn_gamma"][i], params["merge_gn_beta"][i]))

    def block(v, i):
        W = params["blocks_W"][i]
        b = params["blocks_b"][i]
        gg = params["blocks_gn_gamma"][i]
        gb = params["blocks_gn_beta"][i]
        h = relu(gn(jnp.dot(v, W[0], precision=hp), gg[0], gb[0]))
        h = relu(gn(jnp.dot(h, W[1], precision=hp), gg[1], gb[1]))
        line = jnp.dot(h, W[2], precision=hp) + b[0]
        sc = jnp.dot(v, W[3], precision=hp) + b[1]
        return relu(gn(line + sc, gg[2], gb[2]))

    x = block(merge(lf + gf, 0), 0)
    x = block(merge(lf + x, 1), 1)
    x = block(merge(lf + x, 2), 2)
    emb = jnp.dot(x, params["w_end"], precision=hp) + params["b_end"][0]
    return emb / jnp.maximum(jnp.linalg.norm(emb, axis=1, keepdims=True), 1e-12)


if __name__ == "__main__":
    # small config: input_dim=(32, 64), hidden = gb*cb = 128, output_dim=64
    input_dim = (32, 64)
    output_dim = 64
    num_ids = 16          # unused in mode=0
    channel_base = 32
    group_base = 4
    batch = 8

    key = jax.random.PRNGKey(0)
    k_param, k_data = jax.random.split(key)
    params = init_params(k_param, input_dim, output_dim, channel_base, group_base)
    feas = jax.random.normal(k_data, (batch, sum(input_dim)), jnp.float32)

    fwd = jax.jit(lambda f, p: rec_fuse_forward(f, p, input_dim, group_base))
    emb = jax.block_until_ready(fwd(feas, params))

    # sanity: shape, finiteness, unit-norm rows
    norms = jnp.linalg.norm(emb, axis=1)
    assert emb.shape == (batch, output_dim)
    assert bool(jnp.all(jnp.isfinite(emb)))
    assert bool(jnp.all(jnp.abs(norms - 1.0) < 1e-3))

    # numeric check against the pure-JAX f32 reference (loose: bf16 MXU drift)
    ref = rec_fuse_reference(feas, params, input_dim, group_base)
    max_abs_err = float(jnp.max(jnp.abs(emb - ref)))
    assert max_abs_err < 5e-2, f"kernel vs reference max abs diff {max_abs_err}"

    print("KERNEL_OK")
</pallas_src>

<mosaic_0001>
module attributes {stable_mosaic.version = 11 : i64} {
  func.func @_rec_fuse_kernel(%arg0: i32, %arg1: memref<8x96xbf16, #tpu.memory_space<vmem>>, %arg2: memref<96x256xbf16, #tpu.memory_space<vmem>>, %arg3: memref<2x256xf32, #tpu.memory_space<vmem>>, %arg4: memref<3x128xf32, #tpu.memory_space<vmem>>, %arg5: memref<3x128xf32, #tpu.memory_space<vmem>>, %arg6: memref<3x128x256xbf16, #tpu.memory_space<vmem>>, %arg7: memref<3x128x128xbf16, #tpu.memory_space<vmem>>, %arg8: memref<3x128x128xbf16, #tpu.memory_space<vmem>>, %arg9: memref<3x128xf32, #tpu.memory_space<vmem>>, %arg10: memref<3x3x128xf32, #tpu.memory_space<vmem>>, %arg11: memref<3x3x128xf32, #tpu.memory_space<vmem>>, %arg12: memref<128x128xbf16, #tpu.memory_space<vmem>>, %arg13: memref<1x128xf32, #tpu.memory_space<vmem>>, %arg14: memref<128x128xbf16, #tpu.memory_space<vmem>>, %arg15: memref<256x256xbf16, #tpu.memory_space<vmem>>, %arg16: memref<8x128xf32, #tpu.memory_space<vmem>>) attributes {dimension_semantics = [#tpu.dimension_semantics<parallel>], iteration_bounds = array<i64: 1>, scalar_prefetch = 0 : i64, scratch_operands = 0 : i64, tpu.core_type = #tpu.core_type<tc>, window_params = [{transform_indices = @transform_0, window_bounds = array<i64: 8, 96>}, {pipeline_mode = #tpu.pipeline_mode<synchronous>, transform_indices = @transform_1, window_bounds = array<i64: 96, 256>}, {pipeline_mode = #tpu.pipeline_mode<synchronous>, transform_indices = @transform_2, window_bounds = array<i64: 2, 256>}, {pipeline_mode = #tpu.pipeline_mode<synchronous>, transform_indices = @transform_3, window_bounds = array<i64: 3, 128>}, {pipeline_mode = #tpu.pipeline_mode<synchronous>, transform_indices = @transform_4, window_bounds = array<i64: 3, 128>}, {pipeline_mode = #tpu.pipeline_mode<synchronous>, transform_indices = @transform_5, window_bounds = array<i64: 3, 128, 256>}, {pipeline_mode = #tpu.pipeline_mode<synchronous>, transform_indices = @transform_6, window_bounds = array<i64: 3, 128, 128>}, {pipeline_mode = #tpu.pipeline_mode<synchronous>, transform_indices = @transform_7, window_bounds = array<i64: 3, 128, 128>}, {pipeline_mode = #tpu.pipeline_mode<synchronous>, transform_indices = @transform_8, window_bounds = array<i64: 3, 128>}, {pipeline_mode = #tpu.pipeline_mode<synchronous>, transform_indices = @transform_9, window_bounds = array<i64: 3, 3, 128>}, {pipeline_mode = #tpu.pipeline_mode<synchronous>, transform_indices = @transform_10, window_bounds = array<i64: 3, 3, 128>}, {pipeline_mode = #tpu.pipeline_mode<synchronous>, transform_indices = @transform_11, window_bounds = array<i64: 128, 128>}, {pipeline_mode = #tpu.pipeline_mode<synchronous>, transform_indices = @transform_12, window_bounds = array<i64: 1, 128>}, {pipeline_mode = #tpu.pipeline_mode<synchronous>, transform_indices = @transform_13, window_bounds = array<i64: 128, 128>}, {pipeline_mode = #tpu.pipeline_mode<synchronous>, transform_indices = @transform_14, window_bounds = array<i64: 256, 256>}, {transform_indices = @transform_15, window_bounds = array<i64: 8, 128>}]} {
    %c0 = arith.constant 0 : index
    %c0_0 = arith.constant 0 : index
    %0 = vector.load %arg1[%c0, %c0_0] : memref<8x96xbf16, #tpu.memory_space<vmem>>, vector<8x96xbf16>
    %c0_1 = arith.constant 0 : index
    %c0_2 = arith.constant 0 : index
    %1 = vector.load %arg2[%c0_1, %c0_2] : memref<96x256xbf16, #tpu.memory_space<vmem>>, vector<96x256xbf16>
    %cst = arith.constant dense<0.000000e+00> : vector<8x256xf32>
    %2 = tpu.matmul %0, %1, %cst {dimension_numbers = #tpu.dot_dimension_numbers<[1], [0], [0], [1], [0, 0, 1, 1], [], []>} : vector<8x96xbf16>, vector<96x256xbf16>, vector<8x256xf32> -> vector<8x256xf32>
    %c0_3 = arith.constant 0 : index
    %c0_4 = arith.constant 0 : index
    %3 = vector.load %arg3[%c0_3, %c0_4] : memref<2x256xf32, #tpu.memory_space<vmem>>, vector<1x256xf32>
    %c1 = arith.constant 1 : index
    %c0_5 = arith.constant 0 : index
    %4 = vector.load %arg3[%c1, %c0_5] : memref<2x256xf32, #tpu.memory_space<vmem>>, vector<1x256xf32>
    %c0_6 = arith.constant 0 : index
    %c0_7 = arith.constant 0 : index
    %5 = vector.load %arg15[%c0_6, %c0_7] : memref<256x256xbf16, #tpu.memory_space<vmem>>, vector<256x256xbf16>
    %6 = arith.truncf %2 : vector<8x256xf32> to vector<8x256xbf16>
    %cst_8 = arith.constant dense<0.000000e+00> : vector<8x256xf32>
    %7 = tpu.matmul %6, %5, %cst_8 {dimension_numbers = #tpu.dot_dimension_numbers<[1], [0], [0], [1], [0, 0, 1, 1], [], []>} : vector<8x256xbf16>, vector<256x256xbf16>, vector<8x256xf32> -> vector<8x256xf32>
    %8 = arith.mulf %2, %2 : vector<8x256xf32>
    %c0_9 = arith.constant 0 : index
    %c0_10 = arith.constant 0 : index
    %9 = vector.load %arg15[%c0_9, %c0_10] : memref<256x256xbf16, #tpu.memory_space<vmem>>, vector<256x256xbf16>
    %10 = arith.truncf %8 : vector<8x256xf32> to vector<8x256xbf16>
    %cst_11 = arith.constant dense<0.000000e+00> : vector<8x256xf32>
    %11 = tpu.matmul %10, %9, %cst_11 {dimension_numbers = #tpu.dot_dimension_numbers<[1], [0], [0], [1], [0, 0, 1, 1], [], []>} : vector<8x256xbf16>, vector<256x256xbf16>, vector<8x256xf32> -> vector<8x256xf32>
    %12 = arith.mulf %7, %7 : vector<8x256xf32>
    %13 = arith.subf %11, %12 : vector<8x256xf32>
    %cst_12 = arith.constant 0.000000e+00 : f32
    %14 = vector.broadcast %cst_12 : f32 to vector<8x256xf32>
    %15 = arith.maximumf %13, %14 : vector<8x256xf32>
    %cst_13 = arith.constant 9.99999974E-6 : f32
    %16 = vector.broadcast %cst_13 : f32 to vector<8x256xf32>
    %17 = arith.addf %15, %16 : vector<8x256xf32>
    %18 = math.rsqrt %17 : vector<8x256xf32>
    %19 = vector.broadcast %3 : vector<1x256xf32> to vector<8x256xf32>
    %20 = arith.mulf %18, %19 : vector<8x256xf32>
    %21 = arith.mulf %2, %20 : vector<8x256xf32>
    %22 = arith.mulf %7, %20 : vector<8x256xf32>
    %23 = vector.broadcast %4 : vector<1x256xf32> to vector<8x256xf32>
    %24 = arith.subf %23, %22 : vector<8x256xf32>
    %25 = arith.addf %21, %24 : vector<8x256xf32>
    %cst_14 = arith.constant 0.000000e+00 : f32
    %26 = vector.broadcast %cst_14 : f32 to vector<8x256xf32>
    %27 = arith.maximumf %25, %26 : vector<8x256xf32>
    %28 = vector.extract_strided_slice %27 {offsets = [0, 0], sizes = [8, 128], strides = [1, 1]} : vector<8x256xf32> to vector<8x128xf32>
    %29 = vector.extract_strided_slice %27 {offsets = [0, 128], sizes = [8, 128], strides = [1, 1]} : vector<8x256xf32> to vector<8x128xf32>
    %30 = arith.addf %28, %29 : vector<8x128xf32>
    %c0_15 = arith.constant 0 : index
    %c0_16 = arith.constant 0 : index
    %31 = vector.load %arg4[%c0_15, %c0_16] : memref<3x128xf32, #tpu.memory_space<vmem>>, vector<1x128xf32>
    %c0_17 = arith.constant 0 : index
    %c0_18 = arith.constant 0 : index
    %32 = vector.load %arg5[%c0_17, %c0_18] : memref<3x128xf32, #tpu.memory_space<vmem>>, vector<1x128xf32>
    %33 = arith.mulf %30, %30 : vector<8x128xf32>
    %34 = tpu.concatenate %30, %33 in 1 : vector<8x128xf32>, vector<8x128xf32> -> vector<8x256xf32>
    %c0_19 = arith.constant 0 : index
    %c0_20 = arith.constant 0 : index
    %35 = vector.load %arg15[%c0_19, %c0_20] : memref<256x256xbf16, #tpu.memory_space<vmem>>, vector<256x256xbf16>
    %36 = arith.truncf %34 : vector<8x256xf32> to vector<8x256xbf16>
    %cst_21 = arith.constant dense<0.000000e+00> : vector<8x256xf32>
    %37 = tpu.matmul %36, %35, %cst_21 {dimension_numbers = #tpu.dot_dimension_numbers<[1], [0], [0], [1], [0, 0, 1, 1], [], []>} : vector<8x256xbf16>, vector<256x256xbf16>, vector<8x256xf32> -> vector<8x256xf32>
    %38 = vector.extract_strided_slice %37 {offsets = [0, 0], sizes = [8, 128], strides = [1, 1]} : vector<8x256xf32> to vector<8x128xf32>
    %39 = vector.extract_strided_slice %37 {offsets = [0, 128], sizes = [8, 128], strides = [1, 1]} : vector<8x256xf32> to vector<8x128xf32>
    %40 = arith.mulf %38, %38 : vector<8x128xf32>
    %41 = arith.subf %39, %40 : vector<8x128xf32>
    %cst_22 = arith.constant 0.000000e+00 : f32
    %42 = vector.broadcast %cst_22 : f32 to vector<8x128xf32>
    %43 = arith.maximumf %41, %42 : vector<8x128xf32>
    %cst_23 = arith.constant 9.99999974E-6 : f32
    %44 = vector.broadcast %cst_23 : f32 to vector<8x128xf32>
    %45 = arith.addf %43, %44 : vector<8x128xf32>
    %46 = math.rsqrt %45 : vector<8x128xf32>
    %47 = vector.broadcast %31 : vector<1x128xf32> to vector<8x128xf32>
    %48 = arith.mulf %46, %47 : vector<8x128xf32>
    %49 = arith.mulf %30, %48 : vector<8x128xf32>
    %50 = arith.mulf %38, %48 : vector<8x128xf32>
    %51 = vector.broadcast %32 : vector<1x128xf32> to vector<8x128xf32>
    %52 = arith.subf %51, %50 : vector<8x128xf32>
    %53 = arith.addf %49, %52 : vector<8x128xf32>
    %cst_24 = arith.constant 0.000000e+00 : f32
    %54 = vector.broadcast %cst_24 : f32 to vector<8x128xf32>
    %55 = arith.maximumf %53, %54 : vector<8x128xf32>
    %c0_25 = arith.constant 0 : index
    %c0_26 = arith.constant 0 : index
    %c0_27 = arith.constant 0 : index
    %56 = vector.load %arg6[%c0_25, %c0_26, %c0_27] : memref<3x128x256xbf16, #tpu.memory_space<vmem>>, vector<1x128x256xbf16>
    %57 = vector.shape_cast %56 : vector<1x128x256xbf16> to vector<128x256xbf16>
    %58 = arith.truncf %55 : vector<8x128xf32> to vector<8x128xbf16>
    %cst_28 = arith.constant dense<0.000000e+00> : vector<8x256xf32>
    %59 = tpu.matmul %58, %57, %cst_28 {dimension_numbers = #tpu.dot_dimension_numbers<[1], [0], [0], [1], [0, 0, 1, 1], [], []>} : vector<8x128xbf16>, vector<128x256xbf16>, vector<8x256xf32> -> vector<8x256xf32>
    %60 = vector.extract_strided_slice %59 {offsets = [0, 0], sizes = [8, 128], strides = [1, 1]} : vector<8x256xf32> to vector<8x128xf32>
    %c0_29 = arith.constant 0 : index
    %c0_30 = arith.constant 0 : index
    %c0_31 = arith.constant 0 : index
    %61 = vector.load %arg10[%c0_29, %c0_30, %c0_31] : memref<3x3x128xf32, #tpu.memory_space<vmem>>, vector<1x1x128xf32>
    %62 = vector.shape_cast %61 : vector<1x1x128xf32> to vector<1x128xf32>
    %c0_32 = arith.constant 0 : index
    %c0_33 = arith.constant 0 : index
    %c0_34 = arith.constant 0 : index
    %63 = vector.load %arg11[%c0_32, %c0_33, %c0_34] : memref<3x3x128xf32, #tpu.memory_space<vmem>>, vector<1x1x128xf32>
    %64 = vector.shape_cast %63 : vector<1x1x128xf32> to vector<1x128xf32>
    %65 = arith.mulf %60, %60 : vector<8x128xf32>
    %66 = tpu.concatenate %60, %65 in 1 : vector<8x128xf32>, vector<8x128xf32> -> vector<8x256xf32>
    %c0_35 = arith.constant 0 : index
    %c0_36 = arith.constant 0 : index
    %67 = vector.load %arg15[%c0_35, %c0_36] : memref<256x256xbf16, #tpu.memory_space<vmem>>, vector<256x256xbf16>
    %68 = arith.truncf %66 : vector<8x256xf32> to vector<8x256xbf16>
    %cst_37 = arith.constant dense<0.000000e+00> : vector<8x256xf32>
    %69 = tpu.matmul %68, %67, %cst_37 {dimension_numbers = #tpu.dot_dimension_numbers<[1], [0], [0], [1], [0, 0, 1, 1], [], []>} : vector<8x256xbf16>, vector<256x256xbf16>, vector<8x256xf32> -> vector<8x256xf32>
    %70 = vector.extract_strided_slice %69 {offsets = [0, 0], sizes = [8, 128], strides = [1, 1]} : vector<8x256xf32> to vector<8x128xf32>
    %71 = vector.extract_strided_slice %69 {offsets = [0, 128], sizes = [8, 128], strides = [1, 1]} : vector<8x256xf32> to vector<8x128xf32>
    %72 = arith.mulf %70, %70 : vector<8x128xf32>
    %73 = arith.subf %71, %72 : vector<8x128xf32>
    %cst_38 = arith.constant 0.000000e+00 : f32
    %74 = vector.broadcast %cst_38 : f32 to vector<8x128xf32>
    %75 = arith.maximumf %73, %74 : vector<8x128xf32>
    %cst_39 = arith.constant 9.99999974E-6 : f32
    %76 = vector.broadcast %cst_39 : f32 to vector<8x128xf32>
    %77 = arith.addf %75, %76 : vector<8x128xf32>
    %78 = math.rsqrt %77 : vector<8x128xf32>
    %79 = vector.broadcast %62 : vector<1x128xf32> to vector<8x128xf32>
    %80 = arith.mulf %78, %79 : vector<8x128xf32>
    %81 = arith.mulf %60, %80 : vector<8x128xf32>
    %82 = arith.mulf %70, %80 : vector<8x128xf32>
    %83 = vector.broadcast %64 : vector<1x128xf32> to vector<8x128xf32>
    %84 = arith.subf %83, %82 : vector<8x128xf32>
    %85 = arith.addf %81, %84 : vector<8x128xf32>
    %cst_40 = arith.constant 0.000000e+00 : f32
    %86 = vector.broadcast %cst_40 : f32 to vector<8x128xf32>
    %87 = arith.maximumf %85, %86 : vector<8x128xf32>
    %c0_41 = arith.constant 0 : index
    %c0_42 = arith.constant 0 : index
    %c0_43 = arith.constant 0 : index
    %88 = vector.load %arg7[%c0_41, %c0_42, %c0_43] : memref<3x128x128xbf16, #tpu.memory_space<vmem>>, vector<1x128x128xbf16>
    %89 = vector.shape_cast %88 : vector<1x128x128xbf16> to vector<128x128xbf16>
    %90 = arith.truncf %87 : vector<8x128xf32> to vector<8x128xbf16>
    %cst_44 = arith.constant dense<0.000000e+00> : vector<8x128xf32>
    %91 = tpu.matmul %90, %89, %cst_44 {dimension_numbers = #tpu.dot_dimension_numbers<[1], [0], [0], [1], [0, 0, 1, 1], [], []>} : vector<8x128xbf16>, vector<128x128xbf16>, vector<8x128xf32> -> vector<8x128xf32>
    %c0_45 = arith.constant 0 : index
    %c1_46 = arith.constant 1 : index
    %c0_47 = arith.constant 0 : index
    %92 = vector.load %arg10[%c0_45, %c1_46, %c0_47] : memref<3x3x128xf32, #tpu.memory_space<vmem>>, vector<1x1x128xf32>
    %93 = vector.shape_cast %92 : vector<1x1x128xf32> to vector<1x128xf32>
    %c0_48 = arith.constant 0 : index
    %c1_49 = arith.constant 1 : index
    %c0_50 = arith.constant 0 : index
    %94 = vector.load %arg11[%c0_48, %c1_49, %c0_50] : memref<3x3x128xf32, #tpu.memory_space<vmem>>, vector<1x1x128xf32>
    %95 = vector.shape_cast %94 : vector<1x1x128xf32> to vector<1x128xf32>
    %96 = arith.mulf %91, %91 : vector<8x128xf32>
    %97 = tpu.concatenate %91, %96 in 1 : vector<8x128xf32>, vector<8x128xf32> -> vector<8x256xf32>
    %c0_51 = arith.constant 0 : index
    %c0_52 = arith.constant 0 : index
    %98 = vector.load %arg15[%c0_51, %c0_52] : memref<256x256xbf16, #tpu.memory_space<vmem>>, vector<256x256xbf16>
    %99 = arith.truncf %97 : vector<8x256xf32> to vector<8x256xbf16>
    %cst_53 = arith.constant dense<0.000000e+00> : vector<8x256xf32>
    %100 = tpu.matmul %99, %98, %cst_53 {dimension_numbers = #tpu.dot_dimension_numbers<[1], [0], [0], [1], [0, 0, 1, 1], [], []>} : vector<8x256xbf16>, vector<256x256xbf16>, vector<8x256xf32> -> vector<8x256xf32>
    %101 = vector.extract_strided_slice %100 {offsets = [0, 0], sizes = [8, 128], strides = [1, 1]} : vector<8x256xf32> to vector<8x128xf32>
    %102 = vector.extract_strided_slice %100 {offsets = [0, 128], sizes = [8, 128], strides = [1, 1]} : vector<8x256xf32> to vector<8x128xf32>
    %103 = arith.mulf %101, %101 : vector<8x128xf32>
    %104 = arith.subf %102, %103 : vector<8x128xf32>
    %cst_54 = arith.constant 0.000000e+00 : f32
    %105 = vector.broadcast %cst_54 : f32 to vector<8x128xf32>
    %106 = arith.maximumf %104, %105 : vector<8x128xf32>
    %cst_55 = arith.constant 9.99999974E-6 : f32
    %107 = vector.broadcast %cst_55 : f32 to vector<8x128xf32>
    %108 = arith.addf %106, %107 : vector<8x128xf32>
    %109 = math.rsqrt %108 : vector<8x128xf32>
    %110 = vector.broadcast %93 : vector<1x128xf32> to vector<8x128xf32>
    %111 = arith.mulf %109, %110 : vector<8x128xf32>
    %112 = arith.mulf %91, %111 : vector<8x128xf32>
    %113 = arith.mulf %101, %111 : vector<8x128xf32>
    %114 = vector.broadcast %95 : vector<1x128xf32> to vector<8x128xf32>
    %115 = arith.subf %114, %113 : vector<8x128xf32>
    %116 = arith.addf %112, %115 : vector<8x128xf32>
    %cst_56 = arith.constant 0.000000e+00 : f32
    %117 = vector.broadcast %cst_56 : f32 to vector<8x128xf32>
    %118 = arith.maximumf %116, %117 : vector<8x128xf32>
    %c0_57 = arith.constant 0 : index
    %c0_58 = arith.constant 0 : index
    %c0_59 = arith.constant 0 : index
    %119 = vector.load %arg8[%c0_57, %c0_58, %c0_59] : memref<3x128x128xbf16, #tpu.memory_space<vmem>>, vector<1x128x128xbf16>
    %120 = vector.shape_cast %119 : vector<1x128x128xbf16> to vector<128x128xbf16>
    %121 = arith.truncf %118 : vector<8x128xf32> to vector<8x128xbf16>
    %cst_60 = arith.constant dense<0.000000e+00> : vector<8x128xf32>
    %122 = tpu.matmul %121, %120, %cst_60 {dimension_numbers = #tpu.dot_dimension_numbers<[1], [0], [0], [1], [0, 0, 1, 1], [], []>} : vector<8x128xbf16>, vector<128x128xbf16>, vector<8x128xf32> -> vector<8x128xf32>
    %123 = vector.extract_strided_slice %59 {offsets = [0, 128], sizes = [8, 128], strides = [1, 1]} : vector<8x256xf32> to vector<8x128xf32>
    %124 = arith.addf %122, %123 : vector<8x128xf32>
    %c0_61 = arith.constant 0 : index
    %c0_62 = arith.constant 0 : index
    %125 = vector.load %arg9[%c0_61, %c0_62] : memref<3x128xf32, #tpu.memory_space<vmem>>, vector<1x128xf32>
    %126 = vector.broadcast %125 : vector<1x128xf32> to vector<8x128xf32>
    %127 = arith.addf %124, %126 : vector<8x128xf32>
    %c0_63 = arith.constant 0 : index
    %c2 = arith.constant 2 : index
    %c0_64 = arith.constant 0 : index
    %128 = vector.load %arg10[%c0_63, %c2, %c0_64] : memref<3x3x128xf32, #tpu.memory_space<vmem>>, vector<1x1x128xf32>
    %129 = vector.shape_cast %128 : vector<1x1x128xf32> to vector<1x128xf32>
    %c0_65 = arith.constant 0 : index
    %c2_66 = arith.constant 2 : index
    %c0_67 = arith.constant 0 : index
    %130 = vector.load %arg11[%c0_65, %c2_66, %c0_67] : memref<3x3x128xf32, #tpu.memory_space<vmem>>, vector<1x1x128xf32>
    %131 = vector.shape_cast %130 : vector<1x1x128xf32> to vector<1x128xf32>
    %132 = arith.mulf %127, %127 : vector<8x128xf32>
    %133 = tpu.concatenate %127, %132 in 1 : vector<8x128xf32>, vector<8x128xf32> -> vector<8x256xf32>
    %c0_68 = arith.constant 0 : index
    %c0_69 = arith.constant 0 : index
    %134 = vector.load %arg15[%c0_68, %c0_69] : memref<256x256xbf16, #tpu.memory_space<vmem>>, vector<256x256xbf16>
    %135 = arith.truncf %133 : vector<8x256xf32> to vector<8x256xbf16>
    %cst_70 = arith.constant dense<0.000000e+00> : vector<8x256xf32>
    %136 = tpu.matmul %135, %134, %cst_70 {dimension_numbers = #tpu.dot_dimension_numbers<[1], [0], [0], [1], [0, 0, 1, 1], [], []>} : vector<8x256xbf16>, vector<256x256xbf16>, vector<8x256xf32> -> vector<8x256xf32>
    %137 = vector.extract_strided_slice %136 {offsets = [0, 0], sizes = [8, 128], strides = [1, 1]} : vector<8x256xf32> to vector<8x128xf32>
    %138 = vector.extract_strided_slice %136 {offsets = [0, 128], sizes = [8, 128], strides = [1, 1]} : vector<8x256xf32> to vector<8x128xf32>
    %139 = arith.mulf %137, %137 : vector<8x128xf32>
    %140 = arith.subf %138, %139 : vector<8x128xf32>
    %cst_71 = arith.constant 0.000000e+00 : f32
    %141 = vector.broadcast %cst_71 : f32 to vector<8x128xf32>
    %142 = arith.maximumf %140, %141 : vector<8x128xf32>
    %cst_72 = arith.constant 9.99999974E-6 : f32
    %143 = vector.broadcast %cst_72 : f32 to vector<8x128xf32>
    %144 = arith.addf %142, %143 : vector<8x128xf32>
    %145 = math.rsqrt %144 : vector<8x128xf32>
    %146 = vector.broadcast %129 : vector<1x128xf32> to vector<8x128xf32>
    %147 = arith.mulf %145, %146 : vector<8x128xf32>
    %148 = arith.mulf %127, %147 : vector<8x128xf32>
    %149 = arith.mulf %137, %147 : vector<8x128xf32>
    %150 = vector.broadcast %131 : vector<1x128xf32> to vector<8x128xf32>
    %151 = arith.subf %150, %149 : vector<8x128xf32>
    %152 = arith.addf %148, %151 : vector<8x128xf32>
    %cst_73 = arith.constant 0.000000e+00 : f32
    %153 = vector.broadcast %cst_73 : f32 to vector<8x128xf32>
    %154 = arith.maximumf %152, %153 : vector<8x128xf32>
    %155 = arith.addf %28, %154 : vector<8x128xf32>
    %c1_74 = arith.constant 1 : index
    %c0_75 = arith.constant 0 : index
    %156 = vector.load %arg4[%c1_74, %c0_75] : memref<3x128xf32, #tpu.memory_space<vmem>>, vector<1x128xf32>
    %c1_76 = arith.constant 1 : index
    %c0_77 = arith.constant 0 : index
    %157 = vector.load %arg5[%c1_76, %c0_77] : memref<3x128xf32, #tpu.memory_space<vmem>>, vector<1x128xf32>
    %158 = arith.mulf %155, %155 : vector<8x128xf32>
    %159 = tpu.concatenate %155, %158 in 1 : vector<8x128xf32>, vector<8x128xf32> -> vector<8x256xf32>
    %c0_78 = arith.constant 0 : index
    %c0_79 = arith.constant 0 : index
    %160 = vector.load %arg15[%c0_78, %c0_79] : memref<256x256xbf16, #tpu.memory_space<vmem>>, vector<256x256xbf16>
    %161 = arith.truncf %159 : vector<8x256xf32> to vector<8x256xbf16>
    %cst_80 = arith.constant dense<0.000000e+00> : vector<8x256xf32>
    %162 = tpu.matmul %161, %160, %cst_80 {dimension_numbers = #tpu.dot_dimension_numbers<[1], [0], [0], [1], [0, 0, 1, 1], [], []>} : vector<8x256xbf16>, vector<256x256xbf16>, vector<8x256xf32> -> vector<8x256xf32>
    %163 = vector.extract_strided_slice %162 {offsets = [0, 0], sizes = [8, 128], strides = [1, 1]} : vector<8x256xf32> to vector<8x128xf32>
    %164 = vector.extract_strided_slice %162 {offsets = [0, 128], sizes = [8, 128], strides = [1, 1]} : vector<8x256xf32> to vector<8x128xf32>
    %165 = arith.mulf %163, %163 : vector<8x128xf32>
    %166 = arith.subf %164, %165 : vector<8x128xf32>
    %cst_81 = arith.constant 0.000000e+00 : f32
    %167 = vector.broadcast %cst_81 : f32 to vector<8x128xf32>
    %168 = arith.maximumf %166, %167 : vector<8x128xf32>
    %cst_82 = arith.constant 9.99999974E-6 : f32
    %169 = vector.broadcast %cst_82 : f32 to vector<8x128xf32>
    %170 = arith.addf %168, %169 : vector<8x128xf32>
    %171 = math.rsqrt %170 : vector<8x128xf32>
    %172 = vector.broadcast %156 : vector<1x128xf32> to vector<8x128xf32>
    %173 = arith.mulf %171, %172 : vector<8x128xf32>
    %174 = arith.mulf %155, %173 : vector<8x128xf32>
    %175 = arith.mulf %163, %173 : vector<8x128xf32>
    %176 = vector.broadcast %157 : vector<1x128xf32> to vector<8x128xf32>
    %177 = arith.subf %176, %175 : vector<8x128xf32>
    %178 = arith.addf %174, %177 : vector<8x128xf32>
    %cst_83 = arith.constant 0.000000e+00 : f32
    %179 = vector.broadcast %cst_83 : f32 to vector<8x128xf32>
    %180 = arith.maximumf %178, %179 : vector<8x128xf32>
    %c1_84 = arith.constant 1 : index
    %c0_85 = arith.constant 0 : index
    %c0_86 = arith.constant 0 : index
    %181 = vector.load %arg6[%c1_84, %c0_85, %c0_86] : memref<3x128x256xbf16, #tpu.memory_space<vmem>>, vector<1x128x256xbf16>
    %182 = vector.shape_cast %181 : vector<1x128x256xbf16> to vector<128x256xbf16>
    %183 = arith.truncf %180 : vector<8x128xf32> to vector<8x128xbf16>
    %cst_87 = arith.constant dense<0.000000e+00> : vector<8x256xf32>
    %184 = tpu.matmul %183, %182, %cst_87 {dimension_numbers = #tpu.dot_dimension_numbers<[1], [0], [0], [1], [0, 0, 1, 1], [], []>} : vector<8x128xbf16>, vector<128x256xbf16>, vector<8x256xf32> -> vector<8x256xf32>
    %185 = vector.extract_strided_slice %184 {offsets = [0, 0], sizes = [8, 128], strides = [1, 1]} : vector<8x256xf32> to vector<8x128xf32>
    %c1_88 = arith.constant 1 : index
    %c0_89 = arith.constant 0 : index
    %c0_90 = arith.constant 0 : index
    %186 = vector.load %arg10[%c1_88, %c0_89, %c0_90] : memref<3x3x128xf32, #tpu.memory_space<vmem>>, vector<1x1x128xf32>
    %187 = vector.shape_cast %186 : vector<1x1x128xf32> to vector<1x128xf32>
    %c1_91 = arith.constant 1 : index
    %c0_92 = arith.constant 0 : index
    %c0_93 = arith.constant 0 : index
    %188 = vector.load %arg11[%c1_91, %c0_92, %c0_93] : memref<3x3x128xf32, #tpu.memory_space<vmem>>, vector<1x1x128xf32>
    %189 = vector.shape_cast %188 : vector<1x1x128xf32> to vector<1x128xf32>
    %190 = arith.mulf %185, %185 : vector<8x128xf32>
    %191 = tpu.concatenate %185, %190 in 1 : vector<8x128xf32>, vector<8x128xf32> -> vector<8x256xf32>
    %c0_94 = arith.constant 0 : index
    %c0_95 = arith.constant 0 : index
    %192 = vector.load %arg15[%c0_94, %c0_95] : memref<256x256xbf16, #tpu.memory_space<vmem>>, vector<256x256xbf16>
    %193 = arith.truncf %191 : vector<8x256xf32> to vector<8x256xbf16>
    %cst_96 = arith.constant dense<0.000000e+00> : vector<8x256xf32>
    %194 = tpu.matmul %193, %192, %cst_96 {dimension_numbers = #tpu.dot_dimension_numbers<[1], [0], [0], [1], [0, 0, 1, 1], [], []>} : vector<8x256xbf16>, vector<256x256xbf16>, vector<8x256xf32> -> vector<8x256xf32>
    %195 = vector.extract_strided_slice %194 {offsets = [0, 0], sizes = [8, 128], strides = [1, 1]} : vector<8x256xf32> to vector<8x128xf32>
    %196 = vector.extract_strided_slice %194 {offsets = [0, 128], sizes = [8, 128], strides = [1, 1]} : vector<8x256xf32> to vector<8x128xf32>
    %197 = arith.mulf %195, %195 : vector<8x128xf32>
    %198 = arith.subf %196, %197 : vector<8x128xf32>
    %cst_97 = arith.constant 0.000000e+00 : f32
    %199 = vector.broadcast %cst_97 : f32 to vector<8x128xf32>
    %200 = arith.maximumf %198, %199 : vector<8x128xf32>
    %cst_98 = arith.constant 9.99999974E-6 : f32
    %201 = vector.broadcast %cst_98 : f32 to vector<8x128xf32>
    %202 = arith.addf %200, %201 : vector<8x128xf32>
    %203 = math.rsqrt %202 : vector<8x128xf32>
    %204 = vector.broadcast %187 : vector<1x128xf32> to vector<8x128xf32>
    %205 = arith.mulf %203, %204 : vector<8x128xf32>
    %206 = arith.mulf %185, %205 : vector<8x128xf32>
    %207 = arith.mulf %195, %205 : vector<8x128xf32>
    %208 = vector.broadcast %189 : vector<1x128xf32> to vector<8x128xf32>
    %209 = arith.subf %208, %207 : vector<8x128xf32>
    %210 = arith.addf %206, %209 : vector<8x128xf32>
    %cst_99 = arith.constant 0.000000e+00 : f32
    %211 = vector.broadcast %cst_99 : f32 to vector<8x128xf32>
    %212 = arith.maximumf %210, %211 : vector<8x128xf32>
    %c1_100 = arith.constant 1 : index
    %c0_101 = arith.constant 0 : index
    %c0_102 = arith.constant 0 : index
    %213 = vector.load %arg7[%c1_100, %c0_101, %c0_102] : memref<3x128x128xbf16, #tpu.memory_space<vmem>>, vector<1x128x128xbf16>
    %214 = vector.shape_cast %213 : vector<1x128x128xbf16> to vector<128x128xbf16>
    %215 = arith.truncf %212 : vector<8x128xf32> to vector<8x128xbf16>
    %cst_103 = arith.constant dense<0.000000e+00> : vector<8x128xf32>
    %216 = tpu.matmul %215, %214, %cst_103 {dimension_numbers = #tpu.dot_dimension_numbers<[1], [0], [0], [1], [0, 0, 1, 1], [], []>} : vector<8x128xbf16>, vector<128x128xbf16>, vector<8x128xf32> -> vector<8x128xf32>
    %c1_104 = arith.constant 1 : index
    %c1_105 = arith.constant 1 : index
    %c0_106 = arith.constant 0 : index
    %217 = vector.load %arg10[%c1_104, %c1_105, %c0_106] : memref<3x3x128xf32, #tpu.memory_space<vmem>>, vector<1x1x128xf32>
    %218 = vector.shape_cast %217 : vector<1x1x128xf32> to vector<1x128xf32>
    %c1_107 = arith.constant 1 : index
    %c1_108 = arith.constant 1 : index
    %c0_109 = arith.constant 0 : index
    %219 = vector.load %arg11[%c1_107, %c1_108, %c0_109] : memref<3x3x128xf32, #tpu.memory_space<vmem>>, vector<1x1x128xf32>
    %220 = vector.shape_cast %219 : vector<1x1x128xf32> to vector<1x128xf32>
    %221 = arith.mulf %216, %216 : vector<8x128xf32>
    %222 = tpu.concatenate %216, %221 in 1 : vector<8x128xf32>, vector<8x128xf32> -> vector<8x256xf32>
    %c0_110 = arith.constant 0 : index
    %c0_111 = arith.constant 0 : index
    %223 = vector.load %arg15[%c0_110, %c0_111] : memref<256x256xbf16, #tpu.memory_space<vmem>>, vector<256x256xbf16>
    %224 = arith.truncf %222 : vector<8x256xf32> to vector<8x256xbf16>
    %cst_112 = arith.constant dense<0.000000e+00> : vector<8x256xf32>
    %225 = tpu.matmul %224, %223, %cst_112 {dimension_numbers = #tpu.dot_dimension_numbers<[1], [0], [0], [1], [0, 0, 1, 1], [], []>} : vector<8x256xbf16>, vector<256x256xbf16>, vector<8x256xf32> -> vector<8x256xf32>
    %226 = vector.extract_strided_slice %225 {offsets = [0, 0], sizes = [8, 128], strides = [1, 1]} : vector<8x256xf32> to vector<8x128xf32>
    %227 = vector.extract_strided_slice %225 {offsets = [0, 128], sizes = [8, 128], strides = [1, 1]} : vector<8x256xf32> to vector<8x128xf32>
    %228 = arith.mulf %226, %226 : vector<8x128xf32>
    %229 = arith.subf %227, %228 : vector<8x128xf32>
    %cst_113 = arith.constant 0.000000e+00 : f32
    %230 = vector.broadcast %cst_113 : f32 to vector<8x128xf32>
    %231 = arith.maximumf %229, %230 : vector<8x128xf32>
    %cst_114 = arith.constant 9.99999974E-6 : f32
    %232 = vector.broadcast %cst_114 : f32 to vector<8x128xf32>
    %233 = arith.addf %231, %232 : vector<8x128xf32>
    %234 = math.rsqrt %233 : vector<8x128xf32>
    %235 = vector.broadcast %218 : vector<1x128xf32> to vector<8x128xf32>
    %236 = arith.mulf %234, %235 : vector<8x128xf32>
    %237 = arith.mulf %216, %236 : vector<8x128xf32>
    %238 = arith.mulf %226, %236 : vector<8x128xf32>
    %239 = vector.broadcast %220 : vector<1x128xf32> to vector<8x128xf32>
    %240 = arith.subf %239, %238 : vector<8x128xf32>
    %241 = arith.addf %237, %240 : vector<8x128xf32>
    %cst_115 = arith.constant 0.000000e+00 : f32
    %242 = vector.broadcast %cst_115 : f32 to vector<8x128xf32>
    %243 = arith.maximumf %241, %242 : vector<8x128xf32>
    %c1_116 = arith.constant 1 : index
    %c0_117 = arith.constant 0 : index
    %c0_118 = arith.constant 0 : index
    %244 = vector.load %arg8[%c1_116, %c0_117, %c0_118] : memref<3x128x128xbf16, #tpu.memory_space<vmem>>, vector<1x128x128xbf16>
    %245 = vector.shape_cast %244 : vector<1x128x128xbf16> to vector<128x128xbf16>
    %246 = arith.truncf %243 : vector<8x128xf32> to vector<8x128xbf16>
    %cst_119 = arith.constant dense<0.000000e+00> : vector<8x128xf32>
    %247 = tpu.matmul %246, %245, %cst_119 {dimension_numbers = #tpu.dot_dimension_numbers<[1], [0], [0], [1], [0, 0, 1, 1], [], []>} : vector<8x128xbf16>, vector<128x128xbf16>, vector<8x128xf32> -> vector<8x128xf32>
    %248 = vector.extract_strided_slice %184 {offsets = [0, 128], sizes = [8, 128], strides = [1, 1]} : vector<8x256xf32> to vector<8x128xf32>
    %249 = arith.addf %247, %248 : vector<8x128xf32>
    %c1_120 = arith.constant 1 : index
    %c0_121 = arith.constant 0 : index
    %250 = vector.load %arg9[%c1_120, %c0_121] : memref<3x128xf32, #tpu.memory_space<vmem>>, vector<1x128xf32>
    %251 = vector.broadcast %250 : vector<1x128xf32> to vector<8x128xf32>
    %252 = arith.addf %249, %251 : vector<8x128xf32>
    %c1_122 = arith.constant 1 : index
    %c2_123 = arith.constant 2 : index
    %c0_124 = arith.constant 0 : index
    %253 = vector.load %arg10[%c1_122, %c2_123, %c0_124] : memref<3x3x128xf32, #tpu.memory_space<vmem>>, vector<1x1x128xf32>
    %254 = vector.shape_cast %253 : vector<1x1x128xf32> to vector<1x128xf32>
    %c1_125 = arith.constant 1 : index
    %c2_126 = arith.constant 2 : index
    %c0_127 = arith.constant 0 : index
    %255 = vector.load %arg11[%c1_125, %c2_126, %c0_127] : memref<3x3x128xf32, #tpu.memory_space<vmem>>, vector<1x1x128xf32>
    %256 = vector.shape_cast %255 : vector<1x1x128xf32> to vector<1x128xf32>
    %257 = arith.mulf %252, %252 : vector<8x128xf32>
    %258 = tpu.concatenate %252, %257 in 1 : vector<8x128xf32>, vector<8x128xf32> -> vector<8x256xf32>
    %c0_128 = arith.constant 0 : index
    %c0_129 = arith.constant 0 : index
    %259 = vector.load %arg15[%c0_128, %c0_129] : memref<256x256xbf16, #tpu.memory_space<vmem>>, vector<256x256xbf16>
    %260 = arith.truncf %258 : vector<8x256xf32> to vector<8x256xbf16>
    %cst_130 = arith.constant dense<0.000000e+00> : vector<8x256xf32>
    %261 = tpu.matmul %260, %259, %cst_130 {dimension_numbers = #tpu.dot_dimension_numbers<[1], [0], [0], [1], [0, 0, 1, 1], [], []>} : vector<8x256xbf16>, vector<256x256xbf16>, vector<8x256xf32> -> vector<8x256xf32>
    %262 = vector.extract_strided_slice %261 {offsets = [0, 0], sizes = [8, 128], strides = [1, 1]} : vector<8x256xf32> to vector<8x128xf32>
    %263 = vector.extract_strided_slice %261 {offsets = [0, 128], sizes = [8, 128], strides = [1, 1]} : vector<8x256xf32> to vector<8x128xf32>
    %264 = arith.mulf %262, %262 : vector<8x128xf32>
    %265 = arith.subf %263, %264 : vector<8x128xf32>
    %cst_131 = arith.constant 0.000000e+00 : f32
    %266 = vector.broadcast %cst_131 : f32 to vector<8x128xf32>
    %267 = arith.maximumf %265, %266 : vector<8x128xf32>
    %cst_132 = arith.constant 9.99999974E-6 : f32
    %268 = vector.broadcast %cst_132 : f32 to vector<8x128xf32>
    %269 = arith.addf %267, %268 : vector<8x128xf32>
    %270 = math.rsqrt %269 : vector<8x128xf32>
    %271 = vector.broadcast %254 : vector<1x128xf32> to vector<8x128xf32>
    %272 = arith.mulf %270, %271 : vector<8x128xf32>
    %273 = arith.mulf %252, %272 : vector<8x128xf32>
    %274 = arith.mulf %262, %272 : vector<8x128xf32>
    %275 = vector.broadcast %256 : vector<1x128xf32> to vector<8x128xf32>
    %276 = arith.subf %275, %274 : vector<8x128xf32>
    %277 = arith.addf %273, %276 : vector<8x128xf32>
    %cst_133 = arith.constant 0.000000e+00 : f32
    %278 = vector.broadcast %cst_133 : f32 to vector<8x128xf32>
    %279 = arith.maximumf %277, %278 : vector<8x128xf32>
    %280 = arith.addf %28, %279 : vector<8x128xf32>
    %c2_134 = arith.constant 2 : index
    %c0_135 = arith.constant 0 : index
    %281 = vector.load %arg4[%c2_134, %c0_135] : memref<3x128xf32, #tpu.memory_space<vmem>>, vector<1x128xf32>
    %c2_136 = arith.constant 2 : index
    %c0_137 = arith.constant 0 : index
    %282 = vector.load %arg5[%c2_136, %c0_137] : memref<3x128xf32, #tpu.memory_space<vmem>>, vector<1x128xf32>
    %283 = arith.mulf %280, %280 : vector<8x128xf32>
    %284 = tpu.concatenate %280, %283 in 1 : vector<8x128xf32>, vector<8x128xf32> -> vector<8x256xf32>
    %c0_138 = arith.constant 0 : index
    %c0_139 = arith.constant 0 : index
    %285 = vector.load %arg15[%c0_138, %c0_139] : memref<256x256xbf16, #tpu.memory_space<vmem>>, vector<256x256xbf16>
    %286 = arith.truncf %284 : vector<8x256xf32> to vector<8x256xbf16>
    %cst_140 = arith.constant dense<0.000000e+00> : vector<8x256xf32>
    %287 = tpu.matmul %286, %285, %cst_140 {dimension_numbers = #tpu.dot_dimension_numbers<[1], [0], [0], [1], [0, 0, 1, 1], [], []>} : vector<8x256xbf16>, vector<256x256xbf16>, vector<8x256xf32> -> vector<8x256xf32>
    %288 = vector.extract_strided_slice %287 {offsets = [0, 0], sizes = [8, 128], strides = [1, 1]} : vector<8x256xf32> to vector<8x128xf32>
    %289 = vector.extract_strided_slice %287 {offsets = [0, 128], sizes = [8, 128], strides = [1, 1]} : vector<8x256xf32> to vector<8x128xf32>
    %290 = arith.mulf %288, %288 : vector<8x128xf32>
    %291 = arith.subf %289, %290 : vector<8x128xf32>
    %cst_141 = arith.constant 0.000000e+00 : f32
    %292 = vector.broadcast %cst_141 : f32 to vector<8x128xf32>
    %293 = arith.maximumf %291, %292 : vector<8x128xf32>
    %cst_142 = arith.constant 9.99999974E-6 : f32
    %294 = vector.broadcast %cst_142 : f32 to vector<8x128xf32>
    %295 = arith.addf %293, %294 : vector<8x128xf32>
    %296 = math.rsqrt %295 : vector<8x128xf32>
    %297 = vector.broadcast %281 : vector<1x128xf32> to vector<8x128xf32>
    %298 = arith.mulf %296, %297 : vector<8x128xf32>
    %299 = arith.mulf %280, %298 : vector<8x128xf32>
    %300 = arith.mulf %288, %298 : vector<8x128xf32>
    %301 = vector.broadcast %282 : vector<1x128xf32> to vector<8x128xf32>
    %302 = arith.subf %301, %300 : vector<8x128xf32>
    %303 = arith.addf %299, %302 : vector<8x128xf32>
    %cst_143 = arith.constant 0.000000e+00 : f32
    %304 = vector.broadcast %cst_143 : f32 to vector<8x128xf32>
    %305 = arith.maximumf %303, %304 : vector<8x128xf32>
    %c2_144 = arith.constant 2 : index
    %c0_145 = arith.constant 0 : index
    %c0_146 = arith.constant 0 : index
    %306 = vector.load %arg6[%c2_144, %c0_145, %c0_146] : memref<3x128x256xbf16, #tpu.memory_space<vmem>>, vector<1x128x256xbf16>
    %307 = vector.shape_cast %306 : vector<1x128x256xbf16> to vector<128x256xbf16>
    %308 = arith.truncf %305 : vector<8x128xf32> to vector<8x128xbf16>
    %cst_147 = arith.constant dense<0.000000e+00> : vector<8x256xf32>
    %309 = tpu.matmul %308, %307, %cst_147 {dimension_numbers = #tpu.dot_dimension_numbers<[1], [0], [0], [1], [0, 0, 1, 1], [], []>} : vector<8x128xbf16>, vector<128x256xbf16>, vector<8x256xf32> -> vector<8x256xf32>
    %310 = vector.extract_strided_slice %309 {offsets = [0, 0], sizes = [8, 128], strides = [1, 1]} : vector<8x256xf32> to vector<8x128xf32>
    %c2_148 = arith.constant 2 : index
    %c0_149 = arith.constant 0 : index
    %c0_150 = arith.constant 0 : index
    %311 = vector.load %arg10[%c2_148, %c0_149, %c0_150] : memref<3x3x128xf32, #tpu.memory_space<vmem>>, vector<1x1x128xf32>
    %312 = vector.shape_cast %311 : vector<1x1x128xf32> to vector<1x128xf32>
    %c2_151 = arith.constant 2 : index
    %c0_152 = arith.constant 0 : index
    %c0_153 = arith.constant 0 : index
    %313 = vector.load %arg11[%c2_151, %c0_152, %c0_153] : memref<3x3x128xf32, #tpu.memory_space<vmem>>, vector<1x1x128xf32>
    %314 = vector.shape_cast %313 : vector<1x1x128xf32> to vector<1x128xf32>
    %315 = arith.mulf %310, %310 : vector<8x128xf32>
    %316 = tpu.concatenate %310, %315 in 1 : vector<8x128xf32>, vector<8x128xf32> -> vector<8x256xf32>
    %c0_154 = arith.constant 0 : index
    %c0_155 = arith.constant 0 : index
    %317 = vector.load %arg15[%c0_154, %c0_155] : memref<256x256xbf16, #tpu.memory_space<vmem>>, vector<256x256xbf16>
    %318 = arith.truncf %316 : vector<8x256xf32> to vector<8x256xbf16>
    %cst_156 = arith.constant dense<0.000000e+00> : vector<8x256xf32>
    %319 = tpu.matmul %318, %317, %cst_156 {dimension_numbers = #tpu.dot_dimension_numbers<[1], [0], [0], [1], [0, 0, 1, 1], [], []>} : vector<8x256xbf16>, vector<256x256xbf16>, vector<8x256xf32> -> vector<8x256xf32>
    %320 = vector.extract_strided_slice %319 {offsets = [0, 0], sizes = [8, 128], strides = [1, 1]} : vector<8x256xf32> to vector<8x128xf32>
    %321 = vector.extract_strided_slice %319 {offsets = [0, 128], sizes = [8, 128], strides = [1, 1]} : vector<8x256xf32> to vector<8x128xf32>
    %322 = arith.mulf %320, %320 : vector<8x128xf32>
    %323 = arith.subf %321, %322 : vector<8x128xf32>
    %cst_157 = arith.constant 0.000000e+00 : f32
    %324 = vector.broadcast %cst_157 : f32 to vector<8x128xf32>
    %325 = arith.maximumf %323, %324 : vector<8x128xf32>
    %cst_158 = arith.constant 9.99999974E-6 : f32
    %326 = vector.broadcast %cst_158 : f32 to vector<8x128xf32>
    %327 = arith.addf %325, %326 : vector<8x128xf32>
    %328 = math.rsqrt %327 : vector<8x128xf32>
    %329 = vector.broadcast %312 : vector<1x128xf32> to vector<8x128xf32>
    %330 = arith.mulf %328, %329 : vector<8x128xf32>
    %331 = arith.mulf %310, %330 : vector<8x128xf32>
    %332 = arith.mulf %320, %330 : vector<8x128xf32>
    %333 = vector.broadcast %314 : vector<1x128xf32> to vector<8x128xf32>
    %334 = arith.subf %333, %332 : vector<8x128xf32>
    %335 = arith.addf %331, %334 : vector<8x128xf32>
    %cst_159 = arith.constant 0.000000e+00 : f32
    %336 = vector.broadcast %cst_159 : f32 to vector<8x128xf32>
    %337 = arith.maximumf %335, %336 : vector<8x128xf32>
    %c2_160 = arith.constant 2 : index
    %c0_161 = arith.constant 0 : index
    %c0_162 = arith.constant 0 : index
    %338 = vector.load %arg7[%c2_160, %c0_161, %c0_162] : memref<3x128x128xbf16, #tpu.memory_space<vmem>>, vector<1x128x128xbf16>
    %339 = vector.shape_cast %338 : vector<1x128x128xbf16> to vector<128x128xbf16>
    %340 = arith.truncf %337 : vector<8x128xf32> to vector<8x128xbf16>
    %cst_163 = arith.constant dense<0.000000e+00> : vector<8x128xf32>
    %341 = tpu.matmul %340, %339, %cst_163 {dimension_numbers = #tpu.dot_dimension_numbers<[1], [0], [0], [1], [0, 0, 1, 1], [], []>} : vector<8x128xbf16>, vector<128x128xbf16>, vector<8x128xf32> -> vector<8x128xf32>
    %c2_164 = arith.constant 2 : index
    %c1_165 = arith.constant 1 : index
    %c0_166 = arith.constant 0 : index
    %342 = vector.load %arg10[%c2_164, %c1_165, %c0_166] : memref<3x3x128xf32, #tpu.memory_space<vmem>>, vector<1x1x128xf32>
    %343 = vector.shape_cast %342 : vector<1x1x128xf32> to vector<1x128xf32>
    %c2_167 = arith.constant 2 : index
    %c1_168 = arith.constant 1 : index
    %c0_169 = arith.constant 0 : index
    %344 = vector.load %arg11[%c2_167, %c1_168, %c0_169] : memref<3x3x128xf32, #tpu.memory_space<vmem>>, vector<1x1x128xf32>
    %345 = vector.shape_cast %344 : vector<1x1x128xf32> to vector<1x128xf32>
    %346 = arith.mulf %341, %341 : vector<8x128xf32>
    %347 = tpu.concatenate %341, %346 in 1 : vector<8x128xf32>, vector<8x128xf32> -> vector<8x256xf32>
    %c0_170 = arith.constant 0 : index
    %c0_171 = arith.constant 0 : index
    %348 = vector.load %arg15[%c0_170, %c0_171] : memref<256x256xbf16, #tpu.memory_space<vmem>>, vector<256x256xbf16>
    %349 = arith.truncf %347 : vector<8x256xf32> to vector<8x256xbf16>
    %cst_172 = arith.constant dense<0.000000e+00> : vector<8x256xf32>
    %350 = tpu.matmul %349, %348, %cst_172 {dimension_numbers = #tpu.dot_dimension_numbers<[1], [0], [0], [1], [0, 0, 1, 1], [], []>} : vector<8x256xbf16>, vector<256x256xbf16>, vector<8x256xf32> -> vector<8x256xf32>
    %351 = vector.extract_strided_slice %350 {offsets = [0, 0], sizes = [8, 128], strides = [1, 1]} : vector<8x256xf32> to vector<8x128xf32>
    %352 = vector.extract_strided_slice %350 {offsets = [0, 128], sizes = [8, 128], strides = [1, 1]} : vector<8x256xf32> to vector<8x128xf32>
    %353 = arith.mulf %351, %351 : vector<8x128xf32>
    %354 = arith.subf %352, %353 : vector<8x128xf32>
    %cst_173 = arith.constant 0.000000e+00 : f32
    %355 = vector.broadcast %cst_173 : f32 to vector<8x128xf32>
    %356 = arith.maximumf %354, %355 : vector<8x128xf32>
    %cst_174 = arith.constant 9.99999974E-6 : f32
    %357 = vector.broadcast %cst_174 : f32 to vector<8x128xf32>
    %358 = arith.addf %356, %357 : vector<8x128xf32>
    %359 = math.rsqrt %358 : vector<8x128xf32>
    %360 = vector.broadcast %343 : vector<1x128xf32> to vector<8x128xf32>
    %361 = arith.mulf %359, %360 : vector<8x128xf32>
    %362 = arith.mulf %341, %361 : vector<8x128xf32>
    %363 = arith.mulf %351, %361 : vector<8x128xf32>
    %364 = vector.broadcast %345 : vector<1x128xf32> to vector<8x128xf32>
    %365 = arith.subf %364, %363 : vector<8x128xf32>
    %366 = arith.addf %362, %365 : vector<8x128xf32>
    %cst_175 = arith.constant 0.000000e+00 : f32
    %367 = vector.broadcast %cst_175 : f32 to vector<8x128xf32>
    %368 = arith.maximumf %366, %367 : vector<8x128xf32>
    %c2_176 = arith.constant 2 : index
    %c0_177 = arith.constant 0 : index
    %c0_178 = arith.constant 0 : index
    %369 = vector.load %arg8[%c2_176, %c0_177, %c0_178] : memref<3x128x128xbf16, #tpu.memory_space<vmem>>, vector<1x128x128xbf16>
    %370 = vector.shape_cast %369 : vector<1x128x128xbf16> to vector<128x128xbf16>
    %371 = arith.truncf %368 : vector<8x128xf32> to vector<8x128xbf16>
    %cst_179 = arith.constant dense<0.000000e+00> : vector<8x128xf32>
    %372 = tpu.matmul %371, %370, %cst_179 {dimension_numbers = #tpu.dot_dimension_numbers<[1], [0], [0], [1], [0, 0, 1, 1], [], []>} : vector<8x128xbf16>, vector<128x128xbf16>, vector<8x128xf32> -> vector<8x128xf32>
    %373 = vector.extract_strided_slice %309 {offsets = [0, 128], sizes = [8, 128], strides = [1, 1]} : vector<8x256xf32> to vector<8x128xf32>
    %374 = arith.addf %372, %373 : vector<8x128xf32>
    %c2_180 = arith.constant 2 : index
    %c0_181 = arith.constant 0 : index
    %375 = vector.load %arg9[%c2_180, %c0_181] : memref<3x128xf32, #tpu.memory_space<vmem>>, vector<1x128xf32>
    %376 = vector.broadcast %375 : vector<1x128xf32> to vector<8x128xf32>
    %377 = arith.addf %374, %376 : vector<8x128xf32>
    %c2_182 = arith.constant 2 : index
    %c2_183 = arith.constant 2 : index
    %c0_184 = arith.constant 0 : index
    %378 = vector.load %arg10[%c2_182, %c2_183, %c0_184] : memref<3x3x128xf32, #tpu.memory_space<vmem>>, vector<1x1x128xf32>
    %379 = vector.shape_cast %378 : vector<1x1x128xf32> to vector<1x128xf32>
    %c2_185 = arith.constant 2 : index
    %c2_186 = arith.constant 2 : index
    %c0_187 = arith.constant 0 : index
    %380 = vector.load %arg11[%c2_185, %c2_186, %c0_187] : memref<3x3x128xf32, #tpu.memory_space<vmem>>, vector<1x1x128xf32>
    %381 = vector.shape_cast %380 : vector<1x1x128xf32> to vector<1x128xf32>
    %382 = arith.mulf %377, %377 : vector<8x128xf32>
    %383 = tpu.concatenate %377, %382 in 1 : vector<8x128xf32>, vector<8x128xf32> -> vector<8x256xf32>
    %c0_188 = arith.constant 0 : index
    %c0_189 = arith.constant 0 : index
    %384 = vector.load %arg15[%c0_188, %c0_189] : memref<256x256xbf16, #tpu.memory_space<vmem>>, vector<256x256xbf16>
    %385 = arith.truncf %383 : vector<8x256xf32> to vector<8x256xbf16>
    %cst_190 = arith.constant dense<0.000000e+00> : vector<8x256xf32>
    %386 = tpu.matmul %385, %384, %cst_190 {dimension_numbers = #tpu.dot_dimension_numbers<[1], [0], [0], [1], [0, 0, 1, 1], [], []>} : vector<8x256xbf16>, vector<256x256xbf16>, vector<8x256xf32> -> vector<8x256xf32>
    %387 = vector.extract_strided_slice %386 {offsets = [0, 0], sizes = [8, 128], strides = [1, 1]} : vector<8x256xf32> to vector<8x128xf32>
    %388 = vector.extract_strided_slice %386 {offsets = [0, 128], sizes = [8, 128], strides = [1, 1]} : vector<8x256xf32> to vector<8x128xf32>
    %389 = arith.mulf %387, %387 : vector<8x128xf32>
    %390 = arith.subf %388, %389 : vector<8x128xf32>
    %cst_191 = arith.constant 0.000000e+00 : f32
    %391 = vector.broadcast %cst_191 : f32 to vector<8x128xf32>
    %392 = arith.maximumf %390, %391 : vector<8x128xf32>
    %cst_192 = arith.constant 9.99999974E-6 : f32
    %393 = vector.broadcast %cst_192 : f32 to vector<8x128xf32>
    %394 = arith.addf %392, %393 : vector<8x128xf32>
    %395 = math.rsqrt %394 : vector<8x128xf32>
    %396 = vector.broadcast %379 : vector<1x128xf32> to vector<8x128xf32>
    %397 = arith.mulf %395, %396 : vector<8x128xf32>
    %398 = arith.mulf %377, %397 : vector<8x128xf32>
    %399 = arith.mulf %387, %397 : vector<8x128xf32>
    %400 = vector.broadcast %381 : vector<1x128xf32> to vector<8x128xf32>
    %401 = arith.subf %400, %399 : vector<8x128xf32>
    %402 = arith.addf %398, %401 : vector<8x128xf32>
    %cst_193 = arith.constant 0.000000e+00 : f32
    %403 = vector.broadcast %cst_193 : f32 to vector<8x128xf32>
    %404 = arith.maximumf %402, %403 : vector<8x128xf32>
    %c0_194 = arith.constant 0 : index
    %c0_195 = arith.constant 0 : index
    %405 = vector.load %arg12[%c0_194, %c0_195] : memref<128x128xbf16, #tpu.memory_space<vmem>>, vector<128x128xbf16>
    %406 = arith.truncf %404 : vector<8x128xf32> to vector<8x128xbf16>
    %cst_196 = arith.constant dense<0.000000e+00> : vector<8x128xf32>
    %407 = tpu.matmul %406, %405, %cst_196 {dimension_numbers = #tpu.dot_dimension_numbers<[1], [0], [0], [1], [0, 0, 1, 1], [], []>} : vector<8x128xbf16>, vector<128x128xbf16>, vector<8x128xf32> -> vector<8x128xf32>
    %c0_197 = arith.constant 0 : index
    %c0_198 = arith.constant 0 : index
    %408 = vector.load %arg13[%c0_197, %c0_198] : memref<1x128xf32, #tpu.memory_space<vmem>>, vector<1x128xf32>
    %409 = vector.broadcast %408 : vector<1x128xf32> to vector<8x128xf32>
    %410 = arith.addf %407, %409 : vector<8x128xf32>
    %411 = arith.mulf %410, %410 : vector<8x128xf32>
    %cst_199 = arith.constant dense<0.000000e+00> : vector<8xf32>
    %412 = vector.multi_reduction <add>, %411, %cst_199 [1] : vector<8x128xf32> to vector<8xf32>
    %413 = vector.shape_cast %412 : vector<8xf32> to vector<8x1xf32>
    %cst_200 = arith.constant 1.000000e-24 : f32
    %414 = vector.broadcast %cst_200 : f32 to vector<8x1xf32>
    %415 = arith.maximumf %413, %414 : vector<8x1xf32>
    %416 = math.rsqrt %415 : vector<8x1xf32>
    %417 = vector.broadcast %416 : vector<8x1xf32> to vector<8x128xf32>
    %418 = arith.mulf %410, %417 : vector<8x128xf32>
    %c0_201 = arith.constant 0 : index
    %c0_202 = arith.constant 0 : index
    %419 = vector.load %arg16[%c0_201, %c0_202] : memref<8x128xf32, #tpu.memory_space<vmem>>, vector<8x128xf32>
    tpu.vector_store %arg16[%c0_201, %c0_202], %418 {strides = array<i32>} : memref<8x128xf32, #tpu.memory_space<vmem>>, vector<8x128xf32>,
    return
  }
  func.func @transform_0(%arg0: i32) -> (i32, i32) {
    %c0_i32 = arith.constant 0 : i32
    %c0_i32_0 = arith.constant 0 : i32
    return %arg0, %c0_i32 : i32, i32
  }
  func.func @transform_1(%arg0: i32) -> (i32, i32) {
    %c0_i32 = arith.constant 0 : i32
    %c0_i32_0 = arith.constant 0 : i32
    %c0_i32_1 = arith.constant 0 : i32
    return %c0_i32, %c0_i32_0 : i32, i32
  }
  func.func @transform_2(%arg0: i32) -> (i32, i32) {
    %c0_i32 = arith.constant 0 : i32
    %c0_i32_0 = arith.constant 0 : i32
    %c0_i32_1 = arith.constant 0 : i32
    return %c0_i32, %c0_i32_0 : i32, i32
  }
  func.func @transform_3(%arg0: i32) -> (i32, i32) {
    %c0_i32 = arith.constant 0 : i32
    %c0_i32_0 = arith.constant 0 : i32
    %c0_i32_1 = arith.constant 0 : i32
    return %c0_i32, %c0_i32_0 : i32, i32
  }
  func.func @transform_4(%arg0: i32) -> (i32, i32) {
    %c0_i32 = arith.constant 0 : i32
    %c0_i32_0 = arith.constant 0 : i32
    %c0_i32_1 = arith.constant 0 : i32
    return %c0_i32, %c0_i32_0 : i32, i32
  }
  func.func @transform_5(%arg0: i32) -> (i32, i32, i32) {
    %c0_i32 = arith.constant 0 : i32
    %c0_i32_0 = arith.constant 0 : i32
    %c0_i32_1 = arith.constant 0 : i32
    %c0_i32_2 = arith.constant 0 : i32
    return %c0_i32, %c0_i32_0, %c0_i32_1 : i32, i32, i32
  }
  func.func @transform_6(%arg0: i32) -> (i32, i32, i32) {
    %c0_i32 = arith.constant 0 : i32
    %c0_i32_0 = arith.constant 0 : i32
    %c0_i32_1 = arith.constant 0 : i32
    %c0_i32_2 = arith.constant 0 : i32
    return %c0_i32, %c0_i32_0, %c0_i32_1 : i32, i32, i32
  }
  func.func @transform_7(%arg0: i32) -> (i32, i32, i32) {
    %c0_i32 = arith.constant 0 : i32
    %c0_i32_0 = arith.constant 0 : i32
    %c0_i32_1 = arith.constant 0 : i32
    %c0_i32_2 = arith.constant 0 : i32
    return %c0_i32, %c0_i32_0, %c0_i32_1 : i32, i32, i32
  }
  func.func @transform_8(%arg0: i32) -> (i32, i32) {
    %c0_i32 = arith.constant 0 : i32
    %c0_i32_0 = arith.constant 0 : i32
    %c0_i32_1 = arith.constant 0 : i32
    return %c0_i32, %c0_i32_0 : i32, i32
  }
  func.func @transform_9(%arg0: i32) -> (i32, i32, i32) {
    %c0_i32 = arith.constant 0 : i32
    %c0_i32_0 = arith.constant 0 : i32
    %c0_i32_1 = arith.constant 0 : i32
    %c0_i32_2 = arith.constant 0 : i32
    return %c0_i32, %c0_i32_0, %c0_i32_1 : i32, i32, i32
  }
  func.func @transform_10(%arg0: i32) -> (i32, i32, i32) {
    %c0_i32 = arith.constant 0 : i32
    %c0_i32_0 = arith.constant 0 : i32
    %c0_i32_1 = arith.constant 0 : i32
    %c0_i32_2 = arith.constant 0 : i32
    return %c0_i32, %c0_i32_0, %c0_i32_1 : i32, i32, i32
  }
  func.func @transform_11(%arg0: i32) -> (i32, i32) {
    %c0_i32 = arith.constant 0 : i32
    %c0_i32_0 = arith.constant 0 : i32
    %c0_i32_1 = arith.constant 0 : i32
    return %c0_i32, %c0_i32_0 : i32, i32
  }
  func.func @transform_12(%arg0: i32) -> (i32, i32) {
    %c0_i32 = arith.constant 0 : i32
    %c0_i32_0 = arith.constant 0 : i32
    %c0_i32_1 = arith.constant 0 : i32
    return %c0_i32, %c0_i32_0 : i32, i32
  }
  func.func @transform_13(%arg0: i32) -> (i32, i32) {
    %c0_i32 = arith.constant 0 : i32
    %c0_i32_0 = arith.constant 0 : i32
    %c0_i32_1 = arith.constant 0 : i32
    return %c0_i32, %c0_i32_0 : i32, i32
  }
  func.func @transform_14(%arg0: i32) -> (i32, i32) {
    %c0_i32 = arith.constant 0 : i32
    %c0_i32_0 = arith.constant 0 : i32
    %c0_i32_1 = arith.constant 0 : i32
    return %c0_i32, %c0_i32_0 : i32, i32
  }
  func.func @transform_15(%arg0: i32) -> (i32, i32) {
    %c0_i32 = arith.constant 0 : i32
    %c0_i32_0 = arith.constant 0 : i32
    return %arg0, %c0_i32 : i32, i32
  }
}

</mosaic_0001>

<llo_original>
// kernel: _lambda_.1
$region0: #{_lambda_.1}
  #allocation0 [shape = 'u32[]', space=smem, size = 0x4, offset = 0x4, fixed_abs, tag = 'smem constant byte address 0x4 - core index']
  #allocation1 [shape = 'u32[144,128]{1,0:T(1,128)}', space=vmem, size = 0x12000, scoped, tag = 'internal scratch']
  %s0 = inlined_call_operand.vmem [shape: bf16[8,96], index: 0, kind: input, shape index: {}]
  %s1 = inlined_call_operand.vmem [shape: bf16[96,256], index: 1, kind: input, shape index: {}]
  %s2 = inlined_call_operand.vmem [shape: f32[2,256], index: 2, kind: input, shape index: {}]
  %s3 = inlined_call_operand.vmem [shape: f32[3,128], index: 3, kind: input, shape index: {}]
  %s4 = inlined_call_operand.vmem [shape: f32[3,128], index: 4, kind: input, shape index: {}]
  %s5 = inlined_call_operand.vmem [shape: bf16[3,128,256], index: 5, kind: input, shape index: {}]
  %s6 = inlined_call_operand.vmem [shape: bf16[3,128,128], index: 6, kind: input, shape index: {}]
  %s7 = inlined_call_operand.vmem [shape: bf16[3,128,128], index: 7, kind: input, shape index: {}]
  %s8 = inlined_call_operand.vmem [shape: f32[3,128], index: 8, kind: input, shape index: {}]
  %s9 = inlined_call_operand.vmem [shape: f32[3,3,128], index: 9, kind: input, shape index: {}]
  %s10 = inlined_call_operand.vmem [shape: f32[3,3,128], index: 10, kind: input, shape index: {}]
  %s11 = inlined_call_operand.vmem [shape: bf16[128,128], index: 11, kind: input, shape index: {}]
  %s12 = inlined_call_operand.vmem [shape: f32[1,128], index: 12, kind: input, shape index: {}]
  %s13 = inlined_call_operand.vmem [shape: bf16[128,128], index: 13, kind: input, shape index: {}]
  %s14 = inlined_call_operand.vmem [shape: bf16[256,256], index: 14, kind: input, shape index: {}]
  %s15 = inlined_call_operand.hbm [shape: f32[8,128], index: 15, kind: output, shape index: {}]
  %s16 = sld [smem:[#allocation0]]
  $region70: #{_lambda_.1} parent=0
    _
  %s18 = ssub.s32 1, %s16
  %s19 = scalar_select 0, %s18, %s16
  $region1: #{_lambda_.1} parent=0
    #allocation2 [shape = 'u8[4096]{0}', space=vmem, size = 0x1000, scoped, tag = 'output window, operand 0, single buffered']
    #allocation3 [shape = 's32[1]{0}', space=sflag, size = 0x4, scoped, tag = 'scoped memory for _lambda_.1']
    %20 = vsyncpa [#allocation3], 0
    // Predicated region
    $region2: #{_lambda_.1} parent=1 // pred_check
      _
    $region3: #{_lambda_.1} parent=1 // pred_check_branch
      %22 = sbr.rel (0) target = $region5
    $region4: #{_lambda_.1} parent=1 // pred_region
      _
    $region5: #{_lambda_.1} parent=1 // pred_fallthru
      _
    // Predicated region
    $region6: #{_lambda_.1} parent=1 // pred_check
      _
    $region7: #{_lambda_.1} parent=1 // pred_check_branch
      %24 = sbr.rel (0) target = $region9
    $region8: #{_lambda_.1} parent=1 // pred_region
      _
    $region9: #{_lambda_.1} parent=1 // pred_fallthru
      _
    // Predicated region
    $region10: #{_lambda_.1} parent=1 // pred_check
      _
    $region11: #{_lambda_.1} parent=1 // pred_check_branch
      %26 = sbr.rel (0) target = $region13
    $region12: #{_lambda_.1} parent=1 // pred_region
      _
    $region13: #{_lambda_.1} parent=1 // pred_fallthru
      _
    // Predicated region
    $region14: #{_lambda_.1} parent=1 // pred_check
      _
    $region15: #{_lambda_.1} parent=1 // pred_check_branch
      %28 = sbr.rel (0) target = $region17
    $region16: #{_lambda_.1} parent=1 // pred_region
      _
    $region17: #{_lambda_.1} parent=1 // pred_fallthru
      _
    // Predicated region
    $region18: #{_lambda_.1} parent=1 // pred_check
      _
    $region19: #{_lambda_.1} parent=1 // pred_check_branch
      %30 = sbr.rel (0) target = $region21
    $region20: #{_lambda_.1} parent=1 // pred_region
      _
    $region21: #{_lambda_.1} parent=1 // pred_fallthru
      _
    // Predicated region
    $region22: #{_lambda_.1} parent=1 // pred_check
      _
    $region23: #{_lambda_.1} parent=1 // pred_check_branch
      %32 = sbr.rel (0) target = $region25
    $region24: #{_lambda_.1} parent=1 // pred_region
      _
    $region25: #{_lambda_.1} parent=1 // pred_fallthru
      _
    // Predicated region
    $region26: #{_lambda_.1} parent=1 // pred_check
      _
    $region27: #{_lambda_.1} parent=1 // pred_check_branch
      %34 = sbr.rel (0) target = $region29
    $region28: #{_lambda_.1} parent=1 // pred_region
      _
    $region29: #{_lambda_.1} parent=1 // pred_fallthru
      _
    // Predicated region
    $region30: #{_lambda_.1} parent=1 // pred_check
      _
    $region31: #{_lambda_.1} parent=1 // pred_check_branch
      %36 = sbr.rel (0) target = $region33
    $region32: #{_lambda_.1} parent=1 // pred_region
      _
    $region33: #{_lambda_.1} parent=1 // pred_fallthru
      _
    // Predicated region
    $region34: #{_lambda_.1} parent=1 // pred_check
      _
    $region35: #{_lambda_.1} parent=1 // pred_check_branch
      %38 = sbr.rel (0) target = $region37
    $region36: #{_lambda_.1} parent=1 // pred_region
      _
    $region37: #{_lambda_.1} parent=1 // pred_fallthru
      _
    // Predicated region
    $region38: #{_lambda_.1} parent=1 // pred_check
      _
    $region39: #{_lambda_.1} parent=1 // pred_check_branch
      %40 = sbr.rel (0) target = $region41
    $region40: #{_lambda_.1} parent=1 // pred_region
      _
    $region41: #{_lambda_.1} parent=1 // pred_fallthru
      _
    // Predicated region
    $region42: #{_lambda_.1} parent=1 // pred_check
      _
    $region43: #{_lambda_.1} parent=1 // pred_check_branch
      %42 = sbr.rel (0) target = $region45
    $region44: #{_lambda_.1} parent=1 // pred_region
      _
    $region45: #{_lambda_.1} parent=1 // pred_fallthru
      _
    // Predicated region
    $region46: #{_lambda_.1} parent=1 // pred_check
      _
    $region47: #{_lambda_.1} parent=1 // pred_check_branch
      %44 = sbr.rel (0) target = $region49
    $region48: #{_lambda_.1} parent=1 // pred_region
      _
    $region49: #{_lambda_.1} parent=1 // pred_fallthru
      _
    // Predicated region
    $region50: #{_lambda_.1} parent=1 // pred_check
      _
    $region51: #{_lambda_.1} parent=1 // pred_check_branch
      %46 = sbr.rel (0) target = $region53
    $region52: #{_lambda_.1} parent=1 // pred_region
      _
    $region53: #{_lambda_.1} parent=1 // pred_fallthru
      _
    // Predicated region
    $region54: #{_lambda_.1} parent=1 // pred_check
      _
    $region55: #{_lambda_.1} parent=1 // pred_check_branch
      %48 = sbr.rel (0) target = $region57
    $region56: #{_lambda_.1} parent=1 // pred_region
      _
    $region57: #{_lambda_.1} parent=1 // pred_fallthru
      _
    // Predicated region
    $region58: #{_lambda_.1} parent=1 // pred_check
      _
    $region59: #{_lambda_.1} parent=1 // pred_check_branch
      %50 = sbr.rel (0) target = $region61
    $region60: #{_lambda_.1} parent=1 // pred_region
      _
    $region61: #{_lambda_.1} parent=1 // pred_fallthru
      _
    %v52 = vld [vmem:[%s0] sm:$0xf]
    %v53 = vld [vmem:[%s1] sm:$0xff]
    %v54 = vld [vmem:[%s1 + $0x8] sm:$0xff]
    %v55 = vld [vmem:[%s1 + $0x10] sm:$0xff]
    %v56 = vld [vmem:[%s1 + $0x18] sm:$0xff]
    %v57 = vld [vmem:[%s1 + $0x20] sm:$0xff]
    %v58 = vld [vmem:[%s1 + $0x28] sm:$0xff]
    %v59 = vld [vmem:[%s1 + $0x30] sm:$0xff]
    %v60 = vld [vmem:[%s1 + $0x38] sm:$0xff]
    %v61 = vld [vmem:[%s1 + $0x40] sm:$0xff]
    %v62 = vld [vmem:[%s1 + $0x48] sm:$0xff]
    %v63 = vld [vmem:[%s1 + $0x50] sm:$0xff]
    %v64 = vld [vmem:[%s1 + $0x58] sm:$0xff]
    %v77 = vunpack.c.l.b16 %v53
    %v78 = vunpack.c.h.b16 %v53
    %v79 = vunpack.c.l.b16 %v54
    %v80 = vunpack.c.h.b16 %v54
    %v81 = vunpack.c.l.b16 %v55
    %v82 = vunpack.c.h.b16 %v55
    %v83 = vunpack.c.l.b16 %v56
    %v84 = vunpack.c.h.b16 %v56
    %v85 = vunpack.c.l.b16 %v57
    %v86 = vunpack.c.h.b16 %v57
    %v87 = vunpack.c.l.b16 %v58
    %v88 = vunpack.c.h.b16 %v58
    %v89 = vunpack.c.l.b16 %v59
    %v90 = vunpack.c.h.b16 %v59
    %v91 = vunpack.c.l.b16 %v60
    %v92 = vunpack.c.h.b16 %v60
    %v93 = vunpack.c.l.b16 %v61
    %v94 = vunpack.c.h.b16 %v61
    %v95 = vunpack.c.l.b16 %v62
    %v96 = vunpack.c.h.b16 %v62
    %v97 = vunpack.c.l.b16 %v63
    %v98 = vunpack.c.h.b16 %v63
    %v99 = vunpack.c.l.b16 %v64
    %v100 = vunpack.c.h.b16 %v64
    %v101 = vpack.c.b16 %v79, %v77
    %v102 = vpack.c.b16 %v80, %v78
    %v103 = vpack.c.b16 %v83, %v81
    %v104 = vpack.c.b16 %v84, %v82
    %v105 = vpack.c.b16 %v87, %v85
    %v106 = vpack.c.b16 %v88, %v86
    %v107 = vpack.c.b16 %v91, %v89
    %v108 = vpack.c.b16 %v92, %v90
    %v109 = vpack.c.b16 %v95, %v93
    %v110 = vpack.c.b16 %v96, %v94
    %v111 = vpack.c.b16 %v99, %v97
    %v112 = vpack.c.b16 %v100, %v98
    %vm125 = vcmask 785408
    %v127 = vsel %vm125, %v52, 0
    %129 = vmatprep.subr.bf16.mxu0 0
    %130 = vmatpush1.bf16.msra.mxu0 0
    %131 = vmatprep.subr.bf16.mxu0 0
    %132 = vmatpush1.bf16.msra.mxu0 0
    %133 = vmatprep.subr.bf16.mxu0 %v112
    %134 = vmatpush1.bf16.msra.mxu0 %v111
    %135 = vmatprep.subr.bf16.mxu0 %v110
    %136 = vmatpush1.bf16.msra.mxu0 %v109
    %137 = vmatprep.subr.bf16.mxu0 %v108
    %138 = vmatpush1.bf16.msra.mxu0 %v107
    %139 = vmatprep.subr.bf16.mxu0 %v106
    %140 = vmatpush1.bf16.msra.mxu0 %v105
    %141 = vmatprep.subr.bf16.mxu0 %v104
    %142 = vmatpush1.bf16.msra.mxu0 %v103
    %143 = vmatprep.subr.bf16.mxu0 %v102
    %144 = vmatpush1.bf16.msra.mxu0 %v101
    %145 = vmatprep.subr.bf16.mxu0 0
    %146 = vmatpush2.bf16.msra.mxu0 0
    %147 = vmatprep.subr.bf16.mxu0 0
    %148 = vmatpush2.bf16.msra.mxu0 0
    %149 = vmatprep.subr.bf16.mxu0 0
    %150 = vmatpush2.bf16.msra.mxu0 0
    %151 = vmatprep.subr.bf16.mxu0 0
    %152 = vmatpush2.bf16.msra.mxu0 0
    %153 = vmatprep.subr.bf16.mxu0 0
    %154 = vmatpush2.bf16.msra.mxu0 0
    %155 = vmatprep.subr.bf16.mxu0 0
    %156 = vmatpush2.bf16.msra.mxu0 0
    %157 = vmatprep.subr.bf16.mxu0 0
    %158 = vmatpush2.bf16.msra.mxu0 0
    %159 = vmatprep.subr.bf16.mxu0 0
    %160 = vmatpush2.bf16.msra.mxu0 0
    %161 = vmatprep.mubr.bf16.mxu0 0
    %162 = vmatmul.mubr.bf16.gmra.mxu0 %v127
    %v163 = vpop.f32.mrf.mxu0
    %v164 = vadd.f32 0.0, %v163
    %v165 = vpop.f32.mrf.mxu0
    %v166 = vadd.f32 0.0, %v165
    %v167 = vpop.f32.mrf.mxu0
    %v168 = vpop.f32.mrf.mxu0
    %169 = vdwg.mxu0
    %v170 = vld [vmem:[%s2] ss:$2 sm:$0x3]
    %s171 = scalar_lea.vmem %s2, 1
    %v172 = vld [vmem:[%s171] ss:$2 sm:$0x3]
    %v173 = vld [vmem:[%s14] sm:$0xff]
    %v174 = vld [vmem:[%s14 + $0x8] sm:$0xff]
    %v175 = vld [vmem:[%s14 + $0x10] sm:$0xff]
    %v176 = vld [vmem:[%s14 + $0x18] sm:$0xff]
    %v177 = vld [vmem:[%s14 + $0x20] sm:$0xff]
    %v178 = vld [vmem:[%s14 + $0x28] sm:$0xff]
    %v179 = vld [vmem:[%s14 + $0x30] sm:$0xff]
    %v180 = vld [vmem:[%s14 + $0x38] sm:$0xff]
    %v181 = vld [vmem:[%s14 + $0x40] sm:$0xff]
    %v182 = vld [vmem:[%s14 + $0x48] sm:$0xff]
    %v183 = vld [vmem:[%s14 + $0x50] sm:$0xff]
    %v184 = vld [vmem:[%s14 + $0x58] sm:$0xff]
    %v185 = vld [vmem:[%s14 + $0x60] sm:$0xff]
    %v186 = vld [vmem:[%s14 + $0x68] sm:$0xff]
    %v187 = vld [vmem:[%s14 + $0x70] sm:$0xff]
    %v188 = vld [vmem:[%s14 + $0x78] sm:$0xff]
    %v189 = vld [vmem:[%s14 + $0x80] sm:$0xff]
    %v190 = vld [vmem:[%s14 + $0x88] sm:$0xff]
    %v191 = vld [vmem:[%s14 + $0x90] sm:$0xff]
    %v192 = vld [vmem:[%s14 + $0x98] sm:$0xff]
    %v193 = vld [vmem:[%s14 + $0xa0] sm:$0xff]
    %v194 = vld [vmem:[%s14 + $0xa8] sm:$0xff]
    %v195 = vld [vmem:[%s14 + $0xb0] sm:$0xff]
    %v196 = vld [vmem:[%s14 + $0xb8] sm:$0xff]
    %v197 = vld [vmem:[%s14 + $0xc0] sm:$0xff]
    %v198 = vld [vmem:[%s14 + $0xc8] sm:$0xff]
    %v199 = vld [vmem:[%s14 + $0xd0] sm:$0xff]
    %v200 = vld [vmem:[%s14 + $0xd8] sm:$0xff]
    %v201 = vld [vmem:[%s14 + $0xe0] sm:$0xff]
    %v202 = vld [vmem:[%s14 + $0xe8] sm:$0xff]
    %v203 = vld [vmem:[%s14 + $0xf0] sm:$0xff]
    %v204 = vld [vmem:[%s14 + $0xf8] sm:$0xff]
    %v205 = vpack.c.bf16 %v164, %v164
    %v206 = vpack.c.bf16 %v166, %v166
    %v239 = vunpack.c.l.b16 %v173
    %v240 = vunpack.c.h.b16 %v173
    %v241 = vunpack.c.l.b16 %v174
    %v242 = vunpack.c.h.b16 %v174
    %v243 = vunpack.c.l.b16 %v175
    %v244 = vunpack.c.h.b16 %v175
    %v245 = vunpack.c.l.b16 %v176
    %v246 = vunpack.c.h.b16 %v176
    %v247 = vunpack.c.l.b16 %v177
    %v248 = vunpack.c.h.b16 %v177
    %v249 = vunpack.c.l.b16 %v178
    %v250 = vunpack.c.h.b16 %v178
    %v251 = vunpack.c.l.b16 %v179
    %v252 = vunpack.c.h.b16 %v179
    %v253 = vunpack.c.l.b16 %v180
    %v254 = vunpack.c.h.b16 %v180
    %v255 = vunpack.c.l.b16 %v181
    %v256 = vunpack.c.h.b16 %v181
    %v257 = vunpack.c.l.b16 %v182
    %v258 = vunpack.c.h.b16 %v182
    %v259 = vunpack.c.l.b16 %v183
    %v260 = vunpack.c.h.b16 %v183
    %v261 = vunpack.c.l.b16 %v184
    %v262 = vunpack.c.h.b16 %v184
    %v263 = vunpack.c.l.b16 %v185
    %v264 = vunpack.c.h.b16 %v185
    %v265 = vunpack.c.l.b16 %v186
    %v266 = vunpack.c.h.b16 %v186
    %v267 = vunpack.c.l.b16 %v187
    %v268 = vunpack.c.h.b16 %v187
    %v269 = vunpack.c.l.b16 %v188
    %v270 = vunpack.c.h.b16 %v188
    %v271 = vunpack.c.l.b16 %v189
    %v272 = vunpack.c.h.b16 %v189
    %v273 = vunpack.c.l.b16 %v190
    %v274 = vunpack.c.h.b16 %v190
    %v275 = vunpack.c.l.b16 %v191
    %v276 = vunpack.c.h.b16 %v191
    %v277 = vunpack.c.l.b16 %v192
    %v278 = vunpack.c.h.b16 %v192
    %v279 = vunpack.c.l.b16 %v193
    %v280 = vunpack.c.h.b16 %v193
    %v281 = vunpack.c.l.b16 %v194
    %v282 = vunpack.c.h.b16 %v194
    %v283 = vunpack.c.l.b16 %v195
    %v284 = vunpack.c.h.b16 %v195
    %v285 = vunpack.c.l.b16 %v196
    %v286 = vunpack.c.h.b16 %v196
    %v287 = vunpack.c.l.b16 %v197
    %v288 = vunpack.c.h.b16 %v197
    %v289 = vunpack.c.l.b16 %v198
    %v290 = vunpack.c.h.b16 %v198
    %v291 = vunpack.c.l.b16 %v199
    %v292 = vunpack.c.h.b16 %v199
    %v293 = vunpack.c.l.b16 %v200
    %v294 = vunpack.c.h.b16 %v200
    %v295 = vunpack.c.l.b16 %v201
    %v296 = vunpack.c.h.b16 %v201
    %v297 = vunpack.c.l.b16 %v202
    %v298 = vunpack.c.h.b16 %v202
    %v299 = vunpack.c.l.b16 %v203
    %v300 = vunpack.c.h.b16 %v203
    %v301 = vunpack.c.l.b16 %v204
    %v302 = vunpack.c.h.b16 %v204
    %v303 = vpack.c.b16 %v241, %v239
    %v304 = vpack.c.b16 %v242, %v240
    %v305 = vpack.c.b16 %v245, %v243
    %v306 = vpack.c.b16 %v246, %v244
    %v307 = vpack.c.b16 %v249, %v247
    %v308 = vpack.c.b16 %v250, %v248
    %v309 = vpack.c.b16 %v253, %v251
    %v310 = vpack.c.b16 %v254, %v252
    %v311 = vpack.c.b16 %v257, %v255
    %v312 = vpack.c.b16 %v258, %v256
    %v313 = vpack.c.b16 %v261, %v259
    %v314 = vpack.c.b16 %v262, %v260
    %v315 = vpack.c.b16 %v265, %v263
    %v316 = vpack.c.b16 %v266, %v264
    %v317 = vpack.c.b16 %v269, %v267
    %v318 = vpack.c.b16 %v270, %v268
    %v319 = vpack.c.b16 %v273, %v271
    %v320 = vpack.c.b16 %v274, %v272
    %v321 = vpack.c.b16 %v277, %v275
    %v322 = vpack.c.b16 %v278, %v276
    %v323 = vpack.c.b16 %v281, %v279
    %v324 = vpack.c.b16 %v282, %v280
    %v325 = vpack.c.b16 %v285, %v283
    %v326 = vpack.c.b16 %v286, %v284
    %v327 = vpack.c.b16 %v289, %v287
    %v328 = vpack.c.b16 %v290, %v288
    %v329 = vpack.c.b16 %v293, %v291
    %v330 = vpack.c.b16 %v294, %v292
    %v331 = vpack.c.b16 %v297, %v295
    %v332 = vpack.c.b16 %v298, %v296
    %v333 = vpack.c.b16 %v301, %v299
    %v334 = vpack.c.b16 %v302, %v300
    %367 = vmatprep.subr.bf16.mxu0 %v318
    %368 = vmatpush1.bf16.msra.mxu0 %v317
    %369 = vmatprep.subr.bf16.mxu0 %v316
    %370 = vmatpush1.bf16.msra.mxu0 %v315
    %371 = vmatprep.subr.bf16.mxu0 %v314
    %372 = vmatpush1.bf16.msra.mxu0 %v313
    %373 = vmatprep.subr.bf16.mxu0 %v312
    %374 = vmatpush1.bf16.msra.mxu0 %v311
    %375 = vmatprep.subr.bf16.mxu0 %v310
    %376 = vmatpush1.bf16.msra.mxu0 %v309
    %377 = vmatprep.subr.bf16.mxu0 %v308
    %378 = vmatpush1.bf16.msra.mxu0 %v307
    %379 = vmatprep.subr.bf16.mxu0 %v306
    %380 = vmatpush1.bf16.msra.mxu0 %v305
    %381 = vmatprep.subr.bf16.mxu0 %v304
    %382 = vmatpush1.bf16.msra.mxu0 %v303
    %383 = vmatprep.subr.bf16.mxu0 %v334
    %384 = vmatpush2.bf16.msra.mxu0 %v333
    %385 = vmatprep.subr.bf16.mxu0 %v332
    %386 = vmatpush2.bf16.msra.mxu0 %v331
    %387 = vmatprep.subr.bf16.mxu0 %v330
    %388 = vmatpush2.bf16.msra.mxu0 %v329
    %389 = vmatprep.subr.bf16.mxu0 %v328
    %390 = vmatpush2.bf16.msra.mxu0 %v327
    %391 = vmatprep.subr.bf16.mxu0 %v326
    %392 = vmatpush2.bf16.msra.mxu0 %v325
    %393 = vmatprep.subr.bf16.mxu0 %v324
    %394 = vmatpush2.bf16.msra.mxu0 %v323
    %395 = vmatprep.subr.bf16.mxu0 %v322
    %396 = vmatpush2.bf16.msra.mxu0 %v321
    %397 = vmatprep.subr.bf16.mxu0 %v320
    %398 = vmatpush2.bf16.msra.mxu0 %v319
    %399 = vmatprep.mubr.bf16.mxu0 %v206
    %400 = vmatmul.mubr.bf16.gmra.mxu0 %v205
    %v401 = vpop.f32.mrf.mxu0
    %v402 = vadd.f32 0.0, %v401
    %v403 = vpop.f32.mrf.mxu0
    %v404 = vadd.f32 0.0, %v403
    %v405 = vpop.f32.mrf.mxu0
    %v406 = vpop.f32.mrf.mxu0
    %407 = vdwg.mxu0
    %v408 = vmul.f32 %v164, %v164
    %v409 = vmul.f32 %v166, %v166
    %v410 = vpack.c.bf16 %v408, %v408
    %v411 = vpack.c.bf16 %v409, %v409
    %412 = vmatprep.subr.bf16.mxu0 %v318
    %413 = vmatpush1.bf16.msra.mxu0 %v317
    %414 = vmatprep.subr.bf16.mxu0 %v316
    %415 = vmatpush1.bf16.msra.mxu0 %v315
    %416 = vmatprep.subr.bf16.mxu0 %v314
    %417 = vmatpush1.bf16.msra.mxu0 %v313
    %418 = vmatprep.subr.bf16.mxu0 %v312
    %419 = vmatpush1.bf16.msra.mxu0 %v311
    %420 = vmatprep.subr.bf16.mxu0 %v310
    %421 = vmatpush1.bf16.msra.mxu0 %v309
    %422 = vmatprep.subr.bf16.mxu0 %v308
    %423 = vmatpush1.bf16.msra.mxu0 %v307
    %424 = vmatprep.subr.bf16.mxu0 %v306
    %425 = vmatpush1.bf16.msra.mxu0 %v305
    %426 = vmatprep.subr.bf16.mxu0 %v304
    %427 = vmatpush1.bf16.msra.mxu0 %v303
    %428 = vmatprep.subr.bf16.mxu0 %v334
    %429 = vmatpush2.bf16.msra.mxu0 %v333
    %430 = vmatprep.subr.bf16.mxu0 %v332
    %431 = vmatpush2.bf16.msra.mxu0 %v331
    %432 = vmatprep.subr.bf16.mxu0 %v330
    %433 = vmatpush2.bf16.msra.mxu0 %v329
    %434 = vmatprep.subr.bf16.mxu0 %v328
    %435 = vmatpush2.bf16.msra.mxu0 %v327
    %436 = vmatprep.subr.bf16.mxu0 %v326
    %437 = vmatpush2.bf16.msra.mxu0 %v325
    %438 = vmatprep.subr.bf16.mxu0 %v324
    %439 = vmatpush2.bf16.msra.mxu0 %v323
    %440 = vmatprep.subr.bf16.mxu0 %v322
    %441 = vmatpush2.bf16.msra.mxu0 %v321
    %442 = vmatprep.subr.bf16.mxu0 %v320
    %443 = vmatpush2.bf16.msra.mxu0 %v319
    %444 = vmatprep.mubr.bf16.mxu0 %v411
    %445 = vmatmul.mubr.bf16.gmra.mxu0 %v410
    %v446 = vpop.f32.mrf.mxu0
    %v447 = vadd.f32 0.0, %v446
    %v448 = vpop.f32.mrf.mxu0
    %v449 = vadd.f32 0.0, %v448
    %v450 = vpop.f32.mrf.mxu0
    %v451 = vpop.f32.mrf.mxu0
    %452 = vdwg.mxu0
    %v453 = vmul.f32 %v402, %v402
    %v454 = vmul.f32 %v404, %v404
    %v455 = vsub.f32 %v447, %v453
    %v456 = vsub.f32 %v449, %v454
    %v457 = vmax.f32 %v455, 0.0
    %v458 = vmax.f32 %v456, 0.0
    %v459 = vadd.f32 %v457, 1e-05
    %v460 = vadd.f32 %v458, 1e-05
    %v461 = vrsqrt.pop %v459
    %v462 = vrsqrt.pop %v460
    %v464 = vlaneseq
    %v465 = vshrl.u32 %v464, 7
    %v466 = vsub.s32 0, %v465
    %v467 = vrot.slane %v170, %v466
    %v468 = vlaneseq
    %v469 = vshrl.u32 %v468, 7
    %v470 = vsub.s32 1, %v469
    %v471 = vrot.slane %v170, %v470
    %v474 = vmul.f32 %v461, %v467
    %v475 = vmul.f32 %v462, %v471
    %v476 = vmul.f32 %v164, %v474
    %v477 = vmul.f32 %v166, %v475
    %v478 = vmul.f32 %v402, %v474
    %v479 = vmul.f32 %v404, %v475
    %v481 = vlaneseq
    %v482 = vshrl.u32 %v481, 7
    %v483 = vsub.s32 0, %v482
    %v484 = vrot.slane %v172, %v483
    %v485 = vlaneseq
    %v486 = vshrl.u32 %v485, 7
    %v487 = vsub.s32 1, %v486
    %v488 = vrot.slane %v172, %v487
    %v491 = vsub.f32 %v484, %v478
    %v492 = vsub.f32 %v488, %v479
    %v493 = vadd.f32 %v476, %v491
    %v494 = vadd.f32 %v477, %v492
    %v495 = vmax.f32 %v493, 0.0
    %v496 = vmax.f32 %v494, 0.0
    %v497 = vadd.f32 %v495, %v496
    %v498 = vld [vmem:[%s3] sm:$0x1]
    %v499 = vld [vmem:[%s4] sm:$0x1]
    %v500 = vmul.f32 %v497, %v497
    %v501 = vpack.c.bf16 %v497, %v497
    %v502 = vpack.c.bf16 %v500, %v500
    %503 = vmatprep.subr.bf16.mxu0 %v318
    %504 = vmatpush1.bf16.msra.mxu0 %v317
    %505 = vmatprep.subr.bf16.mxu0 %v316
    %506 = vmatpush1.bf16.msra.mxu0 %v315
    %507 = vmatprep.subr.bf16.mxu0 %v314
    %508 = vmatpush1.bf16.msra.mxu0 %v313
    %509 = vmatprep.subr.bf16.mxu0 %v312
    %510 = vmatpush1.bf16.msra.mxu0 %v311
    %511 = vmatprep.subr.bf16.mxu0 %v310
    %512 = vmatpush1.bf16.msra.mxu0 %v309
    %513 = vmatprep.subr.bf16.mxu0 %v308
    %514 = vmatpush1.bf16.msra.mxu0 %v307
    %515 = vmatprep.subr.bf16.mxu0 %v306
    %516 = vmatpush1.bf16.msra.mxu0 %v305
    %517 = vmatprep.subr.bf16.mxu0 %v304
    %518 = vmatpush1.bf16.msra.mxu0 %v303
    %519 = vmatprep.subr.bf16.mxu0 %v334
    %520 = vmatpush2.bf16.msra.mxu0 %v333
    %521 = vmatprep.subr.bf16.mxu0 %v332
    %522 = vmatpush2.bf16.msra.mxu0 %v331
    %523 = vmatprep.subr.bf16.mxu0 %v330
    %524 = vmatpush2.bf16.msra.mxu0 %v329
    %525 = vmatprep.subr.bf16.mxu0 %v328
    %526 = vmatpush2.bf16.msra.mxu0 %v327
    %527 = vmatprep.subr.bf16.mxu0 %v326
    %528 = vmatpush2.bf16.msra.mxu0 %v325
    %529 = vmatprep.subr.bf16.mxu0 %v324
    %530 = vmatpush2.bf16.msra.mxu0 %v323
    %531 = vmatprep.subr.bf16.mxu0 %v322
    %532 = vmatpush2.bf16.msra.mxu0 %v321
    %533 = vmatprep.subr.bf16.mxu0 %v320
    %534 = vmatpush2.bf16.msra.mxu0 %v319
    %535 = vmatprep.mubr.bf16.mxu0 %v502
    %536 = vmatmul.mubr.bf16.gmra.mxu0 %v501
    %v537 = vpop.f32.mrf.mxu0
    %v538 = vadd.f32 0.0, %v537
    %v539 = vpop.f32.mrf.mxu0
    %v540 = vadd.f32 0.0, %v539
    %v541 = vpop.f32.mrf.mxu0
    %v542 = vpop.f32.mrf.mxu0
    %543 = vdwg.mxu0
    %v544 = vmul.f32 %v538, %v538
    %v545 = vsub.f32 %v540, %v544
    %v546 = vmax.f32 %v545, 0.0
    %v547 = vadd.f32 %v546, 1e-05
    %v548 = vrsqrt.pop %v547
    %v549 = vlaneseq
    %v550 = vshrl.u32 %v549, 7
    %v551 = vsub.s32 0, %v550
    %v552 = vrot.slane %v498, %v551
    %v553 = vmul.f32 %v548, %v552
    %v554 = vmul.f32 %v497, %v553
    %v555 = vmul.f32 %v538, %v553
    %v556 = vlaneseq
    %v557 = vshrl.u32 %v556, 7
    %v558 = vsub.s32 0, %v557
    %v559 = vrot.slane %v499, %v558
    %v560 = vsub.f32 %v559, %v555
    %v561 = vadd.f32 %v554, %v560
    %v562 = vmax.f32 %v561, 0.0
    %v563 = vld [vmem:[%s5] sm:$0xff]
    %v564 = vld [vmem:[%s5 + $0x8] sm:$0xff]
    %v565 = vld [vmem:[%s5 + $0x10] sm:$0xff]
    %v566 = vld [vmem:[%s5 + $0x18] sm:$0xff]
    %v567 = vld [vmem:[%s5 + $0x20] sm:$0xff]
    %v568 = vld [vmem:[%s5 + $0x28] sm:$0xff]
    %v569 = vld [vmem:[%s5 + $0x30] sm:$0xff]
    %v570 = vld [vmem:[%s5 + $0x38] sm:$0xff]
    %v571 = vld [vmem:[%s5 + $0x40] sm:$0xff]
    %v572 = vld [vmem:[%s5 + $0x48] sm:$0xff]
    %v573 = vld [vmem:[%s5 + $0x50] sm:$0xff]
    %v574 = vld [vmem:[%s5 + $0x58] sm:$0xff]
    %v575 = vld [vmem:[%s5 + $0x60] sm:$0xff]
    %v576 = vld [vmem:[%s5 + $0x68] sm:$0xff]
    %v577 = vld [vmem:[%s5 + $0x70] sm:$0xff]
    %v578 = vld [vmem:[%s5 + $0x78] sm:$0xff]
    %v579 = vpack.c.bf16 %v562, %v562
    %v596 = vunpack.c.l.b16 %v563
    %v597 = vunpack.c.h.b16 %v563
    %v598 = vunpack.c.l.b16 %v564
    %v599 = vunpack.c.h.b16 %v564
    %v600 = vunpack.c.l.b16 %v565
    %v601 = vunpack.c.h.b16 %v565
    %v602 = vunpack.c.l.b16 %v566
    %v603 = vunpack.c.h.b16 %v566
    %v604 = vunpack.c.l.b16 %v567
    %v605 = vunpack.c.h.b16 %v567
    %v606 = vunpack.c.l.b16 %v568
    %v607 = vunpack.c.h.b16 %v568
    %v608 = vunpack.c.l.b16 %v569
    %v609 = vunpack.c.h.b16 %v569
    %v610 = vunpack.c.l.b16 %v570
    %v611 = vunpack.c.h.b16 %v570
    %v612 = vunpack.c.l.b16 %v571
    %v613 = vunpack.c.h.b16 %v571
    %v614 = vunpack.c.l.b16 %v572
    %v615 = vunpack.c.h.b16 %v572
    %v616 = vunpack.c.l.b16 %v573
    %v617 = vunpack.c.h.b16 %v573
    %v618 = vunpack.c.l.b16 %v574
    %v619 = vunpack.c.h.b16 %v574
    %v620 = vunpack.c.l.b16 %v575
    %v621 = vunpack.c.h.b16 %v575
    %v622 = vunpack.c.l.b16 %v576
    %v623 = vunpack.c.h.b16 %v576
    %v624 = vunpack.c.l.b16 %v577
    %v625 = vunpack.c.h.b16 %v577
    %v626 = vunpack.c.l.b16 %v578
    %v627 = vunpack.c.h.b16 %v578
    %v628 = vpack.c.b16 %v598, %v596
    %v629 = vpack.c.b16 %v599, %v597
    %v630 = vpack.c.b16 %v602, %v600
    %v631 = vpack.c.b16 %v603, %v601
    %v632 = vpack.c.b16 %v606, %v604
    %v633 = vpack.c.b16 %v607, %v605
    %v634 = vpack.c.b16 %v610, %v608
    %v635 = vpack.c.b16 %v611, %v609
    %v636 = vpack.c.b16 %v614, %v612
    %v637 = vpack.c.b16 %v615, %v613
    %v638 = vpack.c.b16 %v618, %v616
    %v639 = vpack.c.b16 %v619, %v617
    %v640 = vpack.c.b16 %v622, %v620
    %v641 = vpack.c.b16 %v623, %v621
    %v642 = vpack.c.b16 %v626, %v624
    %v643 = vpack.c.b16 %v627, %v625
    %660 = vmatprep.subr.bf16.mxu0 %v643
    %661 = vmatpush1.bf16.msra.mxu0 %v642
    %662 = vmatprep.subr.bf16.mxu0 %v641
    %663 = vmatpush1.bf16.msra.mxu0 %v640
    %664 = vmatprep.subr.bf16.mxu0 %v639
    %665 = vmatpush1.bf16.msra.mxu0 %v638
    %666 = vmatprep.subr.bf16.mxu0 %v637
    %667 = vmatpush1.bf16.msra.mxu0 %v636
    %668 = vmatprep.subr.bf16.mxu0 %v635
    %669 = vmatpush1.bf16.msra.mxu0 %v634
    %670 = vmatprep.subr.bf16.mxu0 %v633
    %671 = vmatpush1.bf16.msra.mxu0 %v632
    %672 = vmatprep.subr.bf16.mxu0 %v631
    %673 = vmatpush1.bf16.msra.mxu0 %v630
    %674 = vmatprep.subr.bf16.mxu0 %v629
    %675 = vmatpush1.bf16.msra.mxu0 %v628
    %676 = vmatprep.subr.bf16.mxu0 0
    %677 = vmatpush2.bf16.msra.mxu0 0
    %678 = vmatprep.subr.bf16.mxu0 0
    %679 = vmatpush2.bf16.msra.mxu0 0
    %680 = vmatprep.subr.bf16.mxu0 0
    %681 = vmatpush2.bf16.msra.mxu0 0
    %682 = vmatprep.subr.bf16.mxu0 0
    %683 = vmatpush2.bf16.msra.mxu0 0
    %684 = vmatprep.subr.bf16.mxu0 0
    %685 = vmatpush2.bf16.msra.mxu0 0
    %686 = vmatprep.subr.bf16.mxu0 0
    %687 = vmatpush2.bf16.msra.mxu0 0
    %688 = vmatprep.subr.bf16.mxu0 0
    %689 = vmatpush2.bf16.msra.mxu0 0
    %690 = vmatprep.subr.bf16.mxu0 0
    %691 = vmatpush2.bf16.msra.mxu0 0
    %692 = vmatprep.mubr.bf16.mxu0 0
    %693 = vmatmul.mubr.bf16.gmra.mxu0 %v579
    %v694 = vpop.f32.mrf.mxu0
    %v695 = vadd.f32 0.0, %v694
    %v696 = vpop.f32.mrf.mxu0
    %v697 = vadd.f32 0.0, %v696
    %v698 = vpop.f32.mrf.mxu0
    %v699 = vpop.f32.mrf.mxu0
    %700 = vdwg.mxu0
    %v701 = vld [vmem:[%s9] sm:$0x1]
    %v702 = vld [vmem:[%s10] sm:$0x1]
    %v703 = vmul.f32 %v695, %v695
    %v704 = vpack.c.bf16 %v695, %v695
    %v705 = vpack.c.bf16 %v703, %v703
    %706 = vmatprep.subr.bf16.mxu0 %v318
    %707 = vmatpush1.bf16.msra.mxu0 %v317
    %708 = vmatprep.subr.bf16.mxu0 %v316
    %709 = vmatpush1.bf16.msra.mxu0 %v315
    %710 = vmatprep.subr.bf16.mxu0 %v314
    %711 = vmatpush1.bf16.msra.mxu0 %v313
    %712 = vmatprep.subr.bf16.mxu0 %v312
    %713 = vmatpush1.bf16.msra.mxu0 %v311
    %714 = vmatprep.subr.bf16.mxu0 %v310
    %715 = vmatpush1.bf16.msra.mxu0 %v309
    %716 = vmatprep.subr.bf16.mxu0 %v308
    %717 = vmatpush1.bf16.msra.mxu0 %v307
    %718 = vmatprep.subr.bf16.mxu0 %v306
    %719 = vmatpush1.bf16.msra.mxu0 %v305
    %720 = vmatprep.subr.bf16.mxu0 %v304
    %721 = vmatpush1.bf16.msra.mxu0 %v303
    %722 = vmatprep.subr.bf16.mxu0 %v334
    %723 = vmatpush2.bf16.msra.mxu0 %v333
    %724 = vmatprep.subr.bf16.mxu0 %v332
    %725 = vmatpush2.bf16.msra.mxu0 %v331
    %726 = vmatprep.subr.bf16.mxu0 %v330
    %727 = vmatpush2.bf16.msra.mxu0 %v329
    %728 = vmatprep.subr.bf16.mxu0 %v328
    %729 = vmatpush2.bf16.msra.mxu0 %v327
    %730 = vmatprep.subr.bf16.mxu0 %v326
    %731 = vmatpush2.bf16.msra.mxu0 %v325
    %732 = vmatprep.subr.bf16.mxu0 %v324
    %733 = vmatpush2.bf16.msra.mxu0 %v323
    %734 = vmatprep.subr.bf16.mxu0 %v322
    %735 = vmatpush2.bf16.msra.mxu0 %v321
    %736 = vmatprep.subr.bf16.mxu0 %v320
    %737 = vmatpush2.bf16.msra.mxu0 %v319
    %738 = vmatprep.mubr.bf16.mxu0 %v705
    %739 = vmatmul.mubr.bf16.gmra.mxu0 %v704
    %v740 = vpop.f32.mrf.mxu0
    %v741 = vadd.f32 0.0, %v740
    %v742 = vpop.f32.mrf.mxu0
    %v743 = vadd.f32 0.0, %v742
    %v744 = vpop.f32.mrf.mxu0
    %v745 = vpop.f32.mrf.mxu0
    %746 = vdwg.mxu0
    %v747 = vmul.f32 %v741, %v741
    %v748 = vsub.f32 %v743, %v747
    %v749 = vmax.f32 %v748, 0.0
    %v750 = vadd.f32 %v749, 1e-05
    %v751 = vrsqrt.pop %v750
    %v752 = vlaneseq
    %v753 = vshrl.u32 %v752, 7
    %v754 = vsub.s32 0, %v753
    %v755 = vrot.slane %v701, %v754
    %v756 = vmul.f32 %v751, %v755
    %v757 = vmul.f32 %v695, %v756
    %v758 = vmul.f32 %v741, %v756
    %v759 = vlaneseq
    %v760 = vshrl.u32 %v759, 7
    %v761 = vsub.s32 0, %v760
    %v762 = vrot.slane %v702, %v761
    %v763 = vsub.f32 %v762, %v758
    %v764 = vadd.f32 %v757, %v763
    %v765 = vmax.f32 %v764, 0.0
    %v766 = vld [vmem:[%s6] sm:$0xf]
    %v767 = vld [vmem:[%s6 + $0x4] sm:$0xf]
    %v768 = vld [vmem:[%s6 + $0x8] sm:$0xf]
    %v769 = vld [vmem:[%s6 + $0xc] sm:$0xf]
    %v770 = vld [vmem:[%s6 + $0x10] sm:$0xf]
    %v771 = vld [vmem:[%s6 + $0x14] sm:$0xf]
    %v772 = vld [vmem:[%s6 + $0x18] sm:$0xf]
    %v773 = vld [vmem:[%s6 + $0x1c] sm:$0xf]
    %v774 = vld [vmem:[%s6 + $0x20] sm:$0xf]
    %v775 = vld [vmem:[%s6 + $0x24] sm:$0xf]
    %v776 = vld [vmem:[%s6 + $0x28] sm:$0xf]
    %v777 = vld [vmem:[%s6 + $0x2c] sm:$0xf]
    %v778 = vld [vmem:[%s6 + $0x30] sm:$0xf]
    %v779 = vld [vmem:[%s6 + $0x34] sm:$0xf]
    %v780 = vld [vmem:[%s6 + $0x38] sm:$0xf]
    %v781 = vld [vmem:[%s6 + $0x3c] sm:$0xf]
    %v782 = vpack.c.bf16 %v765, %v765
    %v799 = vunpack.c.l.b16 %v766
    %v800 = vunpack.c.l.b16 %v767
    %v801 = vunpack.c.l.b16 %v768
    %v802 = vunpack.c.l.b16 %v769
    %v803 = vunpack.c.l.b16 %v770
    %v804 = vunpack.c.l.b16 %v771
    %v805 = vunpack.c.l.b16 %v772
    %v806 = vunpack.c.l.b16 %v773
    %v807 = vunpack.c.l.b16 %v774
    %v808 = vunpack.c.l.b16 %v775
    %v809 = vunpack.c.l.b16 %v776
    %v810 = vunpack.c.l.b16 %v777
    %v811 = vunpack.c.l.b16 %v778
    %v812 = vunpack.c.l.b16 %v779
    %v813 = vunpack.c.l.b16 %v780
    %v814 = vunpack.c.l.b16 %v781
    %v815 = vpack.c.b16 %v800, %v799
    %v816 = vpack.c.b16 %v802, %v801
    %v817 = vpack.c.b16 %v804, %v803
    %v818 = vpack.c.b16 %v806, %v805
    %v819 = vpack.c.b16 %v808, %v807
    %v820 = vpack.c.b16 %v810, %v809
    %v821 = vpack.c.b16 %v812, %v811
    %v822 = vpack.c.b16 %v814, %v813
    %831 = vmatprep.subr.bf16.mxu0 0
    %832 = vmatpush1.bf16.msra.mxu0 %v822
    %833 = vmatprep.subr.bf16.mxu0 0
    %834 = vmatpush1.bf16.msra.mxu0 %v821
    %835 = vmatprep.subr.bf16.mxu0 0
    %836 = vmatpush1.bf16.msra.mxu0 %v820
    %837 = vmatprep.subr.bf16.mxu0 0
    %838 = vmatpush1.bf16.msra.mxu0 %v819
    %839 = vmatprep.subr.bf16.mxu0 0
    %840 = vmatpush1.bf16.msra.mxu0 %v818
    %841 = vmatprep.subr.bf16.mxu0 0
    %842 = vmatpush1.bf16.msra.mxu0 %v817
    %843 = vmatprep.subr.bf16.mxu0 0
    %844 = vmatpush1.bf16.msra.mxu0 %v816
    %845 = vmatprep.subr.bf16.mxu0 0
    %846 = vmatpush1.bf16.msra.mxu0 %v815
    %847 = vmatprep.subr.bf16.mxu0 0
    %848 = vmatpush2.bf16.msra.mxu0 0
    %849 = vmatprep.subr.bf16.mxu0 0
    %850 = vmatpush2.bf16.msra.mxu0 0
    %851 = vmatprep.subr.bf16.mxu0 0
    %852 = vmatpush2.bf16.msra.mxu0 0
    %853 = vmatprep.subr.bf16.mxu0 0
    %854 = vmatpush2.bf16.msra.mxu0 0
    %855 = vmatprep.subr.bf16.mxu0 0
    %856 = vmatpush2.bf16.msra.mxu0 0
    %857 = vmatprep.subr.bf16.mxu0 0
    %858 = vmatpush2.bf16.msra.mxu0 0
    %859 = vmatprep.subr.bf16.mxu0 0
    %860 = vmatpush2.bf16.msra.mxu0 0
    %861 = vmatprep.subr.bf16.mxu0 0
    %862 = vmatpush2.bf16.msra.mxu0 0
    %863 = vmatprep.mubr.bf16.mxu0 0
    %864 = vmatmul.mubr.bf16.gmra.mxu0 %v782
    %v865 = vpop.f32.mrf.mxu0
    %v866 = vadd.f32 0.0, %v865
    %v867 = vpop.f32.mrf.mxu0
    %v868 = vpop.f32.mrf.mxu0
    %v869 = vpop.f32.mrf.mxu0
    %870 = vdwg.mxu0
    %v871 = vld [vmem:[%s9 + $0x1] sm:$0x1]
    %v872 = vld [vmem:[%s10 + $0x1] sm:$0x1]
    %v873 = vmul.f32 %v866, %v866
    %v874 = vpack.c.bf16 %v866, %v866
    %v875 = vpack.c.bf16 %v873, %v873
    %876 = vmatprep.subr.bf16.mxu0 %v318
    %877 = vmatpush1.bf16.msra.mxu0 %v317
    %878 = vmatprep.subr.bf16.mxu0 %v316
    %879 = vmatpush1.bf16.msra.mxu0 %v315
    %880 = vmatprep.subr.bf16.mxu0 %v314
    %881 = vmatpush1.bf16.msra.mxu0 %v313
    %882 = vmatprep.subr.bf16.mxu0 %v312
    %883 = vmatpush1.bf16.msra.mxu0 %v311
    %884 = vmatprep.subr.bf16.mxu0 %v310
    %885 = vmatpush1.bf16.msra.mxu0 %v309
    %886 = vmatprep.subr.bf16.mxu0 %v308
    %887 = vmatpush1.bf16.msra.mxu0 %v307
    %888 = vmatprep.subr.bf16.mxu0 %v306
    %889 = vmatpush1.bf16.msra.mxu0 %v305
    %890 = vmatprep.subr.bf16.mxu0 %v304
    %891 = vmatpush1.bf16.msra.mxu0 %v303
    %892 = vmatprep.subr.bf16.mxu0 %v334
    %893 = vmatpush2.bf16.msra.mxu0 %v333
    %894 = vmatprep.subr.bf16.mxu0 %v332
    %895 = vmatpush2.bf16.msra.mxu0 %v331
    %896 = vmatprep.subr.bf16.mxu0 %v330
    %897 = vmatpush2.bf16.msra.mxu0 %v329
    %898 = vmatprep.subr.bf16.mxu0 %v328
    %899 = vmatpush2.bf16.msra.mxu0 %v327
    %900 = vmatprep.subr.bf16.mxu0 %v326
    %901 = vmatpush2.bf16.msra.mxu0 %v325
    %902 = vmatprep.subr.bf16.mxu0 %v324
    %903 = vmatpush2.bf16.msra.mxu0 %v323
    %904 = vmatprep.subr.bf16.mxu0 %v322
    %905 = vmatpush2.bf16.msra.mxu0 %v321
    %906 = vmatprep.subr.bf16.mxu0 %v320
    %907 = vmatpush2.bf16.msra.mxu0 %v319
    %908 = vmatprep.mubr.bf16.mxu0 %v875
    %909 = vmatmul.mubr.bf16.gmra.mxu0 %v874
    %v910 = vpop.f32.mrf.mxu0
    %v911 = vadd.f32 0.0, %v910
    %v912 = vpop.f32.mrf.mxu0
    %v913 = vadd.f32 0.0, %v912
    %v914 = vpop.f32.mrf.mxu0
    %v915 = vpop.f32.mrf.mxu0
    %916 = vdwg.mxu0
    %v917 = vmul.f32 %v911, %v911
    %v918 = vsub.f32 %v913, %v917
    %v919 = vmax.f32 %v918, 0.0
    %v920 = vadd.f32 %v919, 1e-05
    %v921 = vrsqrt.pop %v920
    %v922 = vlaneseq
    %v923 = vshrl.u32 %v922, 7
    %v924 = vsub.s32 0, %v923
    %v925 = vrot.slane %v871, %v924
    %v926 = vmul.f32 %v921, %v925
    %v927 = vmul.f32 %v866, %v926
    %v928 = vmul.f32 %v911, %v926
    %v929 = vlaneseq
    %v930 = vshrl.u32 %v929, 7
    %v931 = vsub.s32 0, %v930
    %v932 = vrot.slane %v872, %v931
    %v933 = vsub.f32 %v932, %v928
    %v934 = vadd.f32 %v927, %v933
    %v935 = vmax.f32 %v934, 0.0
    %v936 = vld [vmem:[%s7] sm:$0xf]
    %v937 = vld [vmem:[%s7 + $0x4] sm:$0xf]
    %v938 = vld [vmem:[%s7 + $0x8] sm:$0xf]
    %v939 = vld [vmem:[%s7 + $0xc] sm:$0xf]
    %v940 = vld [vmem:[%s7 + $0x10] sm:$0xf]
    %v941 = vld [vmem:[%s7 + $0x14] sm:$0xf]
    %v942 = vld [vmem:[%s7 + $0x18] sm:$0xf]
    %v943 = vld [vmem:[%s7 + $0x1c] sm:$0xf]
    %v944 = vld [vmem:[%s7 + $0x20] sm:$0xf]
    %v945 = vld [vmem:[%s7 + $0x24] sm:$0xf]
    %v946 = vld [vmem:[%s7 + $0x28] sm:$0xf]
    %v947 = vld [vmem:[%s7 + $0x2c] sm:$0xf]
    %v948 = vld [vmem:[%s7 + $0x30] sm:$0xf]
    %v949 = vld [vmem:[%s7 + $0x34] sm:$0xf]
    %v950 = vld [vmem:[%s7 + $0x38] sm:$0xf]
    %v951 = vld [vmem:[%s7 + $0x3c] sm:$0xf]
    %v952 = vpack.c.bf16 %v935, %v935
    %v969 = vunpack.c.l.b16 %v936
    %v970 = vunpack.c.l.b16 %v937
    %v971 = vunpack.c.l.b16 %v938
    %v972 = vunpack.c.l.b16 %v939
    %v973 = vunpack.c.l.b16 %v940
    %v974 = vunpack.c.l.b16 %v941
    %v975 = vunpack.c.l.b16 %v942
    %v976 = vunpack.c.l.b16 %v943
    %v977 = vunpack.c.l.b16 %v944
    %v978 = vunpack.c.l.b16 %v945
    %v979 = vunpack.c.l.b16 %v946
    %v980 = vunpack.c.l.b16 %v947
    %v981 = vunpack.c.l.b16 %v948
    %v982 = vunpack.c.l.b16 %v949
    %v983 = vunpack.c.l.b16 %v950
    %v984 = vunpack.c.l.b16 %v951
    %v985 = vpack.c.b16 %v970, %v969
    %v986 = vpack.c.b16 %v972, %v971
    %v987 = vpack.c.b16 %v974, %v973
    %v988 = vpack.c.b16 %v976, %v975
    %v989 = vpack.c.b16 %v978, %v977
    %v990 = vpack.c.b16 %v980, %v979
    %v991 = vpack.c.b16 %v982, %v981
    %v992 = vpack.c.b16 %v984, %v983
    %1001 = vmatprep.subr.bf16.mxu0 0
    %1002 = vmatpush1.bf16.msra.mxu0 %v992
    %1003 = vmatprep.subr.bf16.mxu0 0
    %1004 = vmatpush1.bf16.msra.mxu0 %v991
    %1005 = vmatprep.subr.bf16.mxu0 0
    %1006 = vmatpush1.bf16.msra.mxu0 %v990
    %1007 = vmatprep.subr.bf16.mxu0 0
    %1008 = vmatpush1.bf16.msra.mxu0 %v989
    %1009 = vmatprep.subr.bf16.mxu0 0
    %1010 = vmatpush1.bf16.msra.mxu0 %v988
    %1011 = vmatprep.subr.bf16.mxu0 0
    %1012 = vmatpush1.bf16.msra.mxu0 %v987
    %1013 = vmatprep.subr.bf16.mxu0 0
    %1014 = vmatpush1.bf16.msra.mxu0 %v986
    %1015 = vmatprep.subr.bf16.mxu0 0
    %1016 = vmatpush1.bf16.msra.mxu0 %v985
    %1017 = vmatprep.subr.bf16.mxu0 0
    %1018 = vmatpush2.bf16.msra.mxu0 0
    %1019 = vmatprep.subr.bf16.mxu0 0
    %1020 = vmatpush2.bf16.msra.mxu0 0
    %1021 = vmatprep.subr.bf16.mxu0 0
    %1022 = vmatpush2.bf16.msra.mxu0 0
    %1023 = vmatprep.subr.bf16.mxu0 0
    %1024 = vmatpush2.bf16.msra.mxu0 0
    %1025 = vmatprep.subr.bf16.mxu0 0
    %1026 = vmatpush2.bf16.msra.mxu0 0
    %1027 = vmatprep.subr.bf16.mxu0 0
    %1028 = vmatpush2.bf16.msra.mxu0 0
    %1029 = vmatprep.subr.bf16.mxu0 0
    %1030 = vmatpush2.bf16.msra.mxu0 0
    %1031 = vmatprep.subr.bf16.mxu0 0
    %1032 = vmatpush2.bf16.msra.mxu0 0
    %1033 = vmatprep.mubr.bf16.mxu0 0
    %1034 = vmatmul.mubr.bf16.gmra.mxu0 %v952
    %v1035 = vpop.f32.mrf.mxu0
    %v1036 = vadd.f32 %v697, %v1035
    %v1037 = vpop.f32.mrf.mxu0
    %v1038 = vpop.f32.mrf.mxu0
    %v1039 = vpop.f32.mrf.mxu0
    %1040 = vdwg.mxu0
    %v1041 = vld [vmem:[%s8] sm:$0x1]
    %v1042 = vlaneseq
    %v1043 = vshrl.u32 %v1042, 7
    %v1044 = vsub.s32 0, %v1043
    %v1045 = vrot.slane %v1041, %v1044
    %v1046 = vadd.f32 %v1036, %v1045
    %v1047 = vld [vmem:[%s9 + $0x2] sm:$0x1]
    %v1048 = vld [vmem:[%s10 + $0x2] sm:$0x1]
    %v1049 = vmul.f32 %v1046, %v1046
    %v1050 = vpack.c.bf16 %v1046, %v1046
    %v1051 = vpack.c.bf16 %v1049, %v1049
    %1052 = vmatprep.subr.bf16.mxu0 %v318
    %1053 = vmatpush1.bf16.msra.mxu0 %v317
    %1054 = vmatprep.subr.bf16.mxu0 %v316
    %1055 = vmatpush1.bf16.msra.mxu0 %v315
    %1056 = vmatprep.subr.bf16.mxu0 %v314
    %1057 = vmatpush1.bf16.msra.mxu0 %v313
    %1058 = vmatprep.subr.bf16.mxu0 %v312
    %1059 = vmatpush1.bf16.msra.mxu0 %v311
    %1060 = vmatprep.subr.bf16.mxu0 %v310
    %1061 = vmatpush1.bf16.msra.mxu0 %v309
    %1062 = vmatprep.subr.bf16.mxu0 %v308
    %1063 = vmatpush1.bf16.msra.mxu0 %v307
    %1064 = vmatprep.subr.bf16.mxu0 %v306
    %1065 = vmatpush1.bf16.msra.mxu0 %v305
    %1066 = vmatprep.subr.bf16.mxu0 %v304
    %1067 = vmatpush1.bf16.msra.mxu0 %v303
    %1068 = vmatprep.subr.bf16.mxu0 %v334
    %1069 = vmatpush2.bf16.msra.mxu0 %v333
    %1070 = vmatprep.subr.bf16.mxu0 %v332
    %1071 = vmatpush2.bf16.msra.mxu0 %v331
    %1072 = vmatprep.subr.bf16.mxu0 %v330
    %1073 = vmatpush2.bf16.msra.mxu0 %v329
    %1074 = vmatprep.subr.bf16.mxu0 %v328
    %1075 = vmatpush2.bf16.msra.mxu0 %v327
    %1076 = vmatprep.subr.bf16.mxu0 %v326
    %1077 = vmatpush2.bf16.msra.mxu0 %v325
    %1078 = vmatprep.subr.bf16.mxu0 %v324
    %1079 = vmatpush2.bf16.msra.mxu0 %v323
    %1080 = vmatprep.subr.bf16.mxu0 %v322
    %1081 = vmatpush2.bf16.msra.mxu0 %v321
    %1082 = vmatprep.subr.bf16.mxu0 %v320
    %1083 = vmatpush2.bf16.msra.mxu0 %v319
    %1084 = vmatprep.mubr.bf16.mxu0 %v1051
    %1085 = vmatmul.mubr.bf16.gmra.mxu0 %v1050
    %v1086 = vpop.f32.mrf.mxu0
    %v1087 = vadd.f32 0.0, %v1086
    %v1088 = vpop.f32.mrf.mxu0
    %v1089 = vadd.f32 0.0, %v1088
    %v1090 = vpop.f32.mrf.mxu0
    %v1091 = vpop.f32.mrf.mxu0
    %1092 = vdwg.mxu0
    %v1093 = vmul.f32 %v1087, %v1087
    %v1094 = vsub.f32 %v1089, %v1093
    %v1095 = vmax.f32 %v1094, 0.0
    %v1096 = vadd.f32 %v1095, 1e-05
    %v1097 = vrsqrt.pop %v1096
    %v1098 = vlaneseq
    %v1099 = vshrl.u32 %v1098, 7
    %v1100 = vsub.s32 0, %v1099
    %v1101 = vrot.slane %v1047, %v1100
    %v1102 = vmul.f32 %v1097, %v1101
    %v1103 = vmul.f32 %v1046, %v1102
    %v1104 = vmul.f32 %v1087, %v1102
    %v1105 = vlaneseq
    %v1106 = vshrl.u32 %v1105, 7
    %v1107 = vsub.s32 0, %v1106
    %v1108 = vrot.slane %v1048, %v1107
    %v1109 = vsub.f32 %v1108, %v1104
    %v1110 = vadd.f32 %v1103, %v1109
    %v1111 = vmax.f32 %v1110, 0.0
    %v1112 = vadd.f32 %v495, %v1111
    %v1113 = vld [vmem:[%s3 + $0x1] sm:$0x1]
    %v1114 = vld [vmem:[%s4 + $0x1] sm:$0x1]
    %v1115 = vmul.f32 %v1112, %v1112
    %v1116 = vpack.c.bf16 %v1112, %v1112
    %v1117 = vpack.c.bf16 %v1115, %v1115
    %1118 = vmatprep.subr.bf16.mxu0 %v318
    %1119 = vmatpush1.bf16.msra.mxu0 %v317
    %1120 = vmatprep.subr.bf16.mxu0 %v316
    %1121 = vmatpush1.bf16.msra.mxu0 %v315
    %1122 = vmatprep.subr.bf16.mxu0 %v314
    %1123 = vmatpush1.bf16.msra.mxu0 %v313
    %1124 = vmatprep.subr.bf16.mxu0 %v312
    %1125 = vmatpush1.bf16.msra.mxu0 %v311
    %1126 = vmatprep.subr.bf16.mxu0 %v310
    %1127 = vmatpush1.bf16.msra.mxu0 %v309
    %1128 = vmatprep.subr.bf16.mxu0 %v308
    %1129 = vmatpush1.bf16.msra.mxu0 %v307
    %1130 = vmatprep.subr.bf16.mxu0 %v306
    %1131 = vmatpush1.bf16.msra.mxu0 %v305
    %1132 = vmatprep.subr.bf16.mxu0 %v304
    %1133 = vmatpush1.bf16.msra.mxu0 %v303
    %1134 = vmatprep.subr.bf16.mxu0 %v334
    %1135 = vmatpush2.bf16.msra.mxu0 %v333
    %1136 = vmatprep.subr.bf16.mxu0 %v332
    %1137 = vmatpush2.bf16.msra.mxu0 %v331
    %1138 = vmatprep.subr.bf16.mxu0 %v330
    %1139 = vmatpush2.bf16.msra.mxu0 %v329
    %1140 = vmatprep.subr.bf16.mxu0 %v328
    %1141 = vmatpush2.bf16.msra.mxu0 %v327
    %1142 = vmatprep.subr.bf16.mxu0 %v326
    %1143 = vmatpush2.bf16.msra.mxu0 %v325
    %1144 = vmatprep.subr.bf16.mxu0 %v324
    %1145 = vmatpush2.bf16.msra.mxu0 %v323
    %1146 = vmatprep.subr.bf16.mxu0 %v322
    %1147 = vmatpush2.bf16.msra.mxu0 %v321
    %1148 = vmatprep.subr.bf16.mxu0 %v320
    %1149 = vmatpush2.bf16.msra.mxu0 %v319
    %1150 = vmatprep.mubr.bf16.mxu0 %v1117
    %1151 = vmatmul.mubr.bf16.gmra.mxu0 %v1116
    %v1152 = vpop.f32.mrf.mxu0
    %v1153 = vadd.f32 0.0, %v1152
    %v1154 = vpop.f32.mrf.mxu0
    %v1155 = vadd.f32 0.0, %v1154
    %v1156 = vpop.f32.mrf.mxu0
    %v1157 = vpop.f32.mrf.mxu0
    %1158 = vdwg.mxu0
    %v1159 = vmul.f32 %v1153, %v1153
    %v1160 = vsub.f32 %v1155, %v1159
    %v1161 = vmax.f32 %v1160, 0.0
    %v1162 = vadd.f32 %v1161, 1e-05
    %v1163 = vrsqrt.pop %v1162
    %v1164 = vlaneseq
    %v1165 = vshrl.u32 %v1164, 7
    %v1166 = vsub.s32 0, %v1165
    %v1167 = vrot.slane %v1113, %v1166
    %v1168 = vmul.f32 %v1163, %v1167
    %v1169 = vmul.f32 %v1112, %v1168
    %v1170 = vmul.f32 %v1153, %v1168
    %v1171 = vlaneseq
    %v1172 = vshrl.u32 %v1171, 7
    %v1173 = vsub.s32 0, %v1172
    %v1174 = vrot.slane %v1114, %v1173
    %v1175 = vsub.f32 %v1174, %v1170
    %v1176 = vadd.f32 %v1169, %v1175
    %v1177 = vmax.f32 %v1176, 0.0
    %s1178 = scalar_lea.vmem %s5, 128
    %v1179 = vld [vmem:[%s1178] sm:$0xff]
    %v1180 = vld [vmem:[%s1178 + $0x8] sm:$0xff]
    %v1181 = vld [vmem:[%s1178 + $0x10] sm:$0xff]
    %v1182 = vld [vmem:[%s1178 + $0x18] sm:$0xff]
    %v1183 = vld [vmem:[%s1178 + $0x20] sm:$0xff]
    %v1184 = vld [vmem:[%s1178 + $0x28] sm:$0xff]
    %v1185 = vld [vmem:[%s1178 + $0x30] sm:$0xff]
    %v1186 = vld [vmem:[%s1178 + $0x38] sm:$0xff]
    %v1187 = vld [vmem:[%s1178 + $0x40] sm:$0xff]
    %v1188 = vld [vmem:[%s1178 + $0x48] sm:$0xff]
    %v1189 = vld [vmem:[%s1178 + $0x50] sm:$0xff]
    %v1190 = vld [vmem:[%s1178 + $0x58] sm:$0xff]
    %v1191 = vld [vmem:[%s1178 + $0x60] sm:$0xff]
    %v1192 = vld [vmem:[%s1178 + $0x68] sm:$0xff]
    %v1193 = vld [vmem:[%s1178 + $0x70] sm:$0xff]
    %v1194 = vld [vmem:[%s1178 + $0x78] sm:$0xff]
    %v1195 = vpack.c.bf16 %v1177, %v1177
    %v1212 = vunpack.c.l.b16 %v1179
    %v1213 = vunpack.c.h.b16 %v1179
    %v1214 = vunpack.c.l.b16 %v1180
    %v1215 = vunpack.c.h.b16 %v1180
    %v1216 = vunpack.c.l.b16 %v1181
    %v1217 = vunpack.c.h.b16 %v1181
    %v1218 = vunpack.c.l.b16 %v1182
    %v1219 = vunpack.c.h.b16 %v1182
    %v1220 = vunpack.c.l.b16 %v1183
    %v1221 = vunpack.c.h.b16 %v1183
    %v1222 = vunpack.c.l.b16 %v1184
    %v1223 = vunpack.c.h.b16 %v1184
    %v1224 = vunpack.c.l.b16 %v1185
    %v1225 = vunpack.c.h.b16 %v1185
    %v1226 = vunpack.c.l.b16 %v1186
    %v1227 = vunpack.c.h.b16 %v1186
    %v1228 = vunpack.c.l.b16 %v1187
    %v1229 = vunpack.c.h.b16 %v1187
    %v1230 = vunpack.c.l.b16 %v1188
    %v1231 = vunpack.c.h.b16 %v1188
    %v1232 = vunpack.c.l.b16 %v1189
    %v1233 = vunpack.c.h.b16 %v1189
    %v1234 = vunpack.c.l.b16 %v1190
    %v1235 = vunpack.c.h.b16 %v1190
    %v1236 = vunpack.c.l.b16 %v1191
    %v1237 = vunpack.c.h.b16 %v1191
    %v1238 = vunpack.c.l.b16 %v1192
    %v1239 = vunpack.c.h.b16 %v1192
    %v1240 = vunpack.c.l.b16 %v1193
    %v1241 = vunpack.c.h.b16 %v1193
    %v1242 = vunpack.c.l.b16 %v1194
    %v1243 = vunpack.c.h.b16 %v1194
    %v1244 = vpack.c.b16 %v1214, %v1212
    %v1245 = vpack.c.b16 %v1215, %v1213
    %v1246 = vpack.c.b16 %v1218, %v1216
    %v1247 = vpack.c.b16 %v1219, %v1217
    %v1248 = vpack.c.b16 %v1222, %v1220
    %v1249 = vpack.c.b16 %v1223, %v1221
    %v1250 = vpack.c.b16 %v1226, %v1224
    %v1251 = vpack.c.b16 %v1227, %v1225
    %v1252 = vpack.c.b16 %v1230, %v1228
    %v1253 = vpack.c.b16 %v1231, %v1229
    %v1254 = vpack.c.b16 %v1234, %v1232
    %v1255 = vpack.c.b16 %v1235, %v1233
    %v1256 = vpack.c.b16 %v1238, %v1236
    %v1257 = vpack.c.b16 %v1239, %v1237
    %v1258 = vpack.c.b16 %v1242, %v1240
    %v1259 = vpack.c.b16 %v1243, %v1241
    %1276 = vmatprep.subr.bf16.mxu0 %v1259
    %1277 = vmatpush1.bf16.msra.mxu0 %v1258
    %1278 = vmatprep.subr.bf16.mxu0 %v1257
    %1279 = vmatpush1.bf16.msra.mxu0 %v1256
    %1280 = vmatprep.subr.bf16.mxu0 %v1255
    %1281 = vmatpush1.bf16.msra.mxu0 %v1254
    %1282 = vmatprep.subr.bf16.mxu0 %v1253
    %1283 = vmatpush1.bf16.msra.mxu0 %v1252
    %1284 = vmatprep.subr.bf16.mxu0 %v1251
    %1285 = vmatpush1.bf16.msra.mxu0 %v1250
    %1286 = vmatprep.subr.bf16.mxu0 %v1249
    %1287 = vmatpush1.bf16.msra.mxu0 %v1248
    %1288 = vmatprep.subr.bf16.mxu0 %v1247
    %1289 = vmatpush1.bf16.msra.mxu0 %v1246
    %1290 = vmatprep.subr.bf16.mxu0 %v1245
    %1291 = vmatpush1.bf16.msra.mxu0 %v1244
    %1292 = vmatprep.subr.bf16.mxu0 0
    %1293 = vmatpush2.bf16.msra.mxu0 0
    %1294 = vmatprep.subr.bf16.mxu0 0
    %1295 = vmatpush2.bf16.msra.mxu0 0
    %1296 = vmatprep.subr.bf16.mxu0 0
    %1297 = vmatpush2.bf16.msra.mxu0 0
    %1298 = vmatprep.subr.bf16.mxu0 0
    %1299 = vmatpush2.bf16.msra.mxu0 0
    %1300 = vmatprep.subr.bf16.mxu0 0
    %1301 = vmatpush2.bf16.msra.mxu0 0
    %1302 = vmatprep.subr.bf16.mxu0 0
    %1303 = vmatpush2.bf16.msra.mxu0 0
    %1304 = vmatprep.subr.bf16.mxu0 0
    %1305 = vmatpush2.bf16.msra.mxu0 0
    %1306 = vmatprep.subr.bf16.mxu0 0
    %1307 = vmatpush2.bf16.msra.mxu0 0
    %1308 = vmatprep.mubr.bf16.mxu0 0
    %1309 = vmatmul.mubr.bf16.gmra.mxu0 %v1195
    %v1310 = vpop.f32.mrf.mxu0
    %v1311 = vadd.f32 0.0, %v1310
    %v1312 = vpop.f32.mrf.mxu0
    %v1313 = vadd.f32 0.0, %v1312
    %v1314 = vpop.f32.mrf.mxu0
    %v1315 = vpop.f32.mrf.mxu0
    %1316 = vdwg.mxu0
    %s1317 = scalar_lea.vmem %s9, 4
    %v1318 = vld [vmem:[%s1317] sm:$0x1]
    %s1319 = scalar_lea.vmem %s10, 4
    %v1320 = vld [vmem:[%s1319] sm:$0x1]
    %v1321 = vmul.f32 %v1311, %v1311
    %v1322 = vpack.c.bf16 %v1311, %v1311
    %v1323 = vpack.c.bf16 %v1321, %v1321
    %1324 = vmatprep.subr.bf16.mxu0 %v318
    %1325 = vmatpush1.bf16.msra.mxu0 %v317
    %1326 = vmatprep.subr.bf16.mxu0 %v316
    %1327 = vmatpush1.bf16.msra.mxu0 %v315
    %1328 = vmatprep.subr.bf16.mxu0 %v314
    %1329 = vmatpush1.bf16.msra.mxu0 %v313
    %1330 = vmatprep.subr.bf16.mxu0 %v312
    %1331 = vmatpush1.bf16.msra.mxu0 %v311
    %1332 = vmatprep.subr.bf16.mxu0 %v310
    %1333 = vmatpush1.bf16.msra.mxu0 %v309
    %1334 = vmatprep.subr.bf16.mxu0 %v308
    %1335 = vmatpush1.bf16.msra.mxu0 %v307
    %1336 = vmatprep.subr.bf16.mxu0 %v306
    %1337 = vmatpush1.bf16.msra.mxu0 %v305
    %1338 = vmatprep.subr.bf16.mxu0 %v304
    %1339 = vmatpush1.bf16.msra.mxu0 %v303
    %1340 = vmatprep.subr.bf16.mxu0 %v334
    %1341 = vmatpush2.bf16.msra.mxu0 %v333
    %1342 = vmatprep.subr.bf16.mxu0 %v332
    %1343 = vmatpush2.bf16.msra.mxu0 %v331
    %1344 = vmatprep.subr.bf16.mxu0 %v330
    %1345 = vmatpush2.bf16.msra.mxu0 %v329
    %1346 = vmatprep.subr.bf16.mxu0 %v328
    %1347 = vmatpush2.bf16.msra.mxu0 %v327
    %1348 = vmatprep.subr.bf16.mxu0 %v326
    %1349 = vmatpush2.bf16.msra.mxu0 %v325
    %1350 = vmatprep.subr.bf16.mxu0 %v324
    %1351 = vmatpush2.bf16.msra.mxu0 %v323
    %1352 = vmatprep.subr.bf16.mxu0 %v322
    %1353 = vmatpush2.bf16.msra.mxu0 %v321
    %1354 = vmatprep.subr.bf16.mxu0 %v320
    %1355 = vmatpush2.bf16.msra.mxu0 %v319
    %1356 = vmatprep.mubr.bf16.mxu0 %v1323
    %1357 = vmatmul.mubr.bf16.gmra.mxu0 %v1322
    %v1358 = vpop.f32.mrf.mxu0
    %v1359 = vadd.f32 0.0, %v1358
    %v1360 = vpop.f32.mrf.mxu0
    %v1361 = vadd.f32 0.0, %v1360
    %v1362 = vpop.f32.mrf.mxu0
    %v1363 = vpop.f32.mrf.mxu0
    %1364 = vdwg.mxu0
    %v1365 = vmul.f32 %v1359, %v1359
    %v1366 = vsub.f32 %v1361, %v1365
    %v1367 = vmax.f32 %v1366, 0.0
    %v1368 = vadd.f32 %v1367, 1e-05
    %v1369 = vrsqrt.pop %v1368
    %v1370 = vlaneseq
    %v1371 = vshrl.u32 %v1370, 7
    %v1372 = vsub.s32 0, %v1371
    %v1373 = vrot.slane %v1318, %v1372
    %v1374 = vmul.f32 %v1369, %v1373
    %v1375 = vmul.f32 %v1311, %v1374
    %v1376 = vmul.f32 %v1359, %v1374
    %v1377 = vlaneseq
    %v1378 = vshrl.u32 %v1377, 7
    %v1379 = vsub.s32 0, %v1378
    %v1380 = vrot.slane %v1320, %v1379
    %v1381 = vsub.f32 %v1380, %v1376
    %v1382 = vadd.f32 %v1375, %v1381
    %v1383 = vmax.f32 %v1382, 0.0
    %s1384 = scalar_lea.vmem %s6, 64
    %v1385 = vld [vmem:[%s1384] sm:$0xf]
    %v1386 = vld [vmem:[%s1384 + $0x4] sm:$0xf]
    %v1387 = vld [vmem:[%s1384 + $0x8] sm:$0xf]
    %v1388 = vld [vmem:[%s1384 + $0xc] sm:$0xf]
    %v1389 = vld [vmem:[%s1384 + $0x10] sm:$0xf]
    %v1390 = vld [vmem:[%s1384 + $0x14] sm:$0xf]
    %v1391 = vld [vmem:[%s1384 + $0x18] sm:$0xf]
    %v1392 = vld [vmem:[%s1384 + $0x1c] sm:$0xf]
    %v1393 = vld [vmem:[%s1384 + $0x20] sm:$0xf]
    %v1394 = vld [vmem:[%s1384 + $0x24] sm:$0xf]
    %v1395 = vld [vmem:[%s1384 + $0x28] sm:$0xf]
    %v1396 = vld [vmem:[%s1384 + $0x2c] sm:$0xf]
    %v1397 = vld [vmem:[%s1384 + $0x30] sm:$0xf]
    %v1398 = vld [vmem:[%s1384 + $0x34] sm:$0xf]
    %v1399 = vld [vmem:[%s1384 + $0x38] sm:$0xf]
    %v1400 = vld [vmem:[%s1384 + $0x3c] sm:$0xf]
    %v1401 = vpack.c.bf16 %v1383, %v1383
    %v1418 = vunpack.c.l.b16 %v1385
    %v1419 = vunpack.c.l.b16 %v1386
    %v1420 = vunpack.c.l.b16 %v1387
    %v1421 = vunpack.c.l.b16 %v1388
    %v1422 = vunpack.c.l.b16 %v1389
    %v1423 = vunpack.c.l.b16 %v1390
    %v1424 = vunpack.c.l.b16 %v1391
    %v1425 = vunpack.c.l.b16 %v1392
    %v1426 = vunpack.c.l.b16 %v1393
    %v1427 = vunpack.c.l.b16 %v1394
    %v1428 = vunpack.c.l.b16 %v1395
    %v1429 = vunpack.c.l.b16 %v1396
    %v1430 = vunpack.c.l.b16 %v1397
    %v1431 = vunpack.c.l.b16 %v1398
    %v1432 = vunpack.c.l.b16 %v1399
    %v1433 = vunpack.c.l.b16 %v1400
    %v1434 = vpack.c.b16 %v1419, %v1418
    %v1435 = vpack.c.b16 %v1421, %v1420
    %v1436 = vpack.c.b16 %v1423, %v1422
    %v1437 = vpack.c.b16 %v1425, %v1424
    %v1438 = vpack.c.b16 %v1427, %v1426
    %v1439 = vpack.c.b16 %v1429, %v1428
    %v1440 = vpack.c.b16 %v1431, %v1430
    %v1441 = vpack.c.b16 %v1433, %v1432
    %1450 = vmatprep.subr.bf16.mxu0 0
    %1451 = vmatpush1.bf16.msra.mxu0 %v1441
    %1452 = vmatprep.subr.bf16.mxu0 0
    %1453 = vmatpush1.bf16.msra.mxu0 %v1440
    %1454 = vmatprep.subr.bf16.mxu0 0
    %1455 = vmatpush1.bf16.msra.mxu0 %v1439
    %1456 = vmatprep.subr.bf16.mxu0 0
    %1457 = vmatpush1.bf16.msra.mxu0 %v1438
    %1458 = vmatprep.subr.bf16.mxu0 0
    %1459 = vmatpush1.bf16.msra.mxu0 %v1437
    %1460 = vmatprep.subr.bf16.mxu0 0
    %1461 = vmatpush1.bf16.msra.mxu0 %v1436
    %1462 = vmatprep.subr.bf16.mxu0 0
    %1463 = vmatpush1.bf16.msra.mxu0 %v1435
    %1464 = vmatprep.subr.bf16.mxu0 0
    %1465 = vmatpush1.bf16.msra.mxu0 %v1434
    %1466 = vmatprep.subr.bf16.mxu0 0
    %1467 = vmatpush2.bf16.msra.mxu0 0
    %1468 = vmatprep.subr.bf16.mxu0 0
    %1469 = vmatpush2.bf16.msra.mxu0 0
    %1470 = vmatprep.subr.bf16.mxu0 0
    %1471 = vmatpush2.bf16.msra.mxu0 0
    %1472 = vmatprep.subr.bf16.mxu0 0
    %1473 = vmatpush2.bf16.msra.mxu0 0
    %1474 = vmatprep.subr.bf16.mxu0 0
    %1475 = vmatpush2.bf16.msra.mxu0 0
    %1476 = vmatprep.subr.bf16.mxu0 0
    %1477 = vmatpush2.bf16.msra.mxu0 0
    %1478 = vmatprep.subr.bf16.mxu0 0
    %1479 = vmatpush2.bf16.msra.mxu0 0
    %1480 = vmatprep.subr.bf16.mxu0 0
    %1481 = vmatpush2.bf16.msra.mxu0 0
    %1482 = vmatprep.mubr.bf16.mxu0 0
    %1483 = vmatmul.mubr.bf16.gmra.mxu0 %v1401
    %v1484 = vpop.f32.mrf.mxu0
    %v1485 = vadd.f32 0.0, %v1484
    %v1486 = vpop.f32.mrf.mxu0
    %v1487 = vpop.f32.mrf.mxu0
    %v1488 = vpop.f32.mrf.mxu0
    %1489 = vdwg.mxu0
    %v1490 = vld [vmem:[%s1317 + $0x1] sm:$0x1]
    %v1491 = vld [vmem:[%s1319 + $0x1] sm:$0x1]
    %v1492 = vmul.f32 %v1485, %v1485
    %v1493 = vpack.c.bf16 %v1485, %v1485
    %v1494 = vpack.c.bf16 %v1492, %v1492
    %1495 = vmatprep.subr.bf16.mxu0 %v318
    %1496 = vmatpush1.bf16.msra.mxu0 %v317
    %1497 = vmatprep.subr.bf16.mxu0 %v316
    %1498 = vmatpush1.bf16.msra.mxu0 %v315
    %1499 = vmatprep.subr.bf16.mxu0 %v314
    %1500 = vmatpush1.bf16.msra.mxu0 %v313
    %1501 = vmatprep.subr.bf16.mxu0 %v312
    %1502 = vmatpush1.bf16.msra.mxu0 %v311
    %1503 = vmatprep.subr.bf16.mxu0 %v310
    %1504 = vmatpush1.bf16.msra.mxu0 %v309
    %1505 = vmatprep.subr.bf16.mxu0 %v308
    %1506 = vmatpush1.bf16.msra.mxu0 %v307
    %1507 = vmatprep.subr.bf16.mxu0 %v306
    %1508 = vmatpush1.bf16.msra.mxu0 %v305
    %1509 = vmatprep.subr.bf16.mxu0 %v304
    %1510 = vmatpush1.bf16.msra.mxu0 %v303
    %1511 = vmatprep.subr.bf16.mxu0 %v334
    %1512 = vmatpush2.bf16.msra.mxu0 %v333
    %1513 = vmatprep.subr.bf16.mxu0 %v332
    %1514 = vmatpush2.bf16.msra.mxu0 %v331
    %1515 = vmatprep.subr.bf16.mxu0 %v330
    %1516 = vmatpush2.bf16.msra.mxu0 %v329
    %1517 = vmatprep.subr.bf16.mxu0 %v328
    %1518 = vmatpush2.bf16.msra.mxu0 %v327
    %1519 = vmatprep.subr.bf16.mxu0 %v326
    %1520 = vmatpush2.bf16.msra.mxu0 %v325
    %1521 = vmatprep.subr.bf16.mxu0 %v324
    %1522 = vmatpush2.bf16.msra.mxu0 %v323
    %1523 = vmatprep.subr.bf16.mxu0 %v322
    %1524 = vmatpush2.bf16.msra.mxu0 %v321
    %1525 = vmatprep.subr.bf16.mxu0 %v320
    %1526 = vmatpush2.bf16.msra.mxu0 %v319
    %1527 = vmatprep.mubr.bf16.mxu0 %v1494
    %1528 = vmatmul.mubr.bf16.gmra.mxu0 %v1493
    %v1529 = vpop.f32.mrf.mxu0
    %v1530 = vadd.f32 0.0, %v1529
    %v1531 = vpop.f32.mrf.mxu0
    %v1532 = vadd.f32 0.0, %v1531
    %v1533 = vpop.f32.mrf.mxu0
    %v1534 = vpop.f32.mrf.mxu0
    %1535 = vdwg.mxu0
    %v1536 = vmul.f32 %v1530, %v1530
    %v1537 = vsub.f32 %v1532, %v1536
    %v1538 = vmax.f32 %v1537, 0.0
    %v1539 = vadd.f32 %v1538, 1e-05
    %v1540 = vrsqrt.pop %v1539
    %v1541 = vlaneseq
    %v1542 = vshrl.u32 %v1541, 7
    %v1543 = vsub.s32 0, %v1542
    %v1544 = vrot.slane %v1490, %v1543
    %v1545 = vmul.f32 %v1540, %v1544
    %v1546 = vmul.f32 %v1485, %v1545
    %v1547 = vmul.f32 %v1530, %v1545
    %v1548 = vlaneseq
    %v1549 = vshrl.u32 %v1548, 7
    %v1550 = vsub.s32 0, %v1549
    %v1551 = vrot.slane %v1491, %v1550
    %v1552 = vsub.f32 %v1551, %v1547
    %v1553 = vadd.f32 %v1546, %v1552
    %v1554 = vmax.f32 %v1553, 0.0
    %s1555 = scalar_lea.vmem %s7, 64
    %v1556 = vld [vmem:[%s1555] sm:$0xf]
    %v1557 = vld [vmem:[%s1555 + $0x4] sm:$0xf]
    %v1558 = vld [vmem:[%s1555 + $0x8] sm:$0xf]
    %v1559 = vld [vmem:[%s1555 + $0xc] sm:$0xf]
    %v1560 = vld [vmem:[%s1555 + $0x10] sm:$0xf]
    %v1561 = vld [vmem:[%s1555 + $0x14] sm:$0xf]
    %v1562 = vld [vmem:[%s1555 + $0x18] sm:$0xf]
    %v1563 = vld [vmem:[%s1555 + $0x1c] sm:$0xf]
    %v1564 = vld [vmem:[%s1555 + $0x20] sm:$0xf]
    %v1565 = vld [vmem:[%s1555 + $0x24] sm:$0xf]
    %v1566 = vld [vmem:[%s1555 + $0x28] sm:$0xf]
    %v1567 = vld [vmem:[%s1555 + $0x2c] sm:$0xf]
    %v1568 = vld [vmem:[%s1555 + $0x30] sm:$0xf]
    %v1569 = vld [vmem:[%s1555 + $0x34] sm:$0xf]
    %v1570 = vld [vmem:[%s1555 + $0x38] sm:$0xf]
    %v1571 = vld [vmem:[%s1555 + $0x3c] sm:$0xf]
    %v1572 = vpack.c.bf16 %v1554, %v1554
    %v1589 = vunpack.c.l.b16 %v1556
    %v1590 = vunpack.c.l.b16 %v1557
    %v1591 = vunpack.c.l.b16 %v1558
    %v1592 = vunpack.c.l.b16 %v1559
    %v1593 = vunpack.c.l.b16 %v1560
    %v1594 = vunpack.c.l.b16 %v1561
    %v1595 = vunpack.c.l.b16 %v1562
    %v1596 = vunpack.c.l.b16 %v1563
    %v1597 = vunpack.c.l.b16 %v1564
    %v1598 = vunpack.c.l.b16 %v1565
    %v1599 = vunpack.c.l.b16 %v1566
    %v1600 = vunpack.c.l.b16 %v1567
    %v1601 = vunpack.c.l.b16 %v1568
    %v1602 = vunpack.c.l.b16 %v1569
    %v1603 = vunpack.c.l.b16 %v1570
    %v1604 = vunpack.c.l.b16 %v1571
    %v1605 = vpack.c.b16 %v1590, %v1589
    %v1606 = vpack.c.b16 %v1592, %v1591
    %v1607 = vpack.c.b16 %v1594, %v1593
    %v1608 = vpack.c.b16 %v1596, %v1595
    %v1609 = vpack.c.b16 %v1598, %v1597
    %v1610 = vpack.c.b16 %v1600, %v1599
    %v1611 = vpack.c.b16 %v1602, %v1601
    %v1612 = vpack.c.b16 %v1604, %v1603
    %1621 = vmatprep.subr.bf16.mxu0 0
    %1622 = vmatpush1.bf16.msra.mxu0 %v1612
    %1623 = vmatprep.subr.bf16.mxu0 0
    %1624 = vmatpush1.bf16.msra.mxu0 %v1611
    %1625 = vmatprep.subr.bf16.mxu0 0
    %1626 = vmatpush1.bf16.msra.mxu0 %v1610
    %1627 = vmatprep.subr.bf16.mxu0 0
    %1628 = vmatpush1.bf16.msra.mxu0 %v1609
    %1629 = vmatprep.subr.bf16.mxu0 0
    %1630 = vmatpush1.bf16.msra.mxu0 %v1608
    %1631 = vmatprep.subr.bf16.mxu0 0
    %1632 = vmatpush1.bf16.msra.mxu0 %v1607
    %1633 = vmatprep.subr.bf16.mxu0 0
    %1634 = vmatpush1.bf16.msra.mxu0 %v1606
    %1635 = vmatprep.subr.bf16.mxu0 0
    %1636 = vmatpush1.bf16.msra.mxu0 %v1605
    %1637 = vmatprep.subr.bf16.mxu0 0
    %1638 = vmatpush2.bf16.msra.mxu0 0
    %1639 = vmatprep.subr.bf16.mxu0 0
    %1640 = vmatpush2.bf16.msra.mxu0 0
    %1641 = vmatprep.subr.bf16.mxu0 0
    %1642 = vmatpush2.bf16.msra.mxu0 0
    %1643 = vmatprep.subr.bf16.mxu0 0
    %1644 = vmatpush2.bf16.msra.mxu0 0
    %1645 = vmatprep.subr.bf16.mxu0 0
    %1646 = vmatpush2.bf16.msra.mxu0 0
    %1647 = vmatprep.subr.bf16.mxu0 0
    %1648 = vmatpush2.bf16.msra.mxu0 0
    %1649 = vmatprep.subr.bf16.mxu0 0
    %1650 = vmatpush2.bf16.msra.mxu0 0
    %1651 = vmatprep.subr.bf16.mxu0 0
    %1652 = vmatpush2.bf16.msra.mxu0 0
    %1653 = vmatprep.mubr.bf16.mxu0 0
    %1654 = vmatmul.mubr.bf16.gmra.mxu0 %v1572
    %v1655 = vpop.f32.mrf.mxu0
    %v1656 = vadd.f32 %v1313, %v1655
    %v1657 = vpop.f32.mrf.mxu0
    %v1658 = vpop.f32.mrf.mxu0
    %v1659 = vpop.f32.mrf.mxu0
    %1660 = vdwg.mxu0
    %v1661 = vld [vmem:[%s8 + $0x1] sm:$0x1]
    %v1662 = vlaneseq
    %v1663 = vshrl.u32 %v1662, 7
    %v1664 = vsub.s32 0, %v1663
    %v1665 = vrot.slane %v1661, %v1664
    %v1666 = vadd.f32 %v1656, %v1665
    %v1667 = vld [vmem:[%s1317 + $0x2] sm:$0x1]
    %v1668 = vld [vmem:[%s1319 + $0x2] sm:$0x1]
    %v1669 = vmul.f32 %v1666, %v1666
    %v1670 = vpack.c.bf16 %v1666, %v1666
    %v1671 = vpack.c.bf16 %v1669, %v1669
    %1672 = vmatprep.subr.bf16.mxu0 %v318
    %1673 = vmatpush1.bf16.msra.mxu0 %v317
    %1674 = vmatprep.subr.bf16.mxu0 %v316
    %1675 = vmatpush1.bf16.msra.mxu0 %v315
    %1676 = vmatprep.subr.bf16.mxu0 %v314
    %1677 = vmatpush1.bf16.msra.mxu0 %v313
    %1678 = vmatprep.subr.bf16.mxu0 %v312
    %1679 = vmatpush1.bf16.msra.mxu0 %v311
    %1680 = vmatprep.subr.bf16.mxu0 %v310
    %1681 = vmatpush1.bf16.msra.mxu0 %v309
    %1682 = vmatprep.subr.bf16.mxu0 %v308
    %1683 = vmatpush1.bf16.msra.mxu0 %v307
    %1684 = vmatprep.subr.bf16.mxu0 %v306
    %1685 = vmatpush1.bf16.msra.mxu0 %v305
    %1686 = vmatprep.subr.bf16.mxu0 %v304
    %1687 = vmatpush1.bf16.msra.mxu0 %v303
    %1688 = vmatprep.subr.bf16.mxu0 %v334
    %1689 = vmatpush2.bf16.msra.mxu0 %v333
    %1690 = vmatprep.subr.bf16.mxu0 %v332
    %1691 = vmatpush2.bf16.msra.mxu0 %v331
    %1692 = vmatprep.subr.bf16.mxu0 %v330
    %1693 = vmatpush2.bf16.msra.mxu0 %v329
    %1694 = vmatprep.subr.bf16.mxu0 %v328
    %1695 = vmatpush2.bf16.msra.mxu0 %v327
    %1696 = vmatprep.subr.bf16.mxu0 %v326
    %1697 = vmatpush2.bf16.msra.mxu0 %v325
    %1698 = vmatprep.subr.bf16.mxu0 %v324
    %1699 = vmatpush2.bf16.msra.mxu0 %v323
    %1700 = vmatprep.subr.bf16.mxu0 %v322
    %1701 = vmatpush2.bf16.msra.mxu0 %v321
    %1702 = vmatprep.subr.bf16.mxu0 %v320
    %1703 = vmatpush2.bf16.msra.mxu0 %v319
    %1704 = vmatprep.mubr.bf16.mxu0 %v1671
    %1705 = vmatmul.mubr.bf16.gmra.mxu0 %v1670
    %v1706 = vpop.f32.mrf.mxu0
    %v1707 = vadd.f32 0.0, %v1706
    %v1708 = vpop.f32.mrf.mxu0
    %v1709 = vadd.f32 0.0, %v1708
    %v1710 = vpop.f32.mrf.mxu0
    %v1711 = vpop.f32.mrf.mxu0
    %1712 = vdwg.mxu0
    %v1713 = vmul.f32 %v1707, %v1707
    %v1714 = vsub.f32 %v1709, %v1713
    %v1715 = vmax.f32 %v1714, 0.0
    %v1716 = vadd.f32 %v1715, 1e-05
    %v1717 = vrsqrt.pop %v1716
    %v1718 = vlaneseq
    %v1719 = vshrl.u32 %v1718, 7
    %v1720 = vsub.s32 0, %v1719
    %v1721 = vrot.slane %v1667, %v1720
    %v1722 = vmul.f32 %v1717, %v1721
    %v1723 = vmul.f32 %v1666, %v1722
    %v1724 = vmul.f32 %v1707, %v1722
    %v1725 = vlaneseq
    %v1726 = vshrl.u32 %v1725, 7
    %v1727 = vsub.s32 0, %v1726
    %v1728 = vrot.slane %v1668, %v1727
    %v1729 = vsub.f32 %v1728, %v1724
    %v1730 = vadd.f32 %v1723, %v1729
    %v1731 = vmax.f32 %v1730, 0.0
    %v1732 = vadd.f32 %v495, %v1731
    %v1733 = vld [vmem:[%s3 + $0x2] sm:$0x1]
    %v1734 = vld [vmem:[%s4 + $0x2] sm:$0x1]
    %v1735 = vmul.f32 %v1732, %v1732
    %v1736 = vpack.c.bf16 %v1732, %v1732
    %v1737 = vpack.c.bf16 %v1735, %v1735
    %1738 = vmatprep.subr.bf16.mxu0 %v318
    %1739 = vmatpush1.bf16.msra.mxu0 %v317
    %1740 = vmatprep.subr.bf16.mxu0 %v316
    %1741 = vmatpush1.bf16.msra.mxu0 %v315
    %1742 = vmatprep.subr.bf16.mxu0 %v314
    %1743 = vmatpush1.bf16.msra.mxu0 %v313
    %1744 = vmatprep.subr.bf16.mxu0 %v312
    %1745 = vmatpush1.bf16.msra.mxu0 %v311
    %1746 = vmatprep.subr.bf16.mxu0 %v310
    %1747 = vmatpush1.bf16.msra.mxu0 %v309
    %1748 = vmatprep.subr.bf16.mxu0 %v308
    %1749 = vmatpush1.bf16.msra.mxu0 %v307
    %1750 = vmatprep.subr.bf16.mxu0 %v306
    %1751 = vmatpush1.bf16.msra.mxu0 %v305
    %1752 = vmatprep.subr.bf16.mxu0 %v304
    %1753 = vmatpush1.bf16.msra.mxu0 %v303
    %1754 = vmatprep.subr.bf16.mxu0 %v334
    %1755 = vmatpush2.bf16.msra.mxu0 %v333
    %1756 = vmatprep.subr.bf16.mxu0 %v332
    %1757 = vmatpush2.bf16.msra.mxu0 %v331
    %1758 = vmatprep.subr.bf16.mxu0 %v330
    %1759 = vmatpush2.bf16.msra.mxu0 %v329
    %1760 = vmatprep.subr.bf16.mxu0 %v328
    %1761 = vmatpush2.bf16.msra.mxu0 %v327
    %1762 = vmatprep.subr.bf16.mxu0 %v326
    %1763 = vmatpush2.bf16.msra.mxu0 %v325
    %1764 = vmatprep.subr.bf16.mxu0 %v324
    %1765 = vmatpush2.bf16.msra.mxu0 %v323
    %1766 = vmatprep.subr.bf16.mxu0 %v322
    %1767 = vmatpush2.bf16.msra.mxu0 %v321
    %1768 = vmatprep.subr.bf16.mxu0 %v320
    %1769 = vmatpush2.bf16.msra.mxu0 %v319
    %1770 = vmatprep.mubr.bf16.mxu0 %v1737
    %1771 = vmatmul.mubr.bf16.gmra.mxu0 %v1736
    %v1772 = vpop.f32.mrf.mxu0
    %v1773 = vadd.f32 0.0, %v1772
    %v1774 = vpop.f32.mrf.mxu0
    %v1775 = vadd.f32 0.0, %v1774
    %v1776 = vpop.f32.mrf.mxu0
    %v1777 = vpop.f32.mrf.mxu0
    %1778 = vdwg.mxu0
    %v1779 = vmul.f32 %v1773, %v1773
    %v1780 = vsub.f32 %v1775, %v1779
    %v1781 = vmax.f32 %v1780, 0.0
    %v1782 = vadd.f32 %v1781, 1e-05
    %v1783 = vrsqrt.pop %v1782
    %v1784 = vlaneseq
    %v1785 = vshrl.u32 %v1784, 7
    %v1786 = vsub.s32 0, %v1785
    %v1787 = vrot.slane %v1733, %v1786
    %v1788 = vmul.f32 %v1783, %v1787
    %v1789 = vmul.f32 %v1732, %v1788
    %v1790 = vmul.f32 %v1773, %v1788
    %v1791 = vlaneseq
    %v1792 = vshrl.u32 %v1791, 7
    %v1793 = vsub.s32 0, %v1792
    %v1794 = vrot.slane %v1734, %v1793
    %v1795 = vsub.f32 %v1794, %v1790
    %v1796 = vadd.f32 %v1789, %v1795
    %v1797 = vmax.f32 %v1796, 0.0
    %s1798 = scalar_lea.vmem %s5, 256
    %v1799 = vld [vmem:[%s1798] sm:$0xff]
    %v1800 = vld [vmem:[%s1798 + $0x8] sm:$0xff]
    %v1801 = vld [vmem:[%s1798 + $0x10] sm:$0xff]
    %v1802 = vld [vmem:[%s1798 + $0x18] sm:$0xff]
    %v1803 = vld [vmem:[%s1798 + $0x20] sm:$0xff]
    %v1804 = vld [vmem:[%s1798 + $0x28] sm:$0xff]
    %v1805 = vld [vmem:[%s1798 + $0x30] sm:$0xff]
    %v1806 = vld [vmem:[%s1798 + $0x38] sm:$0xff]
    %v1807 = vld [vmem:[%s1798 + $0x40] sm:$0xff]
    %v1808 = vld [vmem:[%s1798 + $0x48] sm:$0xff]
    %v1809 = vld [vmem:[%s1798 + $0x50] sm:$0xff]
    %v1810 = vld [vmem:[%s1798 + $0x58] sm:$0xff]
    %v1811 = vld [vmem:[%s1798 + $0x60] sm:$0xff]
    %v1812 = vld [vmem:[%s1798 + $0x68] sm:$0xff]
    %v1813 = vld [vmem:[%s1798 + $0x70] sm:$0xff]
    %v1814 = vld [vmem:[%s1798 + $0x78] sm:$0xff]
    %v1815 = vpack.c.bf16 %v1797, %v1797
    %v1832 = vunpack.c.l.b16 %v1799
    %v1833 = vunpack.c.h.b16 %v1799
    %v1834 = vunpack.c.l.b16 %v1800
    %v1835 = vunpack.c.h.b16 %v1800
    %v1836 = vunpack.c.l.b16 %v1801
    %v1837 = vunpack.c.h.b16 %v1801
    %v1838 = vunpack.c.l.b16 %v1802
    %v1839 = vunpack.c.h.b16 %v1802
    %v1840 = vunpack.c.l.b16 %v1803
    %v1841 = vunpack.c.h.b16 %v1803
    %v1842 = vunpack.c.l.b16 %v1804
    %v1843 = vunpack.c.h.b16 %v1804
    %v1844 = vunpack.c.l.b16 %v1805
    %v1845 = vunpack.c.h.b16 %v1805
    %v1846 = vunpack.c.l.b16 %v1806
    %v1847 = vunpack.c.h.b16 %v1806
    %v1848 = vunpack.c.l.b16 %v1807
    %v1849 = vunpack.c.h.b16 %v1807
    %v1850 = vunpack.c.l.b16 %v1808
    %v1851 = vunpack.c.h.b16 %v1808
    %v1852 = vunpack.c.l.b16 %v1809
    %v1853 = vunpack.c.h.b16 %v1809
    %v1854 = vunpack.c.l.b16 %v1810
    %v1855 = vunpack.c.h.b16 %v1810
    %v1856 = vunpack.c.l.b16 %v1811
    %v1857 = vunpack.c.h.b16 %v1811
    %v1858 = vunpack.c.l.b16 %v1812
    %v1859 = vunpack.c.h.b16 %v1812
    %v1860 = vunpack.c.l.b16 %v1813
    %v1861 = vunpack.c.h.b16 %v1813
    %v1862 = vunpack.c.l.b16 %v1814
    %v1863 = vunpack.c.h.b16 %v1814
    %v1864 = vpack.c.b16 %v1834, %v1832
    %v1865 = vpack.c.b16 %v1835, %v1833
    %v1866 = vpack.c.b16 %v1838, %v1836
    %v1867 = vpack.c.b16 %v1839, %v1837
    %v1868 = vpack.c.b16 %v1842, %v1840
    %v1869 = vpack.c.b16 %v1843, %v1841
    %v1870 = vpack.c.b16 %v1846, %v1844
    %v1871 = vpack.c.b16 %v1847, %v1845
    %v1872 = vpack.c.b16 %v1850, %v1848
    %v1873 = vpack.c.b16 %v1851, %v1849
    %v1874 = vpack.c.b16 %v1854, %v1852
    %v1875 = vpack.c.b16 %v1855, %v1853
    %v1876 = vpack.c.b16 %v1858, %v1856
    %v1877 = vpack.c.b16 %v1859, %v1857
    %v1878 = vpack.c.b16 %v1862, %v1860
    %v1879 = vpack.c.b16 %v1863, %v1861
    %1896 = vmatprep.subr.bf16.mxu0 %v1879
    %1897 = vmatpush1.bf16.msra.mxu0 %v1878
    %1898 = vmatprep.subr.bf16.mxu0 %v1877
    %1899 = vmatpush1.bf16.msra.mxu0 %v1876
    %1900 = vmatprep.subr.bf16.mxu0 %v1875
    %1901 = vmatpush1.bf16.msra.mxu0 %v1874
    %1902 = vmatprep.subr.bf16.mxu0 %v1873
    %1903 = vmatpush1.bf16.msra.mxu0 %v1872
    %1904 = vmatprep.subr.bf16.mxu0 %v1871
    %1905 = vmatpush1.bf16.msra.mxu0 %v1870
    %1906 = vmatprep.subr.bf16.mxu0 %v1869
    %1907 = vmatpush1.bf16.msra.mxu0 %v1868
    %1908 = vmatprep.subr.bf16.mxu0 %v1867
    %1909 = vmatpush1.bf16.msra.mxu0 %v1866
    %1910 = vmatprep.subr.bf16.mxu0 %v1865
    %1911 = vmatpush1.bf16.msra.mxu0 %v1864
    %1912 = vmatprep.subr.bf16.mxu0 0
    %1913 = vmatpush2.bf16.msra.mxu0 0
    %1914 = vmatprep.subr.bf16.mxu0 0
    %1915 = vmatpush2.bf16.msra.mxu0 0
    %1916 = vmatprep.subr.bf16.mxu0 0
    %1917 = vmatpush2.bf16.msra.mxu0 0
    %1918 = vmatprep.subr.bf16.mxu0 0
    %1919 = vmatpush2.bf16.msra.mxu0 0
    %1920 = vmatprep.subr.bf16.mxu0 0
    %1921 = vmatpush2.bf16.msra.mxu0 0
    %1922 = vmatprep.subr.bf16.mxu0 0
    %1923 = vmatpush2.bf16.msra.mxu0 0
    %1924 = vmatprep.subr.bf16.mxu0 0
    %1925 = vmatpush2.bf16.msra.mxu0 0
    %1926 = vmatprep.subr.bf16.mxu0 0
    %1927 = vmatpush2.bf16.msra.mxu0 0
    %1928 = vmatprep.mubr.bf16.mxu0 0
    %1929 = vmatmul.mubr.bf16.gmra.mxu0 %v1815
    %v1930 = vpop.f32.mrf.mxu0
    %v1931 = vadd.f32 0.0, %v1930
    %v1932 = vpop.f32.mrf.mxu0
    %v1933 = vadd.f32 0.0, %v1932
    %v1934 = vpop.f32.mrf.mxu0
    %v1935 = vpop.f32.mrf.mxu0
    %1936 = vdwg.mxu0
    %s1937 = scalar_lea.vmem %s9, 8
    %v1938 = vld [vmem:[%s1937] sm:$0x1]
    %s1939 = scalar_lea.vmem %s10, 8
    %v1940 = vld [vmem:[%s1939] sm:$0x1]
    %v1941 = vmul.f32 %v1931, %v1931
    %v1942 = vpack.c.bf16 %v1931, %v1931
    %v1943 = vpack.c.bf16 %v1941, %v1941
    %1944 = vmatprep.subr.bf16.mxu0 %v318
    %1945 = vmatpush1.bf16.msra.mxu0 %v317
    %1946 = vmatprep.subr.bf16.mxu0 %v316
    %1947 = vmatpush1.bf16.msra.mxu0 %v315
    %1948 = vmatprep.subr.bf16.mxu0 %v314
    %1949 = vmatpush1.bf16.msra.mxu0 %v313
    %1950 = vmatprep.subr.bf16.mxu0 %v312
    %1951 = vmatpush1.bf16.msra.mxu0 %v311
    %1952 = vmatprep.subr.bf16.mxu0 %v310
    %1953 = vmatpush1.bf16.msra.mxu0 %v309
    %1954 = vmatprep.subr.bf16.mxu0 %v308
    %1955 = vmatpush1.bf16.msra.mxu0 %v307
    %1956 = vmatprep.subr.bf16.mxu0 %v306
    %1957 = vmatpush1.bf16.msra.mxu0 %v305
    %1958 = vmatprep.subr.bf16.mxu0 %v304
    %1959 = vmatpush1.bf16.msra.mxu0 %v303
    %1960 = vmatprep.subr.bf16.mxu0 %v334
    %1961 = vmatpush2.bf16.msra.mxu0 %v333
    %1962 = vmatprep.subr.bf16.mxu0 %v332
    %1963 = vmatpush2.bf16.msra.mxu0 %v331
    %1964 = vmatprep.subr.bf16.mxu0 %v330
    %1965 = vmatpush2.bf16.msra.mxu0 %v329
    %1966 = vmatprep.subr.bf16.mxu0 %v328
    %1967 = vmatpush2.bf16.msra.mxu0 %v327
    %1968 = vmatprep.subr.bf16.mxu0 %v326
    %1969 = vmatpush2.bf16.msra.mxu0 %v325
    %1970 = vmatprep.subr.bf16.mxu0 %v324
    %1971 = vmatpush2.bf16.msra.mxu0 %v323
    %1972 = vmatprep.subr.bf16.mxu0 %v322
    %1973 = vmatpush2.bf16.msra.mxu0 %v321
    %1974 = vmatprep.subr.bf16.mxu0 %v320
    %1975 = vmatpush2.bf16.msra.mxu0 %v319
    %1976 = vmatprep.mubr.bf16.mxu0 %v1943
    %1977 = vmatmul.mubr.bf16.gmra.mxu0 %v1942
    %v1978 = vpop.f32.mrf.mxu0
    %v1979 = vadd.f32 0.0, %v1978
    %v1980 = vpop.f32.mrf.mxu0
    %v1981 = vadd.f32 0.0, %v1980
    %v1982 = vpop.f32.mrf.mxu0
    %v1983 = vpop.f32.mrf.mxu0
    %1984 = vdwg.mxu0
    %v1985 = vmul.f32 %v1979, %v1979
    %v1986 = vsub.f32 %v1981, %v1985
    %v1987 = vmax.f32 %v1986, 0.0
    %v1988 = vadd.f32 %v1987, 1e-05
    %v1989 = vrsqrt.pop %v1988
    %v1990 = vlaneseq
    %v1991 = vshrl.u32 %v1990, 7
    %v1992 = vsub.s32 0, %v1991
    %v1993 = vrot.slane %v1938, %v1992
    %v1994 = vmul.f32 %v1989, %v1993
    %v1995 = vmul.f32 %v1931, %v1994
    %v1996 = vmul.f32 %v1979, %v1994
    %v1997 = vlaneseq
    %v1998 = vshrl.u32 %v1997, 7
    %v1999 = vsub.s32 0, %v1998
    %v2000 = vrot.slane %v1940, %v1999
    %v2001 = vsub.f32 %v2000, %v1996
    %v2002 = vadd.f32 %v1995, %v2001
    %v2003 = vmax.f32 %v2002, 0.0
    %s2004 = scalar_lea.vmem %s6, 128
    %v2005 = vld [vmem:[%s2004] sm:$0xf]
    %v2006 = vld [vmem:[%s2004 + $0x4] sm:$0xf]
    %v2007 = vld [vmem:[%s2004 + $0x8] sm:$0xf]
    %v2008 = vld [vmem:[%s2004 + $0xc] sm:$0xf]
    %v2009 = vld [vmem:[%s2004 + $0x10] sm:$0xf]
    %v2010 = vld [vmem:[%s2004 + $0x14] sm:$0xf]
    %v2011 = vld [vmem:[%s2004 + $0x18] sm:$0xf]
    %v2012 = vld [vmem:[%s2004 + $0x1c] sm:$0xf]
    %v2013 = vld [vmem:[%s2004 + $0x20] sm:$0xf]
    %v2014 = vld [vmem:[%s2004 + $0x24] sm:$0xf]
    %v2015 = vld [vmem:[%s2004 + $0x28] sm:$0xf]
    %v2016 = vld [vmem:[%s2004 + $0x2c] sm:$0xf]
    %v2017 = vld [vmem:[%s2004 + $0x30] sm:$0xf]
    %v2018 = vld [vmem:[%s2004 + $0x34] sm:$0xf]
    %v2019 = vld [vmem:[%s2004 + $0x38] sm:$0xf]
    %v2020 = vld [vmem:[%s2004 + $0x3c] sm:$0xf]
    %v2021 = vpack.c.bf16 %v2003, %v2003
    %v2038 = vunpack.c.l.b16 %v2005
    %v2039 = vunpack.c.l.b16 %v2006
    %v2040 = vunpack.c.l.b16 %v2007
    %v2041 = vunpack.c.l.b16 %v2008
    %v2042 = vunpack.c.l.b16 %v2009
    %v2043 = vunpack.c.l.b16 %v2010
    %v2044 = vunpack.c.l.b16 %v2011
    %v2045 = vunpack.c.l.b16 %v2012
    %v2046 = vunpack.c.l.b16 %v2013
    %v2047 = vunpack.c.l.b16 %v2014
    %v2048 = vunpack.c.l.b16 %v2015
    %v2049 = vunpack.c.l.b16 %v2016
    %v2050 = vunpack.c.l.b16 %v2017
    %v2051 = vunpack.c.l.b16 %v2018
    %v2052 = vunpack.c.l.b16 %v2019
    %v2053 = vunpack.c.l.b16 %v2020
    %v2054 = vpack.c.b16 %v2039, %v2038
    %v2055 = vpack.c.b16 %v2041, %v2040
    %v2056 = vpack.c.b16 %v2043, %v2042
    %v2057 = vpack.c.b16 %v2045, %v2044
    %v2058 = vpack.c.b16 %v2047, %v2046
    %v2059 = vpack.c.b16 %v2049, %v2048
    %v2060 = vpack.c.b16 %v2051, %v2050
    %v2061 = vpack.c.b16 %v2053, %v2052
    %2070 = vmatprep.subr.bf16.mxu0 0
    %2071 = vmatpush1.bf16.msra.mxu0 %v2061
    %2072 = vmatprep.subr.bf16.mxu0 0
    %2073 = vmatpush1.bf16.msra.mxu0 %v2060
    %2074 = vmatprep.subr.bf16.mxu0 0
    %2075 = vmatpush1.bf16.msra.mxu0 %v2059
    %2076 = vmatprep.subr.bf16.mxu0 0
    %2077 = vmatpush1.bf16.msra.mxu0 %v2058
    %2078 = vmatprep.subr.bf16.mxu0 0
    %2079 = vmatpush1.bf16.msra.mxu0 %v2057
    %2080 = vmatprep.subr.bf16.mxu0 0
    %2081 = vmatpush1.bf16.msra.mxu0 %v2056
    %2082 = vmatprep.subr.bf16.mxu0 0
    %2083 = vmatpush1.bf16.msra.mxu0 %v2055
    %2084 = vmatprep.subr.bf16.mxu0 0
    %2085 = vmatpush1.bf16.msra.mxu0 %v2054
    %2086 = vmatprep.subr.bf16.mxu0 0
    %2087 = vmatpush2.bf16.msra.mxu0 0
    %2088 = vmatprep.subr.bf16.mxu0 0
    %2089 = vmatpush2.bf16.msra.mxu0 0
    %2090 = vmatprep.subr.bf16.mxu0 0
    %2091 = vmatpush2.bf16.msra.mxu0 0
    %2092 = vmatprep.subr.bf16.mxu0 0
    %2093 = vmatpush2.bf16.msra.mxu0 0
    %2094 = vmatprep.subr.bf16.mxu0 0
    %2095 = vmatpush2.bf16.msra.mxu0 0
    %2096 = vmatprep.subr.bf16.mxu0 0
    %2097 = vmatpush2.bf16.msra.mxu0 0
    %2098 = vmatprep.subr.bf16.mxu0 0
    %2099 = vmatpush2.bf16.msra.mxu0 0
    %2100 = vmatprep.subr.bf16.mxu0 0
    %2101 = vmatpush2.bf16.msra.mxu0 0
    %2102 = vmatprep.mubr.bf16.mxu0 0
    %2103 = vmatmul.mubr.bf16.gmra.mxu0 %v2021
    %v2104 = vpop.f32.mrf.mxu0
    %v2105 = vadd.f32 0.0, %v2104
    %v2106 = vpop.f32.mrf.mxu0
    %v2107 = vpop.f32.mrf.mxu0
    %v2108 = vpop.f32.mrf.mxu0
    %2109 = vdwg.mxu0
    %v2110 = vld [vmem:[%s1937 + $0x1] sm:$0x1]
    %v2111 = vld [vmem:[%s1939 + $0x1] sm:$0x1]
    %v2112 = vmul.f32 %v2105, %v2105
    %v2113 = vpack.c.bf16 %v2105, %v2105
    %v2114 = vpack.c.bf16 %v2112, %v2112
    %2115 = vmatprep.subr.bf16.mxu0 %v318
    %2116 = vmatpush1.bf16.msra.mxu0 %v317
    %2117 = vmatprep.subr.bf16.mxu0 %v316
    %2118 = vmatpush1.bf16.msra.mxu0 %v315
    %2119 = vmatprep.subr.bf16.mxu0 %v314
    %2120 = vmatpush1.bf16.msra.mxu0 %v313
    %2121 = vmatprep.subr.bf16.mxu0 %v312
    %2122 = vmatpush1.bf16.msra.mxu0 %v311
    %2123 = vmatprep.subr.bf16.mxu0 %v310
    %2124 = vmatpush1.bf16.msra.mxu0 %v309
    %2125 = vmatprep.subr.bf16.mxu0 %v308
    %2126 = vmatpush1.bf16.msra.mxu0 %v307
    %2127 = vmatprep.subr.bf16.mxu0 %v306
    %2128 = vmatpush1.bf16.msra.mxu0 %v305
    %2129 = vmatprep.subr.bf16.mxu0 %v304
    %2130 = vmatpush1.bf16.msra.mxu0 %v303
    %2131 = vmatprep.subr.bf16.mxu0 %v334
    %2132 = vmatpush2.bf16.msra.mxu0 %v333
    %2133 = vmatprep.subr.bf16.mxu0 %v332
    %2134 = vmatpush2.bf16.msra.mxu0 %v331
    %2135 = vmatprep.subr.bf16.mxu0 %v330
    %2136 = vmatpush2.bf16.msra.mxu0 %v329
    %2137 = vmatprep.subr.bf16.mxu0 %v328
    %2138 = vmatpush2.bf16.msra.mxu0 %v327
    %2139 = vmatprep.subr.bf16.mxu0 %v326
    %2140 = vmatpush2.bf16.msra.mxu0 %v325
    %2141 = vmatprep.subr.bf16.mxu0 %v324
    %2142 = vmatpush2.bf16.msra.mxu0 %v323
    %2143 = vmatprep.subr.bf16.mxu0 %v322
    %2144 = vmatpush2.bf16.msra.mxu0 %v321
    %2145 = vmatprep.subr.bf16.mxu0 %v320
    %2146 = vmatpush2.bf16.msra.mxu0 %v319
    %2147 = vmatprep.mubr.bf16.mxu0 %v2114
    %2148 = vmatmul.mubr.bf16.gmra.mxu0 %v2113
    %v2149 = vpop.f32.mrf.mxu0
    %v2150 = vadd.f32 0.0, %v2149
    %v2151 = vpop.f32.mrf.mxu0
    %v2152 = vadd.f32 0.0, %v2151
    %v2153 = vpop.f32.mrf.mxu0
    %v2154 = vpop.f32.mrf.mxu0
    %2155 = vdwg.mxu0
    %v2156 = vmul.f32 %v2150, %v2150
    %v2157 = vsub.f32 %v2152, %v2156
    %v2158 = vmax.f32 %v2157, 0.0
    %v2159 = vadd.f32 %v2158, 1e-05
    %v2160 = vrsqrt.pop %v2159
    %v2161 = vlaneseq
    %v2162 = vshrl.u32 %v2161, 7
    %v2163 = vsub.s32 0, %v2162
    %v2164 = vrot.slane %v2110, %v2163
    %v2165 = vmul.f32 %v2160, %v2164
    %v2166 = vmul.f32 %v2105, %v2165
    %v2167 = vmul.f32 %v2150, %v2165
    %v2168 = vlaneseq
    %v2169 = vshrl.u32 %v2168, 7
    %v2170 = vsub.s32 0, %v2169
    %v2171 = vrot.slane %v2111, %v2170
    %v2172 = vsub.f32 %v2171, %v2167
    %v2173 = vadd.f32 %v2166, %v2172
    %v2174 = vmax.f32 %v2173, 0.0
    %s2175 = scalar_lea.vmem %s7, 128
    %v2176 = vld [vmem:[%s2175] sm:$0xf]
    %v2177 = vld [vmem:[%s2175 + $0x4] sm:$0xf]
    %v2178 = vld [vmem:[%s2175 + $0x8] sm:$0xf]
    %v2179 = vld [vmem:[%s2175 + $0xc] sm:$0xf]
    %v2180 = vld [vmem:[%s2175 + $0x10] sm:$0xf]
    %v2181 = vld [vmem:[%s2175 + $0x14] sm:$0xf]
    %v2182 = vld [vmem:[%s2175 + $0x18] sm:$0xf]
    %v2183 = vld [vmem:[%s2175 + $0x1c] sm:$0xf]
    %v2184 = vld [vmem:[%s2175 + $0x20] sm:$0xf]
    %v2185 = vld [vmem:[%s2175 + $0x24] sm:$0xf]
    %v2186 = vld [vmem:[%s2175 + $0x28] sm:$0xf]
    %v2187 = vld [vmem:[%s2175 + $0x2c] sm:$0xf]
    %v2188 = vld [vmem:[%s2175 + $0x30] sm:$0xf]
    %v2189 = vld [vmem:[%s2175 + $0x34] sm:$0xf]
    %v2190 = vld [vmem:[%s2175 + $0x38] sm:$0xf]
    %v2191 = vld [vmem:[%s2175 + $0x3c] sm:$0xf]
    %v2192 = vpack.c.bf16 %v2174, %v2174
    %v2209 = vunpack.c.l.b16 %v2176
    %v2210 = vunpack.c.l.b16 %v2177
    %v2211 = vunpack.c.l.b16 %v2178
    %v2212 = vunpack.c.l.b16 %v2179
    %v2213 = vunpack.c.l.b16 %v2180
    %v2214 = vunpack.c.l.b16 %v2181
    %v2215 = vunpack.c.l.b16 %v2182
    %v2216 = vunpack.c.l.b16 %v2183
    %v2217 = vunpack.c.l.b16 %v2184
    %v2218 = vunpack.c.l.b16 %v2185
    %v2219 = vunpack.c.l.b16 %v2186
    %v2220 = vunpack.c.l.b16 %v2187
    %v2221 = vunpack.c.l.b16 %v2188
    %v2222 = vunpack.c.l.b16 %v2189
    %v2223 = vunpack.c.l.b16 %v2190
    %v2224 = vunpack.c.l.b16 %v2191
    %v2225 = vpack.c.b16 %v2210, %v2209
    %v2226 = vpack.c.b16 %v2212, %v2211
    %v2227 = vpack.c.b16 %v2214, %v2213
    %v2228 = vpack.c.b16 %v2216, %v2215
    %v2229 = vpack.c.b16 %v2218, %v2217
    %v2230 = vpack.c.b16 %v2220, %v2219
    %v2231 = vpack.c.b16 %v2222, %v2221
    %v2232 = vpack.c.b16 %v2224, %v2223
    %2241 = vmatprep.subr.bf16.mxu0 0
    %2242 = vmatpush1.bf16.msra.mxu0 %v2232
    %2243 = vmatprep.subr.bf16.mxu0 0
    %2244 = vmatpush1.bf16.msra.mxu0 %v2231
    %2245 = vmatprep.subr.bf16.mxu0 0
    %2246 = vmatpush1.bf16.msra.mxu0 %v2230
    %2247 = vmatprep.subr.bf16.mxu0 0
    %2248 = vmatpush1.bf16.msra.mxu0 %v2229
    %2249 = vmatprep.subr.bf16.mxu0 0
    %2250 = vmatpush1.bf16.msra.mxu0 %v2228
    %2251 = vmatprep.subr.bf16.mxu0 0
    %2252 = vmatpush1.bf16.msra.mxu0 %v2227
    %2253 = vmatprep.subr.bf16.mxu0 0
    %2254 = vmatpush1.bf16.msra.mxu0 %v2226
    %2255 = vmatprep.subr.bf16.mxu0 0
    %2256 = vmatpush1.bf16.msra.mxu0 %v2225
    %2257 = vmatprep.subr.bf16.mxu0 0
    %2258 = vmatpush2.bf16.msra.mxu0 0
    %2259 = vmatprep.subr.bf16.mxu0 0
    %2260 = vmatpush2.bf16.msra.mxu0 0
    %2261 = vmatprep.subr.bf16.mxu0 0
    %2262 = vmatpush2.bf16.msra.mxu0 0
    %2263 = vmatprep.subr.bf16.mxu0 0
    %2264 = vmatpush2.bf16.msra.mxu0 0
    %2265 = vmatprep.subr.bf16.mxu0 0
    %2266 = vmatpush2.bf16.msra.mxu0 0
    %2267 = vmatprep.subr.bf16.mxu0 0
    %2268 = vmatpush2.bf16.msra.mxu0 0
    %2269 = vmatprep.subr.bf16.mxu0 0
    %2270 = vmatpush2.bf16.msra.mxu0 0
    %2271 = vmatprep.subr.bf16.mxu0 0
    %2272 = vmatpush2.bf16.msra.mxu0 0
    %2273 = vmatprep.mubr.bf16.mxu0 0
    %2274 = vmatmul.mubr.bf16.gmra.mxu0 %v2192
    %v2275 = vpop.f32.mrf.mxu0
    %v2276 = vadd.f32 %v1933, %v2275
    %v2277 = vpop.f32.mrf.mxu0
    %v2278 = vpop.f32.mrf.mxu0
    %v2279 = vpop.f32.mrf.mxu0
    %2280 = vdwg.mxu0
    %v2281 = vld [vmem:[%s8 + $0x2] sm:$0x1]
    %v2282 = vlaneseq
    %v2283 = vshrl.u32 %v2282, 7
    %v2284 = vsub.s32 0, %v2283
    %v2285 = vrot.slane %v2281, %v2284
    %v2286 = vadd.f32 %v2276, %v2285
    %v2287 = vld [vmem:[%s1937 + $0x2] sm:$0x1]
    %v2288 = vld [vmem:[%s1939 + $0x2] sm:$0x1]
    %v2289 = vmul.f32 %v2286, %v2286
    %v2290 = vpack.c.bf16 %v2286, %v2286
    %v2291 = vpack.c.bf16 %v2289, %v2289
    %2292 = vmatprep.subr.bf16.mxu0 %v318
    %2293 = vmatpush1.bf16.msra.mxu0 %v317
    %2294 = vmatprep.subr.bf16.mxu0 %v316
    %2295 = vmatpush1.bf16.msra.mxu0 %v315
    %2296 = vmatprep.subr.bf16.mxu0 %v314
    %2297 = vmatpush1.bf16.msra.mxu0 %v313
    %2298 = vmatprep.subr.bf16.mxu0 %v312
    %2299 = vmatpush1.bf16.msra.mxu0 %v311
    %2300 = vmatprep.subr.bf16.mxu0 %v310
    %2301 = vmatpush1.bf16.msra.mxu0 %v309
    %2302 = vmatprep.subr.bf16.mxu0 %v308
    %2303 = vmatpush1.bf16.msra.mxu0 %v307
    %2304 = vmatprep.subr.bf16.mxu0 %v306
    %2305 = vmatpush1.bf16.msra.mxu0 %v305
    %2306 = vmatprep.subr.bf16.mxu0 %v304
    %2307 = vmatpush1.bf16.msra.mxu0 %v303
    %2308 = vmatprep.subr.bf16.mxu0 %v334
    %2309 = vmatpush2.bf16.msra.mxu0 %v333
    %2310 = vmatprep.subr.bf16.mxu0 %v332
    %2311 = vmatpush2.bf16.msra.mxu0 %v331
    %2312 = vmatprep.subr.bf16.mxu0 %v330
    %2313 = vmatpush2.bf16.msra.mxu0 %v329
    %2314 = vmatprep.subr.bf16.mxu0 %v328
    %2315 = vmatpush2.bf16.msra.mxu0 %v327
    %2316 = vmatprep.subr.bf16.mxu0 %v326
    %2317 = vmatpush2.bf16.msra.mxu0 %v325
    %2318 = vmatprep.subr.bf16.mxu0 %v324
    %2319 = vmatpush2.bf16.msra.mxu0 %v323
    %2320 = vmatprep.subr.bf16.mxu0 %v322
    %2321 = vmatpush2.bf16.msra.mxu0 %v321
    %2322 = vmatprep.subr.bf16.mxu0 %v320
    %2323 = vmatpush2.bf16.msra.mxu0 %v319
    %2324 = vmatprep.mubr.bf16.mxu0 %v2291
    %2325 = vmatmul.mubr.bf16.gmra.mxu0 %v2290
    %v2326 = vpop.f32.mrf.mxu0
    %v2327 = vadd.f32 0.0, %v2326
    %v2328 = vpop.f32.mrf.mxu0
    %v2329 = vadd.f32 0.0, %v2328
    %v2330 = vpop.f32.mrf.mxu0
    %v2331 = vpop.f32.mrf.mxu0
    %2332 = vdwg.mxu0
    %v2333 = vmul.f32 %v2327, %v2327
    %v2334 = vsub.f32 %v2329, %v2333
    %v2335 = vmax.f32 %v2334, 0.0
    %v2336 = vadd.f32 %v2335, 1e-05
    %v2337 = vrsqrt.pop %v2336
    %v2338 = vlaneseq
    %v2339 = vshrl.u32 %v2338, 7
    %v2340 = vsub.s32 0, %v2339
    %v2341 = vrot.slane %v2287, %v2340
    %v2342 = vmul.f32 %v2337, %v2341
    %v2343 = vmul.f32 %v2286, %v2342
    %v2344 = vmul.f32 %v2327, %v2342
    %v2345 = vlaneseq
    %v2346 = vshrl.u32 %v2345, 7
    %v2347 = vsub.s32 0, %v2346
    %v2348 = vrot.slane %v2288, %v2347
    %v2349 = vsub.f32 %v2348, %v2344
    %v2350 = vadd.f32 %v2343, %v2349
    %v2351 = vmax.f32 %v2350, 0.0
    %v2352 = vld [vmem:[%s11] sm:$0xf]
    %v2353 = vld [vmem:[%s11 + $0x4] sm:$0xf]
    %v2354 = vld [vmem:[%s11 + $0x8] sm:$0xf]
    %v2355 = vld [vmem:[%s11 + $0xc] sm:$0xf]
    %v2356 = vld [vmem:[%s11 + $0x10] sm:$0xf]
    %v2357 = vld [vmem:[%s11 + $0x14] sm:$0xf]
    %v2358 = vld [vmem:[%s11 + $0x18] sm:$0xf]
    %v2359 = vld [vmem:[%s11 + $0x1c] sm:$0xf]
    %v2360 = vld [vmem:[%s11 + $0x20] sm:$0xf]
    %v2361 = vld [vmem:[%s11 + $0x24] sm:$0xf]
    %v2362 = vld [vmem:[%s11 + $0x28] sm:$0xf]
    %v2363 = vld [vmem:[%s11 + $0x2c] sm:$0xf]
    %v2364 = vld [vmem:[%s11 + $0x30] sm:$0xf]
    %v2365 = vld [vmem:[%s11 + $0x34] sm:$0xf]
    %v2366 = vld [vmem:[%s11 + $0x38] sm:$0xf]
    %v2367 = vld [vmem:[%s11 + $0x3c] sm:$0xf]
    %v2368 = vpack.c.bf16 %v2351, %v2351
    %v2369 = vld [vmem:[%s12] sm:$0x1]
    %v2371 = vlaneseq
    %v2372 = vshrl.u32 %v2371, 7
    %v2373 = vsub.s32 0, %v2372
    %v2374 = vrot.slane %v2369, %v2373
    %v2392 = vunpack.c.l.b16 %v2352
    %v2393 = vunpack.c.l.b16 %v2353
    %v2394 = vunpack.c.l.b16 %v2354
    %v2395 = vunpack.c.l.b16 %v2355
    %v2396 = vunpack.c.l.b16 %v2356
    %v2397 = vunpack.c.l.b16 %v2357
    %v2398 = vunpack.c.l.b16 %v2358
    %v2399 = vunpack.c.l.b16 %v2359
    %v2400 = vunpack.c.l.b16 %v2360
    %v2401 = vunpack.c.l.b16 %v2361
    %v2402 = vunpack.c.l.b16 %v2362
    %v2403 = vunpack.c.l.b16 %v2363
    %v2404 = vunpack.c.l.b16 %v2364
    %v2405 = vunpack.c.l.b16 %v2365
    %v2406 = vunpack.c.l.b16 %v2366
    %v2407 = vunpack.c.l.b16 %v2367
    %v2408 = vpack.c.b16 %v2393, %v2392
    %v2409 = vpack.c.b16 %v2395, %v2394
    %v2410 = vpack.c.b16 %v2397, %v2396
    %v2411 = vpack.c.b16 %v2399, %v2398
    %v2412 = vpack.c.b16 %v2401, %v2400
    %v2413 = vpack.c.b16 %v2403, %v2402
    %v2414 = vpack.c.b16 %v2405, %v2404
    %v2415 = vpack.c.b16 %v2407, %v2406
    %2424 = vmatprep.subr.bf16.mxu0 0
    %2425 = vmatpush1.bf16.msra.mxu0 %v2415
    %2426 = vmatprep.subr.bf16.mxu0 0
    %2427 = vmatpush1.bf16.msra.mxu0 %v2414
    %2428 = vmatprep.subr.bf16.mxu0 0
    %2429 = vmatpush1.bf16.msra.mxu0 %v2413
    %2430 = vmatprep.subr.bf16.mxu0 0
    %2431 = vmatpush1.bf16.msra.mxu0 %v2412
    %2432 = vmatprep.subr.bf16.mxu0 0
    %2433 = vmatpush1.bf16.msra.mxu0 %v2411
    %2434 = vmatprep.subr.bf16.mxu0 0
    %2435 = vmatpush1.bf16.msra.mxu0 %v2410
    %2436 = vmatprep.subr.bf16.mxu0 0
    %2437 = vmatpush1.bf16.msra.mxu0 %v2409
    %2438 = vmatprep.subr.bf16.mxu0 0
    %2439 = vmatpush1.bf16.msra.mxu0 %v2408
    %2440 = vmatprep.subr.bf16.mxu0 0
    %2441 = vmatpush2.bf16.msra.mxu0 0
    %2442 = vmatprep.subr.bf16.mxu0 0
    %2443 = vmatpush2.bf16.msra.mxu0 0
    %2444 = vmatprep.subr.bf16.mxu0 0
    %2445 = vmatpush2.bf16.msra.mxu0 0
    %2446 = vmatprep.subr.bf16.mxu0 0
    %2447 = vmatpush2.bf16.msra.mxu0 0
    %2448 = vmatprep.subr.bf16.mxu0 0
    %2449 = vmatpush2.bf16.msra.mxu0 0
    %2450 = vmatprep.subr.bf16.mxu0 0
    %2451 = vmatpush2.bf16.msra.mxu0 0
    %2452 = vmatprep.subr.bf16.mxu0 0
    %2453 = vmatpush2.bf16.msra.mxu0 0
    %2454 = vmatprep.subr.bf16.mxu0 0
    %2455 = vmatpush2.bf16.msra.mxu0 0
    %2456 = vmatprep.mubr.bf16.mxu0 0
    %2457 = vmatmul.mubr.bf16.gmra.mxu0 %v2368
    %v2458 = vpop.f32.mrf.mxu0
    %v2459 = vadd.f32 %v2374, %v2458
    %v2460 = vpop.f32.mrf.mxu0
    %v2461 = vpop.f32.mrf.mxu0
    %v2462 = vpop.f32.mrf.mxu0
    %2463 = vdwg.mxu0
    %v2464 = vmul.f32 %v2459, %v2459
    %2465 = vadd.xlane.f32.xlu0 %v2464
    %v2466 = vpop.xlane.xlu0 %2465
    %v2467 = vmax.f32 %v2466, 1e-24
    %v2468 = vrsqrt.pop %v2467
    %v2469 = vmul.f32 %v2459, %v2468
    %2470 = vst [vmem:[#allocation2] sm:$0xff] %v2469
    // Predicated region
    $region62: #{_lambda_.1} parent=1 // pred_check
      _
    $region63: #{_lambda_.1} parent=1 // pred_check_branch
      %2472 = sbr.rel (0) target = $region65
    $region64: #{_lambda_.1} parent=1 // pred_region
      %s2474 = ssub.s32 128, 128
      %2475 = vsyncadd [#allocation3], %s2474
      %s2477 = sshll.u32 [#allocation2], 4
      %s2478 = int_to_ptr.vmem [resolvable:$true] %s2477
      %2480 = dma.vmem_to_hbm [thread:$0]  %s2478, 128, %s15, [#allocation3]
    $region65: #{_lambda_.1} parent=1 // pred_fallthru
      _
    // Predicated region
    $region66: #{_lambda_.1} parent=1 // pred_check
      _
    $region67: #{_lambda_.1} parent=1 // pred_check_branch
      %2482 = sbr.rel (0) target = $region69
    $region68: #{_lambda_.1} parent=1 // pred_region
      %2483 = dma.done [#allocation3], 128
    $region69: #{_lambda_.1} parent=1 // pred_fallthru
      _
    %2484 = vsyncpa [#allocation3], 1

</llo_original>
